<compile_context>
chip_gen: v5e
topology: v5e:2x2
jax: 0.10.0
libtpu: 0.0.40
codegen_flags: <defaults>
</compile_context>

<pallas_src>
import functools

import jax
import jax.numpy as jnp
from jax.experimental import pallas as pl
from jax.experimental.pallas import tpu as pltpu

EPS = 1e-5


# ----------------------------------------------------------------------------
# Fused Pallas kernel: one batch element per grid step.
# ----------------------------------------------------------------------------
def _msca_kernel(x_ref, w1l_ref, sb1l_ref, w2l_ref, sb2l_ref,
                 w1g_ref, sb1g_ref, w2g_ref, sb2g_ref,
                 o_ref, pad1_ref, pad2_ref, *, H, W, Cin, Cmid):
    HW = H * W
    xf = x_ref[0]                                   # (H, W, Cin) f32
    x_flat = xf.reshape(HW, Cin)

    def affine_prelu(acc, sb_ref):
        # sb_ref rows: 0 = folded BN*conv-bias scale, 1 = folded bias,
        #              2 = PReLU slope (broadcast per channel)
        z = acc * sb_ref[0:1, :] + sb_ref[1:2, :]
        return jnp.where(z > 0, z, z * sb_ref[2:3, :])

    def conv3x3(pad_ref, w_ref, c_in):
        # Shifted-window conv: one bf16 MXU matmul per tap, vreg accumulator.
        acc = None
        t = 0
        for i in range(3):
            for j in range(3):
                patch = pad_ref[i:i + H, j:j + W, :].reshape(HW, c_in)
                d = jnp.dot(patch.astype(jnp.bfloat16), w_ref[t],
                            preferred_element_type=jnp.float32)
                acc = d if acc is None else acc + d
                t += 1
        return acc                                   # (HW, Cout) f32

    # ---------------- local branch: (conv3x3 -> BN -> PReLU) x 2 ------------
    pad1_ref[...] = jnp.zeros_like(pad1_ref)
    pad1_ref[1:H + 1, 1:W + 1, :] = xf
    h1 = affine_prelu(conv3x3(pad1_ref, w1l_ref, Cin), sb1l_ref)    # (HW,Cmid)

    pad2_ref[...] = jnp.zeros_like(pad2_ref)
    pad2_ref[1:H + 1, 1:W + 1, :] = h1.reshape(H, W, Cmid)
    hl = affine_prelu(conv3x3(pad2_ref, w2l_ref, Cmid), sb2l_ref)   # (HW,Cin)

    # ------------- global branch: avgpool(1) -> (conv -> BN -> PReLU) x 2 ---
    # A 3x3 / pad-1 conv on a 1x1 map only touches its centre tap, so each
    # global conv is exactly a (Cin,Cout) matmul on the pooled vector.
    pooled = jnp.sum(x_flat, axis=0, keepdims=True) * (1.0 / HW)    # (1, Cin)
    pooled8 = jnp.broadcast_to(pooled, (8, Cin)).astype(jnp.bfloat16)
    g1 = affine_prelu(
        jnp.dot(pooled8, w1g_ref[...], preferred_element_type=jnp.float32),
        sb1g_ref)                                                    # (8,Cmid)
    g2 = affine_prelu(
        jnp.dot(g1.astype(jnp.bfloat16), w2g_ref[...],
                preferred_element_type=jnp.float32),
        sb2g_ref)                                                    # (8,Cin)
    hg = g2[0:1, :]                                                  # (1,Cin)

    # -------- combine: sigmoid((local + x) + (global + x)) ------------------
    v = hl + hg + 2.0 * x_flat
    out = 1.0 / (1.0 + jnp.exp(-v))                                  # sigmoid
    o_ref[...] = out.reshape(1, H, W, Cin).astype(o_ref.dtype)


def msca_forward(x_nchw, params):
    x = jnp.transpose(x_nchw, (0, 2, 3, 1))            # NCHW -> NHWC
    N, H, W, C = x.shape
    Cmid = params['w2l'].shape[1]
    kern = functools.partial(_msca_kernel, H=H, W=W, Cin=C, Cmid=Cmid)

    out = pl.pallas_call(
        kern,
        out_shape=jax.ShapeDtypeStruct((N, H, W, C), x.dtype),
        grid_spec=pltpu.PrefetchScalarGridSpec(
            num_scalar_prefetch=0,
            grid=(N,),
            in_specs=[
                pl.BlockSpec((1, H, W, C), lambda n: (n, 0, 0, 0)),
                pl.BlockSpec((9, C, Cmid), lambda n: (0, 0, 0)),
                pl.BlockSpec((3, Cmid), lambda n: (0, 0)),
                pl.BlockSpec((9, Cmid, C), lambda n: (0, 0, 0)),
                pl.BlockSpec((3, C), lambda n: (0, 0)),
                pl.BlockSpec((C, Cmid), lambda n: (0, 0)),
                pl.BlockSpec((3, Cmid), lambda n: (0, 0)),
                pl.BlockSpec((Cmid, C), lambda n: (0, 0)),
                pl.BlockSpec((3, C), lambda n: (0, 0)),
            ],
            out_specs=pl.BlockSpec((1, H, W, C), lambda n: (n, 0, 0, 0)),
            scratch_shapes=[
                pltpu.VMEM((H + 2, W + 2, C), jnp.float32),     # padded x
                pltpu.VMEM((H + 2, W + 2, Cmid), jnp.float32),  # padded mid
            ],
        ),
        compiler_params=pltpu.CompilerParams(
            dimension_semantics=("parallel",)),
    )(x, params['w1l'], params['sb1l'], params['w2l'], params['sb2l'],
      params['w1g'], params['sb1g'], params['w2g'], params['sb2g'])
    return jnp.transpose(out, (0, 3, 1, 2))             # NHWC -> NCHW


# ----------------------------------------------------------------------------
# Parameter construction (deterministic, synthetic)
# ----------------------------------------------------------------------------
class KeyGen:
    def __init__(self, key):
        self.key = key

    def __call__(self):
        self.key, k = jax.random.split(self.key)
        return k


def init_params(key, channels=64, r=16):
    """MSCA(channels, r) parameters with conv bias + inference-mode BatchNorm
    folded into a per-channel (scale, bias) and the PReLU slope broadcast per
    channel.  Weights stored tap-major as (9, Cin, Cout) in bf16."""
    cmid = channels // r
    kg = KeyGen(key)

    def bn(c):
        gamma = 1.0 + 0.1 * jax.random.normal(kg(), (c,), jnp.float32)
        beta = 0.1 * jax.random.normal(kg(), (c,), jnp.float32)
        mean = 0.1 * jax.random.normal(kg(), (c,), jnp.float32)
        var = 0.5 + jax.random.uniform(kg(), (c,), jnp.float32)
        s = gamma * jax.lax.rsqrt(var + EPS)
        return s, beta - mean * s

    def conv_bn_prelu(cin, cout, center_only=False):
        w = 0.1 * jax.random.normal(kg(), (3, 3, cin, cout), jnp.float32)
        bconv = 0.1 * jax.random.normal(kg(), (cout,), jnp.float32)
        s, b = bn(cout)
        slope = jnp.full((cout,), 0.25, jnp.float32)   # nn.PReLU() default
        sb = jnp.stack([s, s * bconv + b, slope])      # (3, cout) f32
        w = w.reshape(9, cin, cout)
        if center_only:
            w = w[4]                                   # centre tap (cin, cout)
        return w.astype(jnp.bfloat16), sb

    w1l, sb1l = conv_bn_prelu(channels, cmid)
    w2l, sb2l = conv_bn_prelu(cmid, channels)
    w1g, sb1g = conv_bn_prelu(channels, cmid, center_only=True)
    w2g, sb2g = conv_bn_prelu(cmid, channels, center_only=True)
    return dict(w1l=w1l, sb1l=sb1l, w2l=w2l, sb2l=sb2l,
                w1g=w1g, sb1g=sb1g, w2g=w2g, sb2g=sb2g)


if __name__ == "__main__":
    key = jax.random.PRNGKey(0)
    pkey, xkey = jax.random.split(key)

    channels, r = 64, 16                       # MSCA defaults -> out_channels=4
    params = init_params(pkey, channels=channels, r=r)
    x = jax.random.normal(xkey, (2, channels, 16, 16), jnp.float32)

    fwd = jax.jit(lambda xx: msca_forward(xx, params))
    out = fwd(x)
    jax.block_until_ready(out)
    assert out.shape == x.shape, out.shape
    assert bool(jnp.all(jnp.isfinite(out)))
    assert bool(jnp.all((out >= 0.0) & (out <= 1.0)))   # sigmoid output range
    print("KERNEL_OK")
</pallas_src>

<mosaic_0001>
module attributes {stable_mosaic.version = 11 : i64} {
  func.func @_msca_kernel(%arg0: i32, %arg1: memref<1x16x16x64xf32, #tpu.memory_space<vmem>>, %arg2: memref<9x64x4xbf16, #tpu.memory_space<vmem>>, %arg3: memref<3x4xf32, #tpu.memory_space<vmem>>, %arg4: memref<9x4x64xbf16, #tpu.memory_space<vmem>>, %arg5: memref<3x64xf32, #tpu.memory_space<vmem>>, %arg6: memref<64x4xbf16, #tpu.memory_space<vmem>>, %arg7: memref<3x4xf32, #tpu.memory_space<vmem>>, %arg8: memref<4x64xbf16, #tpu.memory_space<vmem>>, %arg9: memref<3x64xf32, #tpu.memory_space<vmem>>, %arg10: memref<1x16x16x64xf32, #tpu.memory_space<vmem>>, %arg11: memref<18x18x64xf32, #tpu.memory_space<vmem>>, %arg12: memref<18x18x4xf32, #tpu.memory_space<vmem>>) attributes {dimension_semantics = [#tpu.dimension_semantics<parallel>], iteration_bounds = array<i64: 2>, scalar_prefetch = 0 : i64, scratch_operands = 2 : i64, tpu.core_type = #tpu.core_type<tc>, window_params = [{transform_indices = @transform_0, window_bounds = array<i64: 1, 16, 16, 64>}, {pipeline_mode = #tpu.pipeline_mode<synchronous>, transform_indices = @transform_1, window_bounds = array<i64: 9, 64, 4>}, {pipeline_mode = #tpu.pipeline_mode<synchronous>, transform_indices = @transform_2, window_bounds = array<i64: 3, 4>}, {pipeline_mode = #tpu.pipeline_mode<synchronous>, transform_indices = @transform_3, window_bounds = array<i64: 9, 4, 64>}, {pipeline_mode = #tpu.pipeline_mode<synchronous>, transform_indices = @transform_4, window_bounds = array<i64: 3, 64>}, {pipeline_mode = #tpu.pipeline_mode<synchronous>, transform_indices = @transform_5, window_bounds = array<i64: 64, 4>}, {pipeline_mode = #tpu.pipeline_mode<synchronous>, transform_indices = @transform_6, window_bounds = array<i64: 3, 4>}, {pipeline_mode = #tpu.pipeline_mode<synchronous>, transform_indices = @transform_7, window_bounds = array<i64: 4, 64>}, {pipeline_mode = #tpu.pipeline_mode<synchronous>, transform_indices = @transform_8, window_bounds = array<i64: 3, 64>}, {transform_indices = @transform_9, window_bounds = array<i64: 1, 16, 16, 64>}]} {
    %c0 = arith.constant 0 : index
    %c0_0 = arith.constant 0 : index
    %c0_1 = arith.constant 0 : index
    %c0_2 = arith.constant 0 : index
    %0 = vector.load %arg1[%c0, %c0_0, %c0_1, %c0_2] : memref<1x16x16x64xf32, #tpu.memory_space<vmem>>, vector<1x16x16x64xf32>
    %1 = vector.shape_cast %0 : vector<1x16x16x64xf32> to vector<16x16x64xf32>
    %2 = vector.shape_cast %1 : vector<16x16x64xf32> to vector<256x64xf32>
    %cst = arith.constant 0.000000e+00 : f32
    %3 = vector.broadcast %cst : f32 to vector<18x18x64xf32>
    %c0_3 = arith.constant 0 : index
    %c0_4 = arith.constant 0 : index
    %c0_5 = arith.constant 0 : index
    %4 = vector.load %arg11[%c0_3, %c0_4, %c0_5] : memref<18x18x64xf32, #tpu.memory_space<vmem>>, vector<18x18x64xf32>
    tpu.vector_store %arg11[%c0_3, %c0_4, %c0_5], %3 {strides = array<i32>} : memref<18x18x64xf32, #tpu.memory_space<vmem>>, vector<18x18x64xf32>,
    %c1 = arith.constant 1 : index
    %c1_6 = arith.constant 1 : index
    %c0_7 = arith.constant 0 : index
    %5 = vector.load %arg11[%c1, %c1_6, %c0_7] : memref<18x18x64xf32, #tpu.memory_space<vmem>>, vector<16x16x64xf32>
    tpu.vector_store %arg11[%c1, %c1_6, %c0_7], %1 {strides = array<i32>} : memref<18x18x64xf32, #tpu.memory_space<vmem>>, vector<16x16x64xf32>,
    %c0_8 = arith.constant 0 : index
    %c0_9 = arith.constant 0 : index
    %c0_10 = arith.constant 0 : index
    %6 = vector.load %arg11[%c0_8, %c0_9, %c0_10] : memref<18x18x64xf32, #tpu.memory_space<vmem>>, vector<16x16x64xf32>
    %7 = vector.shape_cast %6 : vector<16x16x64xf32> to vector<256x64xf32>
    %8 = arith.truncf %7 : vector<256x64xf32> to vector<256x64xbf16>
    %c0_11 = arith.constant 0 : index
    %c0_12 = arith.constant 0 : index
    %c0_13 = arith.constant 0 : index
    %9 = vector.load %arg2[%c0_11, %c0_12, %c0_13] : memref<9x64x4xbf16, #tpu.memory_space<vmem>>, vector<1x64x4xbf16>
    %10 = vector.shape_cast %9 : vector<1x64x4xbf16> to vector<64x4xbf16>
    %cst_14 = arith.constant dense<0.000000e+00> : vector<256x4xf32>
    %11 = tpu.matmul %8, %10, %cst_14 {dimension_numbers = #tpu.dot_dimension_numbers<[1], [0], [0], [1], [0, 0, 1, 1], [], []>} : vector<256x64xbf16>, vector<64x4xbf16>, vector<256x4xf32> -> vector<256x4xf32>
    %c0_15 = arith.constant 0 : index
    %c1_16 = arith.constant 1 : index
    %c0_17 = arith.constant 0 : index
    %12 = vector.load %arg11[%c0_15, %c1_16, %c0_17] : memref<18x18x64xf32, #tpu.memory_space<vmem>>, vector<16x16x64xf32>
    %13 = vector.shape_cast %12 : vector<16x16x64xf32> to vector<256x64xf32>
    %14 = arith.truncf %13 : vector<256x64xf32> to vector<256x64xbf16>
    %c1_18 = arith.constant 1 : index
    %c0_19 = arith.constant 0 : index
    %c0_20 = arith.constant 0 : index
    %15 = vector.load %arg2[%c1_18, %c0_19, %c0_20] : memref<9x64x4xbf16, #tpu.memory_space<vmem>>, vector<1x64x4xbf16>
    %16 = vector.shape_cast %15 : vector<1x64x4xbf16> to vector<64x4xbf16>
    %cst_21 = arith.constant dense<0.000000e+00> : vector<256x4xf32>
    %17 = tpu.matmul %14, %16, %cst_21 {dimension_numbers = #tpu.dot_dimension_numbers<[1], [0], [0], [1], [0, 0, 1, 1], [], []>} : vector<256x64xbf16>, vector<64x4xbf16>, vector<256x4xf32> -> vector<256x4xf32>
    %18 = arith.addf %11, %17 : vector<256x4xf32>
    %c0_22 = arith.constant 0 : index
    %c2 = arith.constant 2 : index
    %c0_23 = arith.constant 0 : index
    %19 = vector.load %arg11[%c0_22, %c2, %c0_23] : memref<18x18x64xf32, #tpu.memory_space<vmem>>, vector<16x16x64xf32>
    %20 = vector.shape_cast %19 : vector<16x16x64xf32> to vector<256x64xf32>
    %21 = arith.truncf %20 : vector<256x64xf32> to vector<256x64xbf16>
    %c2_24 = arith.constant 2 : index
    %c0_25 = arith.constant 0 : index
    %c0_26 = arith.constant 0 : index
    %22 = vector.load %arg2[%c2_24, %c0_25, %c0_26] : memref<9x64x4xbf16, #tpu.memory_space<vmem>>, vector<1x64x4xbf16>
    %23 = vector.shape_cast %22 : vector<1x64x4xbf16> to vector<64x4xbf16>
    %cst_27 = arith.constant dense<0.000000e+00> : vector<256x4xf32>
    %24 = tpu.matmul %21, %23, %cst_27 {dimension_numbers = #tpu.dot_dimension_numbers<[1], [0], [0], [1], [0, 0, 1, 1], [], []>} : vector<256x64xbf16>, vector<64x4xbf16>, vector<256x4xf32> -> vector<256x4xf32>
    %25 = arith.addf %18, %24 : vector<256x4xf32>
    %c1_28 = arith.constant 1 : index
    %c0_29 = arith.constant 0 : index
    %c0_30 = arith.constant 0 : index
    %26 = vector.load %arg11[%c1_28, %c0_29, %c0_30] : memref<18x18x64xf32, #tpu.memory_space<vmem>>, vector<16x16x64xf32>
    %27 = vector.shape_cast %26 : vector<16x16x64xf32> to vector<256x64xf32>
    %28 = arith.truncf %27 : vector<256x64xf32> to vector<256x64xbf16>
    %c3 = arith.constant 3 : index
    %c0_31 = arith.constant 0 : index
    %c0_32 = arith.constant 0 : index
    %29 = vector.load %arg2[%c3, %c0_31, %c0_32] : memref<9x64x4xbf16, #tpu.memory_space<vmem>>, vector<1x64x4xbf16>
    %30 = vector.shape_cast %29 : vector<1x64x4xbf16> to vector<64x4xbf16>
    %cst_33 = arith.constant dense<0.000000e+00> : vector<256x4xf32>
    %31 = tpu.matmul %28, %30, %cst_33 {dimension_numbers = #tpu.dot_dimension_numbers<[1], [0], [0], [1], [0, 0, 1, 1], [], []>} : vector<256x64xbf16>, vector<64x4xbf16>, vector<256x4xf32> -> vector<256x4xf32>
    %32 = arith.addf %25, %31 : vector<256x4xf32>
    %c1_34 = arith.constant 1 : index
    %c1_35 = arith.constant 1 : index
    %c0_36 = arith.constant 0 : index
    %33 = vector.load %arg11[%c1_34, %c1_35, %c0_36] : memref<18x18x64xf32, #tpu.memory_space<vmem>>, vector<16x16x64xf32>
    %34 = vector.shape_cast %33 : vector<16x16x64xf32> to vector<256x64xf32>
    %35 = arith.truncf %34 : vector<256x64xf32> to vector<256x64xbf16>
    %c4 = arith.constant 4 : index
    %c0_37 = arith.constant 0 : index
    %c0_38 = arith.constant 0 : index
    %36 = vector.load %arg2[%c4, %c0_37, %c0_38] : memref<9x64x4xbf16, #tpu.memory_space<vmem>>, vector<1x64x4xbf16>
    %37 = vector.shape_cast %36 : vector<1x64x4xbf16> to vector<64x4xbf16>
    %cst_39 = arith.constant dense<0.000000e+00> : vector<256x4xf32>
    %38 = tpu.matmul %35, %37, %cst_39 {dimension_numbers = #tpu.dot_dimension_numbers<[1], [0], [0], [1], [0, 0, 1, 1], [], []>} : vector<256x64xbf16>, vector<64x4xbf16>, vector<256x4xf32> -> vector<256x4xf32>
    %39 = arith.addf %32, %38 : vector<256x4xf32>
    %c1_40 = arith.constant 1 : index
    %c2_41 = arith.constant 2 : index
    %c0_42 = arith.constant 0 : index
    %40 = vector.load %arg11[%c1_40, %c2_41, %c0_42] : memref<18x18x64xf32, #tpu.memory_space<vmem>>, vector<16x16x64xf32>
    %41 = vector.shape_cast %40 : vector<16x16x64xf32> to vector<256x64xf32>
    %42 = arith.truncf %41 : vector<256x64xf32> to vector<256x64xbf16>
    %c5 = arith.constant 5 : index
    %c0_43 = arith.constant 0 : index
    %c0_44 = arith.constant 0 : index
    %43 = vector.load %arg2[%c5, %c0_43, %c0_44] : memref<9x64x4xbf16, #tpu.memory_space<vmem>>, vector<1x64x4xbf16>
    %44 = vector.shape_cast %43 : vector<1x64x4xbf16> to vector<64x4xbf16>
    %cst_45 = arith.constant dense<0.000000e+00> : vector<256x4xf32>
    %45 = tpu.matmul %42, %44, %cst_45 {dimension_numbers = #tpu.dot_dimension_numbers<[1], [0], [0], [1], [0, 0, 1, 1], [], []>} : vector<256x64xbf16>, vector<64x4xbf16>, vector<256x4xf32> -> vector<256x4xf32>
    %46 = arith.addf %39, %45 : vector<256x4xf32>
    %c2_46 = arith.constant 2 : index
    %c0_47 = arith.constant 0 : index
    %c0_48 = arith.constant 0 : index
    %47 = vector.load %arg11[%c2_46, %c0_47, %c0_48] : memref<18x18x64xf32, #tpu.memory_space<vmem>>, vector<16x16x64xf32>
    %48 = vector.shape_cast %47 : vector<16x16x64xf32> to vector<256x64xf32>
    %49 = arith.truncf %48 : vector<256x64xf32> to vector<256x64xbf16>
    %c6 = arith.constant 6 : index
    %c0_49 = arith.constant 0 : index
    %c0_50 = arith.constant 0 : index
    %50 = vector.load %arg2[%c6, %c0_49, %c0_50] : memref<9x64x4xbf16, #tpu.memory_space<vmem>>, vector<1x64x4xbf16>
    %51 = vector.shape_cast %50 : vector<1x64x4xbf16> to vector<64x4xbf16>
    %cst_51 = arith.constant dense<0.000000e+00> : vector<256x4xf32>
    %52 = tpu.matmul %49, %51, %cst_51 {dimension_numbers = #tpu.dot_dimension_numbers<[1], [0], [0], [1], [0, 0, 1, 1], [], []>} : vector<256x64xbf16>, vector<64x4xbf16>, vector<256x4xf32> -> vector<256x4xf32>
    %53 = arith.addf %46, %52 : vector<256x4xf32>
    %c2_52 = arith.constant 2 : index
    %c1_53 = arith.constant 1 : index
    %c0_54 = arith.constant 0 : index
    %54 = vector.load %arg11[%c2_52, %c1_53, %c0_54] : memref<18x18x64xf32, #tpu.memory_space<vmem>>, vector<16x16x64xf32>
    %55 = vector.shape_cast %54 : vector<16x16x64xf32> to vector<256x64xf32>
    %56 = arith.truncf %55 : vector<256x64xf32> to vector<256x64xbf16>
    %c7 = arith.constant 7 : index
    %c0_55 = arith.constant 0 : index
    %c0_56 = arith.constant 0 : index
    %57 = vector.load %arg2[%c7, %c0_55, %c0_56] : memref<9x64x4xbf16, #tpu.memory_space<vmem>>, vector<1x64x4xbf16>
    %58 = vector.shape_cast %57 : vector<1x64x4xbf16> to vector<64x4xbf16>
    %cst_57 = arith.constant dense<0.000000e+00> : vector<256x4xf32>
    %59 = tpu.matmul %56, %58, %cst_57 {dimension_numbers = #tpu.dot_dimension_numbers<[1], [0], [0], [1], [0, 0, 1, 1], [], []>} : vector<256x64xbf16>, vector<64x4xbf16>, vector<256x4xf32> -> vector<256x4xf32>
    %60 = arith.addf %53, %59 : vector<256x4xf32>
    %c2_58 = arith.constant 2 : index
    %c2_59 = arith.constant 2 : index
    %c0_60 = arith.constant 0 : index
    %61 = vector.load %arg11[%c2_58, %c2_59, %c0_60] : memref<18x18x64xf32, #tpu.memory_space<vmem>>, vector<16x16x64xf32>
    %62 = vector.shape_cast %61 : vector<16x16x64xf32> to vector<256x64xf32>
    %63 = arith.truncf %62 : vector<256x64xf32> to vector<256x64xbf16>
    %c8 = arith.constant 8 : index
    %c0_61 = arith.constant 0 : index
    %c0_62 = arith.constant 0 : index
    %64 = vector.load %arg2[%c8, %c0_61, %c0_62] : memref<9x64x4xbf16, #tpu.memory_space<vmem>>, vector<1x64x4xbf16>
    %65 = vector.shape_cast %64 : vector<1x64x4xbf16> to vector<64x4xbf16>
    %cst_63 = arith.constant dense<0.000000e+00> : vector<256x4xf32>
    %66 = tpu.matmul %63, %65, %cst_63 {dimension_numbers = #tpu.dot_dimension_numbers<[1], [0], [0], [1], [0, 0, 1, 1], [], []>} : vector<256x64xbf16>, vector<64x4xbf16>, vector<256x4xf32> -> vector<256x4xf32>
    %67 = arith.addf %60, %66 : vector<256x4xf32>
    %c0_64 = arith.constant 0 : index
    %c0_65 = arith.constant 0 : index
    %68 = vector.load %arg3[%c0_64, %c0_65] : memref<3x4xf32, #tpu.memory_space<vmem>>, vector<1x4xf32>
    %69 = vector.broadcast %68 : vector<1x4xf32> to vector<256x4xf32>
    %70 = arith.mulf %67, %69 : vector<256x4xf32>
    %c1_66 = arith.constant 1 : index
    %c0_67 = arith.constant 0 : index
    %71 = vector.load %arg3[%c1_66, %c0_67] : memref<3x4xf32, #tpu.memory_space<vmem>>, vector<1x4xf32>
    %72 = vector.broadcast %71 : vector<1x4xf32> to vector<256x4xf32>
    %73 = arith.addf %70, %72 : vector<256x4xf32>
    %cst_68 = arith.constant 0.000000e+00 : f32
    %74 = vector.broadcast %cst_68 : f32 to vector<256x4xf32>
    %75 = arith.cmpf ogt, %73, %74 : vector<256x4xf32>
    %c2_69 = arith.constant 2 : index
    %c0_70 = arith.constant 0 : index
    %76 = vector.load %arg3[%c2_69, %c0_70] : memref<3x4xf32, #tpu.memory_space<vmem>>, vector<1x4xf32>
    %77 = vector.broadcast %76 : vector<1x4xf32> to vector<256x4xf32>
    %78 = arith.mulf %73, %77 : vector<256x4xf32>
    %79 = arith.select %75, %73, %78 : vector<256x4xi1>, vector<256x4xf32>
    %cst_71 = arith.constant 0.000000e+00 : f32
    %80 = vector.broadcast %cst_71 : f32 to vector<18x18x4xf32>
    %c0_72 = arith.constant 0 : index
    %c0_73 = arith.constant 0 : index
    %c0_74 = arith.constant 0 : index
    %81 = vector.load %arg12[%c0_72, %c0_73, %c0_74] : memref<18x18x4xf32, #tpu.memory_space<vmem>>, vector<18x18x4xf32>
    tpu.vector_store %arg12[%c0_72, %c0_73, %c0_74], %80 {strides = array<i32>} : memref<18x18x4xf32, #tpu.memory_space<vmem>>, vector<18x18x4xf32>,
    %82 = vector.shape_cast %79 : vector<256x4xf32> to vector<16x16x4xf32>
    %c1_75 = arith.constant 1 : index
    %c1_76 = arith.constant 1 : index
    %c0_77 = arith.constant 0 : index
    %83 = vector.load %arg12[%c1_75, %c1_76, %c0_77] : memref<18x18x4xf32, #tpu.memory_space<vmem>>, vector<16x16x4xf32>
    tpu.vector_store %arg12[%c1_75, %c1_76, %c0_77], %82 {strides = array<i32>} : memref<18x18x4xf32, #tpu.memory_space<vmem>>, vector<16x16x4xf32>,
    %c0_78 = arith.constant 0 : index
    %c0_79 = arith.constant 0 : index
    %c0_80 = arith.constant 0 : index
    %84 = vector.load %arg12[%c0_78, %c0_79, %c0_80] : memref<18x18x4xf32, #tpu.memory_space<vmem>>, vector<16x16x4xf32>
    %85 = vector.shape_cast %84 : vector<16x16x4xf32> to vector<256x4xf32>
    %86 = arith.truncf %85 : vector<256x4xf32> to vector<256x4xbf16>
    %c0_81 = arith.constant 0 : index
    %c0_82 = arith.constant 0 : index
    %c0_83 = arith.constant 0 : index
    %87 = vector.load %arg4[%c0_81, %c0_82, %c0_83] : memref<9x4x64xbf16, #tpu.memory_space<vmem>>, vector<1x4x64xbf16>
    %88 = vector.shape_cast %87 : vector<1x4x64xbf16> to vector<4x64xbf16>
    %cst_84 = arith.constant dense<0.000000e+00> : vector<256x64xf32>
    %89 = tpu.matmul %86, %88, %cst_84 {dimension_numbers = #tpu.dot_dimension_numbers<[1], [0], [0], [1], [0, 0, 1, 1], [], []>} : vector<256x4xbf16>, vector<4x64xbf16>, vector<256x64xf32> -> vector<256x64xf32>
    %c0_85 = arith.constant 0 : index
    %c1_86 = arith.constant 1 : index
    %c0_87 = arith.constant 0 : index
    %90 = vector.load %arg12[%c0_85, %c1_86, %c0_87] : memref<18x18x4xf32, #tpu.memory_space<vmem>>, vector<16x16x4xf32>
    %91 = vector.shape_cast %90 : vector<16x16x4xf32> to vector<256x4xf32>
    %92 = arith.truncf %91 : vector<256x4xf32> to vector<256x4xbf16>
    %c1_88 = arith.constant 1 : index
    %c0_89 = arith.constant 0 : index
    %c0_90 = arith.constant 0 : index
    %93 = vector.load %arg4[%c1_88, %c0_89, %c0_90] : memref<9x4x64xbf16, #tpu.memory_space<vmem>>, vector<1x4x64xbf16>
    %94 = vector.shape_cast %93 : vector<1x4x64xbf16> to vector<4x64xbf16>
    %cst_91 = arith.constant dense<0.000000e+00> : vector<256x64xf32>
    %95 = tpu.matmul %92, %94, %cst_91 {dimension_numbers = #tpu.dot_dimension_numbers<[1], [0], [0], [1], [0, 0, 1, 1], [], []>} : vector<256x4xbf16>, vector<4x64xbf16>, vector<256x64xf32> -> vector<256x64xf32>
    %96 = arith.addf %89, %95 : vector<256x64xf32>
    %c0_92 = arith.constant 0 : index
    %c2_93 = arith.constant 2 : index
    %c0_94 = arith.constant 0 : index
    %97 = vector.load %arg12[%c0_92, %c2_93, %c0_94] : memref<18x18x4xf32, #tpu.memory_space<vmem>>, vector<16x16x4xf32>
    %98 = vector.shape_cast %97 : vector<16x16x4xf32> to vector<256x4xf32>
    %99 = arith.truncf %98 : vector<256x4xf32> to vector<256x4xbf16>
    %c2_95 = arith.constant 2 : index
    %c0_96 = arith.constant 0 : index
    %c0_97 = arith.constant 0 : index
    %100 = vector.load %arg4[%c2_95, %c0_96, %c0_97] : memref<9x4x64xbf16, #tpu.memory_space<vmem>>, vector<1x4x64xbf16>
    %101 = vector.shape_cast %100 : vector<1x4x64xbf16> to vector<4x64xbf16>
    %cst_98 = arith.constant dense<0.000000e+00> : vector<256x64xf32>
    %102 = tpu.matmul %99, %101, %cst_98 {dimension_numbers = #tpu.dot_dimension_numbers<[1], [0], [0], [1], [0, 0, 1, 1], [], []>} : vector<256x4xbf16>, vector<4x64xbf16>, vector<256x64xf32> -> vector<256x64xf32>
    %103 = arith.addf %96, %102 : vector<256x64xf32>
    %c1_99 = arith.constant 1 : index
    %c0_100 = arith.constant 0 : index
    %c0_101 = arith.constant 0 : index
    %104 = vector.load %arg12[%c1_99, %c0_100, %c0_101] : memref<18x18x4xf32, #tpu.memory_space<vmem>>, vector<16x16x4xf32>
    %105 = vector.shape_cast %104 : vector<16x16x4xf32> to vector<256x4xf32>
    %106 = arith.truncf %105 : vector<256x4xf32> to vector<256x4xbf16>
    %c3_102 = arith.constant 3 : index
    %c0_103 = arith.constant 0 : index
    %c0_104 = arith.constant 0 : index
    %107 = vector.load %arg4[%c3_102, %c0_103, %c0_104] : memref<9x4x64xbf16, #tpu.memory_space<vmem>>, vector<1x4x64xbf16>
    %108 = vector.shape_cast %107 : vector<1x4x64xbf16> to vector<4x64xbf16>
    %cst_105 = arith.constant dense<0.000000e+00> : vector<256x64xf32>
    %109 = tpu.matmul %106, %108, %cst_105 {dimension_numbers = #tpu.dot_dimension_numbers<[1], [0], [0], [1], [0, 0, 1, 1], [], []>} : vector<256x4xbf16>, vector<4x64xbf16>, vector<256x64xf32> -> vector<256x64xf32>
    %110 = arith.addf %103, %109 : vector<256x64xf32>
    %c1_106 = arith.constant 1 : index
    %c1_107 = arith.constant 1 : index
    %c0_108 = arith.constant 0 : index
    %111 = vector.load %arg12[%c1_106, %c1_107, %c0_108] : memref<18x18x4xf32, #tpu.memory_space<vmem>>, vector<16x16x4xf32>
    %112 = vector.shape_cast %111 : vector<16x16x4xf32> to vector<256x4xf32>
    %113 = arith.truncf %112 : vector<256x4xf32> to vector<256x4xbf16>
    %c4_109 = arith.constant 4 : index
    %c0_110 = arith.constant 0 : index
    %c0_111 = arith.constant 0 : index
    %114 = vector.load %arg4[%c4_109, %c0_110, %c0_111] : memref<9x4x64xbf16, #tpu.memory_space<vmem>>, vector<1x4x64xbf16>
    %115 = vector.shape_cast %114 : vector<1x4x64xbf16> to vector<4x64xbf16>
    %cst_112 = arith.constant dense<0.000000e+00> : vector<256x64xf32>
    %116 = tpu.matmul %113, %115, %cst_112 {dimension_numbers = #tpu.dot_dimension_numbers<[1], [0], [0], [1], [0, 0, 1, 1], [], []>} : vector<256x4xbf16>, vector<4x64xbf16>, vector<256x64xf32> -> vector<256x64xf32>
    %117 = arith.addf %110, %116 : vector<256x64xf32>
    %c1_113 = arith.constant 1 : index
    %c2_114 = arith.constant 2 : index
    %c0_115 = arith.constant 0 : index
    %118 = vector.load %arg12[%c1_113, %c2_114, %c0_115] : memref<18x18x4xf32, #tpu.memory_space<vmem>>, vector<16x16x4xf32>
    %119 = vector.shape_cast %118 : vector<16x16x4xf32> to vector<256x4xf32>
    %120 = arith.truncf %119 : vector<256x4xf32> to vector<256x4xbf16>
    %c5_116 = arith.constant 5 : index
    %c0_117 = arith.constant 0 : index
    %c0_118 = arith.constant 0 : index
    %121 = vector.load %arg4[%c5_116, %c0_117, %c0_118] : memref<9x4x64xbf16, #tpu.memory_space<vmem>>, vector<1x4x64xbf16>
    %122 = vector.shape_cast %121 : vector<1x4x64xbf16> to vector<4x64xbf16>
    %cst_119 = arith.constant dense<0.000000e+00> : vector<256x64xf32>
    %123 = tpu.matmul %120, %122, %cst_119 {dimension_numbers = #tpu.dot_dimension_numbers<[1], [0], [0], [1], [0, 0, 1, 1], [], []>} : vector<256x4xbf16>, vector<4x64xbf16>, vector<256x64xf32> -> vector<256x64xf32>
    %124 = arith.addf %117, %123 : vector<256x64xf32>
    %c2_120 = arith.constant 2 : index
    %c0_121 = arith.constant 0 : index
    %c0_122 = arith.constant 0 : index
    %125 = vector.load %arg12[%c2_120, %c0_121, %c0_122] : memref<18x18x4xf32, #tpu.memory_space<vmem>>, vector<16x16x4xf32>
    %126 = vector.shape_cast %125 : vector<16x16x4xf32> to vector<256x4xf32>
    %127 = arith.truncf %126 : vector<256x4xf32> to vector<256x4xbf16>
    %c6_123 = arith.constant 6 : index
    %c0_124 = arith.constant 0 : index
    %c0_125 = arith.constant 0 : index
    %128 = vector.load %arg4[%c6_123, %c0_124, %c0_125] : memref<9x4x64xbf16, #tpu.memory_space<vmem>>, vector<1x4x64xbf16>
    %129 = vector.shape_cast %128 : vector<1x4x64xbf16> to vector<4x64xbf16>
    %cst_126 = arith.constant dense<0.000000e+00> : vector<256x64xf32>
    %130 = tpu.matmul %127, %129, %cst_126 {dimension_numbers = #tpu.dot_dimension_numbers<[1], [0], [0], [1], [0, 0, 1, 1], [], []>} : vector<256x4xbf16>, vector<4x64xbf16>, vector<256x64xf32> -> vector<256x64xf32>
    %131 = arith.addf %124, %130 : vector<256x64xf32>
    %c2_127 = arith.constant 2 : index
    %c1_128 = arith.constant 1 : index
    %c0_129 = arith.constant 0 : index
    %132 = vector.load %arg12[%c2_127, %c1_128, %c0_129] : memref<18x18x4xf32, #tpu.memory_space<vmem>>, vector<16x16x4xf32>
    %133 = vector.shape_cast %132 : vector<16x16x4xf32> to vector<256x4xf32>
    %134 = arith.truncf %133 : vector<256x4xf32> to vector<256x4xbf16>
    %c7_130 = arith.constant 7 : index
    %c0_131 = arith.constant 0 : index
    %c0_132 = arith.constant 0 : index
    %135 = vector.load %arg4[%c7_130, %c0_131, %c0_132] : memref<9x4x64xbf16, #tpu.memory_space<vmem>>, vector<1x4x64xbf16>
    %136 = vector.shape_cast %135 : vector<1x4x64xbf16> to vector<4x64xbf16>
    %cst_133 = arith.constant dense<0.000000e+00> : vector<256x64xf32>
    %137 = tpu.matmul %134, %136, %cst_133 {dimension_numbers = #tpu.dot_dimension_numbers<[1], [0], [0], [1], [0, 0, 1, 1], [], []>} : vector<256x4xbf16>, vector<4x64xbf16>, vector<256x64xf32> -> vector<256x64xf32>
    %138 = arith.addf %131, %137 : vector<256x64xf32>
    %c2_134 = arith.constant 2 : index
    %c2_135 = arith.constant 2 : index
    %c0_136 = arith.constant 0 : index
    %139 = vector.load %arg12[%c2_134, %c2_135, %c0_136] : memref<18x18x4xf32, #tpu.memory_space<vmem>>, vector<16x16x4xf32>
    %140 = vector.shape_cast %139 : vector<16x16x4xf32> to vector<256x4xf32>
    %141 = arith.truncf %140 : vector<256x4xf32> to vector<256x4xbf16>
    %c8_137 = arith.constant 8 : index
    %c0_138 = arith.constant 0 : index
    %c0_139 = arith.constant 0 : index
    %142 = vector.load %arg4[%c8_137, %c0_138, %c0_139] : memref<9x4x64xbf16, #tpu.memory_space<vmem>>, vector<1x4x64xbf16>
    %143 = vector.shape_cast %142 : vector<1x4x64xbf16> to vector<4x64xbf16>
    %cst_140 = arith.constant dense<0.000000e+00> : vector<256x64xf32>
    %144 = tpu.matmul %141, %143, %cst_140 {dimension_numbers = #tpu.dot_dimension_numbers<[1], [0], [0], [1], [0, 0, 1, 1], [], []>} : vector<256x4xbf16>, vector<4x64xbf16>, vector<256x64xf32> -> vector<256x64xf32>
    %145 = arith.addf %138, %144 : vector<256x64xf32>
    %c0_141 = arith.constant 0 : index
    %c0_142 = arith.constant 0 : index
    %146 = vector.load %arg5[%c0_141, %c0_142] : memref<3x64xf32, #tpu.memory_space<vmem>>, vector<1x64xf32>
    %147 = vector.broadcast %146 : vector<1x64xf32> to vector<256x64xf32>
    %148 = arith.mulf %145, %147 : vector<256x64xf32>
    %c1_143 = arith.constant 1 : index
    %c0_144 = arith.constant 0 : index
    %149 = vector.load %arg5[%c1_143, %c0_144] : memref<3x64xf32, #tpu.memory_space<vmem>>, vector<1x64xf32>
    %150 = vector.broadcast %149 : vector<1x64xf32> to vector<256x64xf32>
    %151 = arith.addf %148, %150 : vector<256x64xf32>
    %cst_145 = arith.constant 0.000000e+00 : f32
    %152 = vector.broadcast %cst_145 : f32 to vector<256x64xf32>
    %153 = arith.cmpf ogt, %151, %152 : vector<256x64xf32>
    %c2_146 = arith.constant 2 : index
    %c0_147 = arith.constant 0 : index
    %154 = vector.load %arg5[%c2_146, %c0_147] : memref<3x64xf32, #tpu.memory_space<vmem>>, vector<1x64xf32>
    %155 = vector.broadcast %154 : vector<1x64xf32> to vector<256x64xf32>
    %156 = arith.mulf %151, %155 : vector<256x64xf32>
    %157 = arith.select %153, %151, %156 : vector<256x64xi1>, vector<256x64xf32>
    %cst_148 = arith.constant dense<0.000000e+00> : vector<64xf32>
    %158 = vector.multi_reduction <add>, %2, %cst_148 [0] : vector<256x64xf32> to vector<64xf32>
    %159 = vector.shape_cast %158 : vector<64xf32> to vector<1x64xf32>
    %cst_149 = arith.constant 3.906250e-03 : f32
    %160 = vector.broadcast %cst_149 : f32 to vector<1x64xf32>
    %161 = arith.mulf %159, %160 : vector<1x64xf32>
    %162 = vector.shape_cast %161 : vector<1x64xf32> to vector<1x64xf32>
    %163 = vector.broadcast %162 : vector<1x64xf32> to vector<8x64xf32>
    %164 = arith.truncf %163 : vector<8x64xf32> to vector<8x64xbf16>
    %c0_150 = arith.constant 0 : index
    %c0_151 = arith.constant 0 : index
    %165 = vector.load %arg6[%c0_150, %c0_151] : memref<64x4xbf16, #tpu.memory_space<vmem>>, vector<64x4xbf16>
    %cst_152 = arith.constant dense<0.000000e+00> : vector<8x4xf32>
    %166 = tpu.matmul %164, %165, %cst_152 {dimension_numbers = #tpu.dot_dimension_numbers<[1], [0], [0], [1], [0, 0, 1, 1], [], []>} : vector<8x64xbf16>, vector<64x4xbf16>, vector<8x4xf32> -> vector<8x4xf32>
    %c0_153 = arith.constant 0 : index
    %c0_154 = arith.constant 0 : index
    %167 = vector.load %arg7[%c0_153, %c0_154] : memref<3x4xf32, #tpu.memory_space<vmem>>, vector<1x4xf32>
    %168 = vector.broadcast %167 : vector<1x4xf32> to vector<8x4xf32>
    %169 = arith.mulf %166, %168 : vector<8x4xf32>
    %c1_155 = arith.constant 1 : index
    %c0_156 = arith.constant 0 : index
    %170 = vector.load %arg7[%c1_155, %c0_156] : memref<3x4xf32, #tpu.memory_space<vmem>>, vector<1x4xf32>
    %171 = vector.broadcast %170 : vector<1x4xf32> to vector<8x4xf32>
    %172 = arith.addf %169, %171 : vector<8x4xf32>
    %cst_157 = arith.constant 0.000000e+00 : f32
    %173 = vector.broadcast %cst_157 : f32 to vector<8x4xf32>
    %174 = arith.cmpf ogt, %172, %173 : vector<8x4xf32>
    %c2_158 = arith.constant 2 : index
    %c0_159 = arith.constant 0 : index
    %175 = vector.load %arg7[%c2_158, %c0_159] : memref<3x4xf32, #tpu.memory_space<vmem>>, vector<1x4xf32>
    %176 = vector.broadcast %175 : vector<1x4xf32> to vector<8x4xf32>
    %177 = arith.mulf %172, %176 : vector<8x4xf32>
    %178 = arith.select %174, %172, %177 : vector<8x4xi1>, vector<8x4xf32>
    %179 = arith.truncf %178 : vector<8x4xf32> to vector<8x4xbf16>
    %c0_160 = arith.constant 0 : index
    %c0_161 = arith.constant 0 : index
    %180 = vector.load %arg8[%c0_160, %c0_161] : memref<4x64xbf16, #tpu.memory_space<vmem>>, vector<4x64xbf16>
    %cst_162 = arith.constant dense<0.000000e+00> : vector<8x64xf32>
    %181 = tpu.matmul %179, %180, %cst_162 {dimension_numbers = #tpu.dot_dimension_numbers<[1], [0], [0], [1], [0, 0, 1, 1], [], []>} : vector<8x4xbf16>, vector<4x64xbf16>, vector<8x64xf32> -> vector<8x64xf32>
    %c0_163 = arith.constant 0 : index
    %c0_164 = arith.constant 0 : index
    %182 = vector.load %arg9[%c0_163, %c0_164] : memref<3x64xf32, #tpu.memory_space<vmem>>, vector<1x64xf32>
    %183 = vector.broadcast %182 : vector<1x64xf32> to vector<8x64xf32>
    %184 = arith.mulf %181, %183 : vector<8x64xf32>
    %c1_165 = arith.constant 1 : index
    %c0_166 = arith.constant 0 : index
    %185 = vector.load %arg9[%c1_165, %c0_166] : memref<3x64xf32, #tpu.memory_space<vmem>>, vector<1x64xf32>
    %186 = vector.broadcast %185 : vector<1x64xf32> to vector<8x64xf32>
    %187 = arith.addf %184, %186 : vector<8x64xf32>
    %cst_167 = arith.constant 0.000000e+00 : f32
    %188 = vector.broadcast %cst_167 : f32 to vector<8x64xf32>
    %189 = arith.cmpf ogt, %187, %188 : vector<8x64xf32>
    %c2_168 = arith.constant 2 : index
    %c0_169 = arith.constant 0 : index
    %190 = vector.load %arg9[%c2_168, %c0_169] : memref<3x64xf32, #tpu.memory_space<vmem>>, vector<1x64xf32>
    %191 = vector.broadcast %190 : vector<1x64xf32> to vector<8x64xf32>
    %192 = arith.mulf %187, %191 : vector<8x64xf32>
    %193 = arith.select %189, %187, %192 : vector<8x64xi1>, vector<8x64xf32>
    %194 = vector.extract_strided_slice %193 {offsets = [0, 0], sizes = [1, 64], strides = [1, 1]} : vector<8x64xf32> to vector<1x64xf32>
    %195 = vector.broadcast %194 : vector<1x64xf32> to vector<256x64xf32>
    %196 = arith.addf %157, %195 : vector<256x64xf32>
    %cst_170 = arith.constant 2.000000e+00 : f32
    %197 = vector.broadcast %cst_170 : f32 to vector<256x64xf32>
    %198 = arith.mulf %197, %2 : vector<256x64xf32>
    %199 = arith.addf %196, %198 : vector<256x64xf32>
    %cst_171 = arith.constant 0.000000e+00 : f32
    %200 = vector.broadcast %cst_171 : f32 to vector<256x64xf32>
    %201 = arith.subf %200, %199 : vector<256x64xf32>
    %202 = math.exp %201 : vector<256x64xf32>
    %cst_172 = arith.constant 1.000000e+00 : f32
    %203 = vector.broadcast %cst_172 : f32 to vector<256x64xf32>
    %204 = arith.addf %203, %202 : vector<256x64xf32>
    %cst_173 = arith.constant 1.000000e+00 : f32
    %205 = vector.broadcast %cst_173 : f32 to vector<256x64xf32>
    %206 = arith.divf %205, %204 : vector<256x64xf32>
    %207 = vector.shape_cast %206 : vector<256x64xf32> to vector<1x16x16x64xf32>
    %c0_174 = arith.constant 0 : index
    %c0_175 = arith.constant 0 : index
    %c0_176 = arith.constant 0 : index
    %c0_177 = arith.constant 0 : index
    %208 = vector.load %arg10[%c0_174, %c0_175, %c0_176, %c0_177] : memref<1x16x16x64xf32, #tpu.memory_space<vmem>>, vector<1x16x16x64xf32>
    tpu.vector_store %arg10[%c0_174, %c0_175, %c0_176, %c0_177], %207 {strides = array<i32>} : memref<1x16x16x64xf32, #tpu.memory_space<vmem>>, vector<1x16x16x64xf32>,
    return
  }
  func.func @transform_0(%arg0: i32) -> (i32, i32, i32, i32) {
    %c0_i32 = arith.constant 0 : i32
    %c0_i32_0 = arith.constant 0 : i32
    %c0_i32_1 = arith.constant 0 : i32
    %c0_i32_2 = arith.constant 0 : i32
    return %arg0, %c0_i32, %c0_i32_0, %c0_i32_1 : i32, i32, i32, i32
  }
  func.func @transform_1(%arg0: i32) -> (i32, i32, i32) {
    %c0_i32 = arith.constant 0 : i32
    %c0_i32_0 = arith.constant 0 : i32
    %c0_i32_1 = arith.constant 0 : i32
    %c0_i32_2 = arith.constant 0 : i32
    return %c0_i32, %c0_i32_0, %c0_i32_1 : i32, i32, i32
  }
  func.func @transform_2(%arg0: i32) -> (i32, i32) {
    %c0_i32 = arith.constant 0 : i32
    %c0_i32_0 = arith.constant 0 : i32
    %c0_i32_1 = arith.constant 0 : i32
    return %c0_i32, %c0_i32_0 : i32, i32
  }
  func.func @transform_3(%arg0: i32) -> (i32, i32, i32) {
    %c0_i32 = arith.constant 0 : i32
    %c0_i32_0 = arith.constant 0 : i32
    %c0_i32_1 = arith.constant 0 : i32
    %c0_i32_2 = arith.constant 0 : i32
    return %c0_i32, %c0_i32_0, %c0_i32_1 : i32, i32, i32
  }
  func.func @transform_4(%arg0: i32) -> (i32, i32) {
    %c0_i32 = arith.constant 0 : i32
    %c0_i32_0 = arith.constant 0 : i32
    %c0_i32_1 = arith.constant 0 : i32
    return %c0_i32, %c0_i32_0 : i32, i32
  }
  func.func @transform_5(%arg0: i32) -> (i32, i32) {
    %c0_i32 = arith.constant 0 : i32
    %c0_i32_0 = arith.constant 0 : i32
    %c0_i32_1 = arith.constant 0 : i32
    return %c0_i32, %c0_i32_0 : i32, i32
  }
  func.func @transform_6(%arg0: i32) -> (i32, i32) {
    %c0_i32 = arith.constant 0 : i32
    %c0_i32_0 = arith.constant 0 : i32
    %c0_i32_1 = arith.constant 0 : i32
    return %c0_i32, %c0_i32_0 : i32, i32
  }
  func.func @transform_7(%arg0: i32) -> (i32, i32) {
    %c0_i32 = arith.constant 0 : i32
    %c0_i32_0 = arith.constant 0 : i32
    %c0_i32_1 = arith.constant 0 : i32
    return %c0_i32, %c0_i32_0 : i32, i32
  }
  func.func @transform_8(%arg0: i32) -> (i32, i32) {
    %c0_i32 = arith.constant 0 : i32
    %c0_i32_0 = arith.constant 0 : i32
    %c0_i32_1 = arith.constant 0 : i32
    return %c0_i32, %c0_i32_0 : i32, i32
  }
  func.func @transform_9(%arg0: i32) -> (i32, i32, i32, i32) {
    %c0_i32 = arith.constant 0 : i32
    %c0_i32_0 = arith.constant 0 : i32
    %c0_i32_1 = arith.constant 0 : i32
    %c0_i32_2 = arith.constant 0 : i32
    return %arg0, %c0_i32, %c0_i32_0, %c0_i32_1 : i32, i32, i32, i32
  }
}

</mosaic_0001>

<llo_original>
// kernel: _lambda_.1
$region0: #{_lambda_.1}
  #allocation0 [shape = 'u32[]', space=smem, size = 0x4, offset = 0x4, fixed_abs, tag = 'smem constant byte address 0x4 - core index']
  #allocation1 [shape = 'u32[72,128]{1,0:T(1,128)}', space=vmem, size = 0x9000, scoped, tag = 'internal scratch']
  #allocation2 [shape = 'f32[18,18,64]{2,1,0:T(8,128)}', space=vmem, size = 0x36000, scoped, tag = 'scratch operand']
  #allocation3 [shape = 'f32[18,18,4]{2,1,0:T(8,128)}', space=vmem, size = 0x36000, scoped, tag = 'scratch operand']
  %s0 = inlined_call_operand.hbm [shape: f32[2,16,16,64], index: 0, kind: input, shape index: {}]
  %s1 = inlined_call_operand.hbm [shape: bf16[9,64,4], index: 1, kind: input, shape index: {}]
  %s2 = inlined_call_operand.hbm [shape: f32[3,4], index: 2, kind: input, shape index: {}]
  %s3 = inlined_call_operand.hbm [shape: bf16[9,4,64], index: 3, kind: input, shape index: {}]
  %s4 = inlined_call_operand.hbm [shape: f32[3,64], index: 4, kind: input, shape index: {}]
  %s5 = inlined_call_operand.hbm [shape: bf16[64,4], index: 5, kind: input, shape index: {}]
  %s6 = inlined_call_operand.hbm [shape: f32[3,4], index: 6, kind: input, shape index: {}]
  %s7 = inlined_call_operand.vmem [shape: bf16[4,64], index: 7, kind: input, shape index: {}]
  %s8 = inlined_call_operand.vmem [shape: f32[3,64], index: 8, kind: input, shape index: {}]
  %s9 = inlined_call_operand.hbm [shape: f32[2,16,16,64], index: 9, kind: output, shape index: {}]
  %s10 = sld [smem:[#allocation0]]
  $region97: #{_lambda_.1} parent=0
    _
  %s12 = ssub.s32 1, %s10
  %s13 = scalar_select 0, %s12, %s10
  $region1: #{_lambda_.1} parent=0
    #allocation4 [shape = 'u8[262144]{0}', space=vmem, size = 0x40000, scoped, tag = 'input window, operand 0']
    #allocation5 [shape = 's32[2]{0}', space=sflag, size = 0x8, scoped, tag = 'scoped memory for _lambda_.1']
    #allocation6 [shape = 's32[2]{0}', space=sflag, size = 0x8, scoped, tag = 'scoped memory for _lambda_.1']
    #allocation7 [shape = 'u8[147456]{0}', space=vmem, size = 0x24000, scoped, tag = 'input window, operand 1, single buffered']
    #allocation8 [shape = 's32[1]{0}', space=sflag, size = 0x4, scoped, tag = 'scoped memory for _lambda_.1']
    #allocation9 [shape = 'u8[2048]{0}', space=vmem, size = 0x800, scoped, tag = 'input window, operand 2, single buffered']
    #allocation10 [shape = 'u8[9216]{0}', space=vmem, size = 0x2400, scoped, tag = 'input window, operand 3, single buffered']
    #allocation11 [shape = 's32[1]{0}', space=sflag, size = 0x4, scoped, tag = 'scoped memory for _lambda_.1']
    #allocation12 [shape = 'u8[2048]{0}', space=vmem, size = 0x800, scoped, tag = 'input window, operand 4, single buffered']
    #allocation13 [shape = 'u8[16384]{0}', space=vmem, size = 0x4000, scoped, tag = 'input window, operand 5, single buffered']
    #allocation14 [shape = 's32[1]{0}', space=sflag, size = 0x4, scoped, tag = 'scoped memory for _lambda_.1']
    #allocation15 [shape = 'u8[2048]{0}', space=vmem, size = 0x800, scoped, tag = 'input window, operand 6, single buffered']
    #allocation16 [shape = 'u8[262144]{0}', space=vmem, size = 0x40000, scoped, tag = 'output window, operand 0']
    %14 = vsyncpa [#allocation5], 0
    %s15 = scalar_lea.sflag [#allocation5], 1
    %16 = vsyncpa %s15, 0
    %17 = vsyncpa [#allocation8], 0
    %18 = vsyncpa [#allocation11], 0
    %19 = vsyncpa [#allocation14], 0
    %20 = vsyncpa [#allocation6], 0
    %s21 = scalar_lea.sflag [#allocation6], 1
    %22 = vsyncpa %s21, 0
    loop: start=0, step=1, limit=4
    $region2: #{_lambda_.1} parent=1 // loop_pre_header
      _
    $region3: #{_lambda_.1} parent=1 // loop_header
      %s24 = sphi 0, %s28
      %p25 = scmp.ge.s32.totalorder %s24, 4
      %s34 = sphi 0, %s36
      %s37 = sphi 0, %s34
      %s38 = sphi 0, %s37
      %s54 = sphi 0, %s38
      %s58 = sphi 0, %s58
      %s60 = sphi 0, %s58
      %s61 = sphi 0, %s60
      %s75 = sphi 0, %s61
      %s79 = sphi 0, %s79
      %s81 = sphi 0, %s79
      %s82 = sphi 0, %s81
      %s96 = sphi 0, %s82
      %s100 = sphi 0, %s100
      %s102 = sphi 0, %s100
      %s103 = sphi 0, %s102
      %s117 = sphi 0, %s103
      %s121 = sphi 0, %s121
      %s123 = sphi 0, %s121
      %s124 = sphi 0, %s123
      %s138 = sphi 0, %s124
      %s142 = sphi 0, %s142
      %s144 = sphi 0, %s142
      %s145 = sphi 0, %s144
      %s159 = sphi 0, %s145
      %s163 = sphi 0, %s163
      %s165 = sphi 0, %s163
      %s166 = sphi 0, %s165
      %s180 = sphi 0, %s166
      %s184 = sphi 0, %s184
      %s186 = sphi 0, %s184
      %s187 = sphi 0, %s186
      %s201 = sphi 0, %s187
      %s205 = sphi 0, %s205
      %s207 = sphi 0, %s205
      %s208 = sphi 0, %s207
      %s222 = sphi 0, %s208
      %s228 = sphi 0, %s230
      %s231 = sphi 0, %s228
      %s232 = sphi 0, %s231
      %s248 = sphi 0, %s232
    $region4: #{_lambda_.1} parent=1 // loop_header_branch
      %27 = sbr.rel (%p25) target = $region8
    $region5: #{_lambda_.1} parent=1 // loop_body
      %s29 = ssub.s32 %s24, 1
      %s30 = ssub.s32 %s24, 2
      %s31 = sadd.s32 %s24, 1
      %s32 = ssub.s32 %s24, %s31
      %p33 = scmp.eq.s32.totalorder %s32, 0
      %s35 = sadd.s32 %s34, 1
      %s36 = scalar_select %p33, %s34, %s35
      %p39 = pneg %p33
      %p40 = scmp.eq.s32.totalorder %s24, 1
      %p41 = por %p39, %p40
      %p42 = scmp.ne.s32.totalorder %s34, %s37
      %p43 = scmp.eq.s32.totalorder %s24, 0
      %p44 = por %p42, %p43
      %p45 = scmp.ne.s32.totalorder %s34, %s37
      %p46 = scmp.eq.s32.totalorder %s29, 1
      %p47 = por %p45, %p46
      %p48 = scmp.ne.s32.totalorder %s37, %s38
      %p49 = scmp.eq.s32.totalorder %s29, 0
      %p50 = por %p48, %p49
      %p51 = scmp.ne.s32.totalorder %s37, %s38
      %p52 = scmp.eq.s32.totalorder %s30, 1
      %p53 = por %p51, %p52
      %p55 = scmp.ne.s32.totalorder %s38, %s54
      %p56 = scmp.eq.s32.totalorder %s30, 0
      %p57 = por %p55, %p56
      %s59 = sadd.s32 %s58, 1
      %p62 = scmp.eq.s32.totalorder %s24, 1
      %p63 = scmp.ne.s32.totalorder %s58, %s60
      %p64 = scmp.eq.s32.totalorder %s24, 0
      %p65 = por %p63, %p64
      %p66 = scmp.ne.s32.totalorder %s58, %s60
      %p67 = scmp.eq.s32.totalorder %s29, 1
      %p68 = por %p66, %p67
      %p69 = scmp.ne.s32.totalorder %s60, %s61
      %p70 = scmp.eq.s32.totalorder %s29, 0
      %p71 = por %p69, %p70
      %p72 = scmp.ne.s32.totalorder %s60, %s61
      %p73 = scmp.eq.s32.totalorder %s30, 1
      %p74 = por %p72, %p73
      %p76 = scmp.ne.s32.totalorder %s61, %s75
      %p77 = scmp.eq.s32.totalorder %s30, 0
      %p78 = por %p76, %p77
      %s80 = sadd.s32 %s79, 1
      %p83 = scmp.eq.s32.totalorder %s24, 1
      %p84 = scmp.ne.s32.totalorder %s79, %s81
      %p85 = scmp.eq.s32.totalorder %s24, 0
      %p86 = por %p84, %p85
      %p87 = scmp.ne.s32.totalorder %s79, %s81
      %p88 = scmp.eq.s32.totalorder %s29, 1
      %p89 = por %p87, %p88
      %p90 = scmp.ne.s32.totalorder %s81, %s82
      %p91 = scmp.eq.s32.totalorder %s29, 0
      %p92 = por %p90, %p91
      %p93 = scmp.ne.s32.totalorder %s81, %s82
      %p94 = scmp.eq.s32.totalorder %s30, 1
      %p95 = por %p93, %p94
      %p97 = scmp.ne.s32.totalorder %s82, %s96
      %p98 = scmp.eq.s32.totalorder %s30, 0
      %p99 = por %p97, %p98
      %s101 = sadd.s32 %s100, 1
      %p104 = scmp.eq.s32.totalorder %s24, 1
      %p105 = scmp.ne.s32.totalorder %s100, %s102
      %p106 = scmp.eq.s32.totalorder %s24, 0
      %p107 = por %p105, %p106
      %p108 = scmp.ne.s32.totalorder %s100, %s102
      %p109 = scmp.eq.s32.totalorder %s29, 1
      %p110 = por %p108, %p109
      %p111 = scmp.ne.s32.totalorder %s102, %s103
      %p112 = scmp.eq.s32.totalorder %s29, 0
      %p113 = por %p111, %p112
      %p114 = scmp.ne.s32.totalorder %s102, %s103
      %p115 = scmp.eq.s32.totalorder %s30, 1
      %p116 = por %p114, %p115
      %p118 = scmp.ne.s32.totalorder %s103, %s117
      %p119 = scmp.eq.s32.totalorder %s30, 0
      %p120 = por %p118, %p119
      %s122 = sadd.s32 %s121, 1
      %p125 = scmp.eq.s32.totalorder %s24, 1
      %p126 = scmp.ne.s32.totalorder %s121, %s123
      %p127 = scmp.eq.s32.totalorder %s24, 0
      %p128 = por %p126, %p127
      %p129 = scmp.ne.s32.totalorder %s121, %s123
      %p130 = scmp.eq.s32.totalorder %s29, 1
      %p131 = por %p129, %p130
      %p132 = scmp.ne.s32.totalorder %s123, %s124
      %p133 = scmp.eq.s32.totalorder %s29, 0
      %p134 = por %p132, %p133
      %p135 = scmp.ne.s32.totalorder %s123, %s124
      %p136 = scmp.eq.s32.totalorder %s30, 1
      %p137 = por %p135, %p136
      %p139 = scmp.ne.s32.totalorder %s124, %s138
      %p140 = scmp.eq.s32.totalorder %s30, 0
      %p141 = por %p139, %p140
      %s143 = sadd.s32 %s142, 1
      %p146 = scmp.eq.s32.totalorder %s24, 1
      %p147 = scmp.ne.s32.totalorder %s142, %s144
      %p148 = scmp.eq.s32.totalorder %s24, 0
      %p149 = por %p147, %p148
      %p150 = scmp.ne.s32.totalorder %s142, %s144
      %p151 = scmp.eq.s32.totalorder %s29, 1
      %p152 = por %p150, %p151
      %p153 = scmp.ne.s32.totalorder %s144, %s145
      %p154 = scmp.eq.s32.totalorder %s29, 0
      %p155 = por %p153, %p154
      %p156 = scmp.ne.s32.totalorder %s144, %s145
      %p157 = scmp.eq.s32.totalorder %s30, 1
      %p158 = por %p156, %p157
      %p160 = scmp.ne.s32.totalorder %s145, %s159
      %p161 = scmp.eq.s32.totalorder %s30, 0
      %p162 = por %p160, %p161
      %s164 = sadd.s32 %s163, 1
      %p167 = scmp.eq.s32.totalorder %s24, 1
      %p168 = scmp.ne.s32.totalorder %s163, %s165
      %p169 = scmp.eq.s32.totalorder %s24, 0
      %p170 = por %p168, %p169
      %p171 = scmp.ne.s32.totalorder %s163, %s165
      %p172 = scmp.eq.s32.totalorder %s29, 1
      %p173 = por %p171, %p172
      %p174 = scmp.ne.s32.totalorder %s165, %s166
      %p175 = scmp.eq.s32.totalorder %s29, 0
      %p176 = por %p174, %p175
      %p177 = scmp.ne.s32.totalorder %s165, %s166
      %p178 = scmp.eq.s32.totalorder %s30, 1
      %p179 = por %p177, %p178
      %p181 = scmp.ne.s32.totalorder %s166, %s180
      %p182 = scmp.eq.s32.totalorder %s30, 0
      %p183 = por %p181, %p182
      %s185 = sadd.s32 %s184, 1
      %p188 = scmp.eq.s32.totalorder %s24, 1
      %p189 = scmp.ne.s32.totalorder %s184, %s186
      %p190 = scmp.eq.s32.totalorder %s24, 0
      %p191 = por %p189, %p190
      %p192 = scmp.ne.s32.totalorder %s184, %s186
      %p193 = scmp.eq.s32.totalorder %s29, 1
      %p194 = por %p192, %p193
      %p195 = scmp.ne.s32.totalorder %s186, %s187
      %p196 = scmp.eq.s32.totalorder %s29, 0
      %p197 = por %p195, %p196
      %p198 = scmp.ne.s32.totalorder %s186, %s187
      %p199 = scmp.eq.s32.totalorder %s30, 1
      %p200 = por %p198, %p199
      %p202 = scmp.ne.s32.totalorder %s187, %s201
      %p203 = scmp.eq.s32.totalorder %s30, 0
      %p204 = por %p202, %p203
      %s206 = sadd.s32 %s205, 1
      %p209 = scmp.eq.s32.totalorder %s24, 1
      %p210 = scmp.ne.s32.totalorder %s205, %s207
      %p211 = scmp.eq.s32.totalorder %s24, 0
      %p212 = por %p210, %p211
      %p213 = scmp.ne.s32.totalorder %s205, %s207
      %p214 = scmp.eq.s32.totalorder %s29, 1
      %p215 = por %p213, %p214
      %p216 = scmp.ne.s32.totalorder %s207, %s208
      %p217 = scmp.eq.s32.totalorder %s29, 0
      %p218 = por %p216, %p217
      %p219 = scmp.ne.s32.totalorder %s207, %s208
      %p220 = scmp.eq.s32.totalorder %s30, 1
      %p221 = por %p219, %p220
      %p223 = scmp.ne.s32.totalorder %s208, %s222
      %p224 = scmp.eq.s32.totalorder %s30, 0
      %p225 = por %p223, %p224
      %s226 = ssub.s32 %s24, %s31
      %p227 = scmp.eq.s32.totalorder %s226, 0
      %s229 = sadd.s32 %s228, 1
      %s230 = scalar_select %p227, %s228, %s229
      %p233 = pneg %p227
      %p234 = scmp.eq.s32.totalorder %s24, 1
      %p235 = por %p233, %p234
      %p236 = scmp.ne.s32.totalorder %s228, %s231
      %p237 = scmp.eq.s32.totalorder %s24, 0
      %p238 = por %p236, %p237
      %p239 = scmp.ne.s32.totalorder %s228, %s231
      %p240 = scmp.eq.s32.totalorder %s29, 1
      %p241 = por %p239, %p240
      %p242 = scmp.ne.s32.totalorder %s231, %s232
      %p243 = scmp.eq.s32.totalorder %s29, 0
      %p244 = por %p242, %p243
      %p245 = scmp.ne.s32.totalorder %s231, %s232
      %p246 = scmp.eq.s32.totalorder %s30, 1
      %p247 = por %p245, %p246
      %p249 = scmp.ne.s32.totalorder %s232, %s248
      %p250 = scmp.eq.s32.totalorder %s30, 0
      %p251 = por %p249, %p250
      %p252 = scmp.le.s32.totalorder 1, %s24
      %p253 = scmp.lt.s32.totalorder %s24, 3
      %p254 = pnand %p252, %p253
      %p255 = pneg %p254
      // Predicated region
      $region9: #{_lambda_.1} parent=5 // pred_check
        _
      $region10: #{_lambda_.1} parent=5 // pred_check_branch
        %257 = sbr.rel (%p254) target = $region12
      $region11: #{_lambda_.1} parent=5 // pred_region
        %s258 = ssub.s32 %s24, 1
        // Predicated region
        $region13: #{_lambda_.1} parent=11 // pred_check
          %p259 = pneg %p71
        $region14: #{_lambda_.1} parent=11 // pred_check_branch
          %261 = sbr.rel (%p259) target = $region16
        $region15: #{_lambda_.1} parent=11 // pred_region
          %263 = vsyncadd [#allocation8], 0
          %s264 = sshll.u32 %s1, 4
          %s265 = int_to_ptr.hbm [resolvable:$true] %s264
          %s266 = sshll.u32 [#allocation7], 4
          %s267 = int_to_ptr.vmem [resolvable:$true] %s266
          %272 = dma.hbm_to_vmem [thread:$0]  %s265, 4608, %s267, [#allocation8], 64, 64, 4
        $region16: #{_lambda_.1} parent=11 // pred_fallthru
          _
        // Predicated region
        $region17: #{_lambda_.1} parent=11 // pred_check
          %p273 = pneg %p92
        $region18: #{_lambda_.1} parent=11 // pred_check_branch
          %275 = sbr.rel (%p273) target = $region20
        $region19: #{_lambda_.1} parent=11 // pred_region
          %277 = vsyncadd [#allocation8], 0
          %s279 = sshll.u32 %s2, 4
          %s280 = int_to_ptr.hbm [resolvable:$true] %s279
          %s281 = sshll.u32 [#allocation9], 4
          %s282 = int_to_ptr.vmem [resolvable:$true] %s281
          %284 = dma.hbm_to_vmem [thread:$0]  %s280, 64, %s282, [#allocation8]
        $region20: #{_lambda_.1} parent=11 // pred_fallthru
          _
        // Predicated region
        $region21: #{_lambda_.1} parent=11 // pred_check
          %p285 = pneg %p113
        $region22: #{_lambda_.1} parent=11 // pred_check_branch
          %287 = sbr.rel (%p285) target = $region24
        $region23: #{_lambda_.1} parent=11 // pred_region
          %289 = vsyncadd [#allocation11], 0
          %s290 = sshll.u32 %s3, 4
          %s291 = int_to_ptr.hbm [resolvable:$true] %s290
          %s292 = sshll.u32 [#allocation10], 4
          %s293 = int_to_ptr.vmem [resolvable:$true] %s292
          %298 = dma.hbm_to_vmem [thread:$0]  %s291, 288, %s293, [#allocation11], 32, 32, 2
        $region24: #{_lambda_.1} parent=11 // pred_fallthru
          _
        // Predicated region
        $region25: #{_lambda_.1} parent=11 // pred_check
          %p299 = pneg %p134
        $region26: #{_lambda_.1} parent=11 // pred_check_branch
          %301 = sbr.rel (%p299) target = $region28
        $region27: #{_lambda_.1} parent=11 // pred_region
          %303 = vsyncadd [#allocation11], 0
          %s305 = sshll.u32 %s4, 4
          %s306 = int_to_ptr.hbm [resolvable:$true] %s305
          %s307 = sshll.u32 [#allocation12], 4
          %s308 = int_to_ptr.vmem [resolvable:$true] %s307
          %310 = dma.hbm_to_vmem [thread:$0]  %s306, 64, %s308, [#allocation11]
        $region28: #{_lambda_.1} parent=11 // pred_fallthru
          _
        // Predicated region
        $region29: #{_lambda_.1} parent=11 // pred_check
          %p311 = pneg %p155
        $region30: #{_lambda_.1} parent=11 // pred_check_branch
          %313 = sbr.rel (%p311) target = $region32
        $region31: #{_lambda_.1} parent=11 // pred_region
          %315 = vsyncadd [#allocation14], 0
          %s316 = sshll.u32 %s5, 4
          %s317 = int_to_ptr.hbm [resolvable:$true] %s316
          %s318 = sshll.u32 [#allocation13], 4
          %s319 = int_to_ptr.vmem [resolvable:$true] %s318
          %324 = dma.hbm_to_vmem [thread:$0]  %s317, 512, %s319, [#allocation14], 64, 64, 4
        $region32: #{_lambda_.1} parent=11 // pred_fallthru
          _
        // Predicated region
        $region33: #{_lambda_.1} parent=11 // pred_check
          %p325 = pneg %p176
        $region34: #{_lambda_.1} parent=11 // pred_check_branch
          %327 = sbr.rel (%p325) target = $region36
        $region35: #{_lambda_.1} parent=11 // pred_region
          %329 = vsyncadd [#allocation14], 0
          %s331 = sshll.u32 %s6, 4
          %s332 = int_to_ptr.hbm [resolvable:$true] %s331
          %s333 = sshll.u32 [#allocation15], 4
          %s334 = int_to_ptr.vmem [resolvable:$true] %s333
          %336 = dma.hbm_to_vmem [thread:$0]  %s332, 64, %s334, [#allocation14]
        $region36: #{_lambda_.1} parent=11 // pred_fallthru
          _
        // Predicated region
        $region37: #{_lambda_.1} parent=11 // pred_check
          %p337 = pneg %p197
        $region38: #{_lambda_.1} parent=11 // pred_check_branch
          %339 = sbr.rel (%p337) target = $region40
        $region39: #{_lambda_.1} parent=11 // pred_region
          _
        $region40: #{_lambda_.1} parent=11 // pred_fallthru
          _
        // Predicated region
        $region41: #{_lambda_.1} parent=11 // pred_check
          %p340 = pneg %p218
        $region42: #{_lambda_.1} parent=11 // pred_check_branch
          %342 = sbr.rel (%p340) target = $region44
        $region43: #{_lambda_.1} parent=11 // pred_region
          _
        $region44: #{_lambda_.1} parent=11 // pred_fallthru
          _
      $region12: #{_lambda_.1} parent=5 // pred_fallthru
        _
      %p343 = scmp.lt.s32.totalorder %s24, 2
      // Predicated region
      $region45: #{_lambda_.1} parent=5 // pred_check
        %p344 = pneg %p343
      $region46: #{_lambda_.1} parent=5 // pred_check_branch
        %346 = sbr.rel (%p344) target = $region48
      $region47: #{_lambda_.1} parent=5 // pred_region
        // Predicated region
        $region49: #{_lambda_.1} parent=47 // pred_check
          %p347 = pneg %p44
        $region50: #{_lambda_.1} parent=47 // pred_check_branch
          %349 = sbr.rel (%p347) target = $region52
        $region51: #{_lambda_.1} parent=47 // pred_region
          %s350 = sand.u32 %s34, 1
          %s351 = scalar_lea.sflag [#allocation5], %s350
          %s352 = sand.u32 %s34, 1
          %s353 = smul.addr %s352, 256
          %s354 = scalar_lea.vmem [#allocation4], %s353
          %356 = vsyncadd %s351, 0
          %s357 = smul.addr %s24, 32
          %s358 = smul.addr %s357, 8
          %s359 = scalar_lea.hbm %s0, %s358
          %s360 = sshll.u32 %s359, 4
          %s361 = int_to_ptr.hbm [resolvable:$true] %s360
          %s362 = sshll.u32 %s354, 4
          %s363 = int_to_ptr.vmem [resolvable:$true] %s362
          %368 = dma.hbm_to_vmem [thread:$0]  %s361, 4096, %s363, %s351, 128, 128, 8
        $region52: #{_lambda_.1} parent=47 // pred_fallthru
          _
      $region48: #{_lambda_.1} parent=5 // pred_fallthru
        _
      %p369 = scmp.le.s32.totalorder 1, %s24
      %p370 = scmp.lt.s32.totalorder %s24, 3
      %p371 = pnand %p369, %p370
      %p372 = pneg %p371
      // Predicated region
      $region53: #{_lambda_.1} parent=5 // pred_check
        _
      $region54: #{_lambda_.1} parent=5 // pred_check_branch
        %374 = sbr.rel (%p371) target = $region56
      $region55: #{_lambda_.1} parent=5 // pred_region
        %s375 = ssub.s32 %s24, 1
        %s376 = sand.u32 %s37, 1
        %s377 = scalar_lea.sflag [#allocation5], %s376
        %s378 = sand.u32 %s37, 1
        %s379 = smul.addr %s378, 256
        %s380 = scalar_lea.vmem [#allocation4], %s379
        // Predicated region
        $region57: #{_lambda_.1} parent=55 // pred_check
          %p381 = pneg %p50
        $region58: #{_lambda_.1} parent=55 // pred_check_branch
          %383 = sbr.rel (%p381) target = $region60
        $region59: #{_lambda_.1} parent=55 // pred_region
          %385 = dma.done %s377, 4096
        $region60: #{_lambda_.1} parent=55 // pred_fallthru
          _
        // Predicated region
        $region61: #{_lambda_.1} parent=55 // pred_check
          %p386 = pneg %p71
        $region62: #{_lambda_.1} parent=55 // pred_check_branch
          %388 = sbr.rel (%p386) target = $region64
        $region63: #{_lambda_.1} parent=55 // pred_region
          %390 = dma.done [#allocation8], 4608
        $region64: #{_lambda_.1} parent=55 // pred_fallthru
          _
        // Predicated region
        $region65: #{_lambda_.1} parent=55 // pred_check
          %p391 = pneg %p92
        $region66: #{_lambda_.1} parent=55 // pred_check_branch
          %393 = sbr.rel (%p391) target = $region68
        $region67: #{_lambda_.1} parent=55 // pred_region
          %395 = dma.done [#allocation8], 64
        $region68: #{_lambda_.1} parent=55 // pred_fallthru
          _
        // Predicated region
        $region69: #{_lambda_.1} parent=55 // pred_check
          %p396 = pneg %p113
        $region70: #{_lambda_.1} parent=55 // pred_check_branch
          %398 = sbr.rel (%p396) target = $region72
        $region71: #{_lambda_.1} parent=55 // pred_region
          %400 = dma.done [#allocation11], 288
        $region72: #{_lambda_.1} parent=55 // pred_fallthru
          _
        // Predicated region
        $region73: #{_lambda_.1} parent=55 // pred_check
          %p401 = pneg %p134
        $region74: #{_lambda_.1} parent=55 // pred_check_branch
          %403 = sbr.rel (%p401) target = $region76
        $region75: #{_lambda_.1} parent=55 // pred_region
          %405 = dma.done [#allocation11], 64
        $region76: #{_lambda_.1} parent=55 // pred_fallthru
          _
        // Predicated region
        $region77: #{_lambda_.1} parent=55 // pred_check
          %p406 = pneg %p155
        $region78: #{_lambda_.1} parent=55 // pred_check_branch
          %408 = sbr.rel (%p406) target = $region80
        $region79: #{_lambda_.1} parent=55 // pred_region
          %410 = dma.done [#allocation14], 512
        $region80: #{_lambda_.1} parent=55 // pred_fallthru
          _
        // Predicated region
        $region81: #{_lambda_.1} parent=55 // pred_check
          %p411 = pneg %p176
        $region82: #{_lambda_.1} parent=55 // pred_check_branch
          %413 = sbr.rel (%p411) target = $region84
        $region83: #{_lambda_.1} parent=55 // pred_region
          %415 = dma.done [#allocation14], 64
        $region84: #{_lambda_.1} parent=55 // pred_fallthru
          _
        %s416 = sand.u32 %s37, 1
        %s417 = scalar_lea.sflag [#allocation5], %s416
        %s418 = sand.u32 %s37, 1
        %s419 = smul.addr %s418, 256
        %s420 = scalar_lea.vmem [#allocation4], %s419
        %p421 = pneg %p50
        %p422 = pneg %p47
        %p423 = pneg %p71
        %p424 = pneg %p68
        %p425 = pneg %p92
        %p426 = pneg %p89
        %p427 = pneg %p113
        %p428 = pneg %p110
        %p429 = pneg %p134
        %p430 = pneg %p131
        %p431 = pneg %p155
        %p432 = pneg %p152
        %p433 = pneg %p176
        %p434 = pneg %p173
        %p435 = pneg %p197
        %p436 = pneg %p194
        %p437 = pneg %p218
        %p438 = pneg %p215
        %p439 = pneg %p244
        %p440 = pneg %p241
        %s441 = sand.u32 %s231, 1
        %s442 = scalar_lea.sflag [#allocation6], %s441
        %s443 = sand.u32 %s231, 1
        %s444 = smul.addr %s443, 256
        %s445 = scalar_lea.vmem [#allocation16], %s444
        %v447 = vld [vmem:[%s380] sm:$0xff]
        %v448 = vld [vmem:[%s380 + $0x8] sm:$0xff]
        %v449 = vld [vmem:[%s380 + $0x10] sm:$0xff]
        %v450 = vld [vmem:[%s380 + $0x18] sm:$0xff]
        %v451 = vld [vmem:[%s380 + $0x20] sm:$0xff]
        %v452 = vld [vmem:[%s380 + $0x28] sm:$0xff]
        %v453 = vld [vmem:[%s380 + $0x30] sm:$0xff]
        %v454 = vld [vmem:[%s380 + $0x38] sm:$0xff]
        %v455 = vld [vmem:[%s380 + $0x40] sm:$0xff]
        %v456 = vld [vmem:[%s380 + $0x48] sm:$0xff]
        %v457 = vld [vmem:[%s380 + $0x50] sm:$0xff]
        %v458 = vld [vmem:[%s380 + $0x58] sm:$0xff]
        %v459 = vld [vmem:[%s380 + $0x60] sm:$0xff]
        %v460 = vld [vmem:[%s380 + $0x68] sm:$0xff]
        %v461 = vld [vmem:[%s380 + $0x70] sm:$0xff]
        %v462 = vld [vmem:[%s380 + $0x78] sm:$0xff]
        %v463 = vld [vmem:[%s380 + $0x80] sm:$0xff]
        %v464 = vld [vmem:[%s380 + $0x88] sm:$0xff]
        %v465 = vld [vmem:[%s380 + $0x90] sm:$0xff]
        %v466 = vld [vmem:[%s380 + $0x98] sm:$0xff]
        %v467 = vld [vmem:[%s380 + $0xa0] sm:$0xff]
        %v468 = vld [vmem:[%s380 + $0xa8] sm:$0xff]
        %v469 = vld [vmem:[%s380 + $0xb0] sm:$0xff]
        %v470 = vld [vmem:[%s380 + $0xb8] sm:$0xff]
        %v471 = vld [vmem:[%s380 + $0xc0] sm:$0xff]
        %v472 = vld [vmem:[%s380 + $0xc8] sm:$0xff]
        %v473 = vld [vmem:[%s380 + $0xd0] sm:$0xff]
        %v474 = vld [vmem:[%s380 + $0xd8] sm:$0xff]
        %v475 = vld [vmem:[%s380 + $0xe0] sm:$0xff]
        %v476 = vld [vmem:[%s380 + $0xe8] sm:$0xff]
        %v477 = vld [vmem:[%s380 + $0xf0] sm:$0xff]
        %v478 = vld [vmem:[%s380 + $0xf8] sm:$0xff]
        %vm479 = vcmask 523264
        %480 = vst.msk [vmem:[#allocation2] sm:$0xff] %vm479, 0.0
        %481 = vst.msk [vmem:[#allocation2 + $0x8] sm:$0xff] %vm479, 0.0
        %vm482 = vcmask 517120
        %483 = vst.msk [vmem:[#allocation2 + $0x10] sm:$0x3] %vm482, 0.0
        %484 = vst.msk [vmem:[#allocation2 + $0x18] sm:$0xff] %vm479, 0.0
        %485 = vst.msk [vmem:[#allocation2 + $0x20] sm:$0xff] %vm479, 0.0
        %486 = vst.msk [vmem:[#allocation2 + $0x28] sm:$0x3] %vm482, 0.0
        %487 = vst.msk [vmem:[#allocation2 + $0x30] sm:$0xff] %vm479, 0.0
        %488 = vst.msk [vmem:[#allocation2 + $0x38] sm:$0xff] %vm479, 0.0
        %489 = vst.msk [vmem:[#allocation2 + $0x40] sm:$0x3] %vm482, 0.0
        %490 = vst.msk [vmem:[#allocation2 + $0x48] sm:$0xff] %vm479, 0.0
        %491 = vst.msk [vmem:[#allocation2 + $0x50] sm:$0xff] %vm479, 0.0
        %492 = vst.msk [vmem:[#allocation2 + $0x58] sm:$0x3] %vm482, 0.0
        %493 = vst.msk [vmem:[#allocation2 + $0x60] sm:$0xff] %vm479, 0.0
        %494 = vst.msk [vmem:[#allocation2 + $0x68] sm:$0xff] %vm479, 0.0
        %495 = vst.msk [vmem:[#allocation2 + $0x70] sm:$0x3] %vm482, 0.0
        %496 = vst.msk [vmem:[#allocation2 + $0x78] sm:$0xff] %vm479, 0.0
        %497 = vst.msk [vmem:[#allocation2 + $0x80] sm:$0xff] %vm479, 0.0
        %498 = vst.msk [vmem:[#allocation2 + $0x88] sm:$0x3] %vm482, 0.0
        %499 = vst.msk [vmem:[#allocation2 + $0x90] sm:$0xff] %vm479, 0.0
        %500 = vst.msk [vmem:[#allocation2 + $0x98] sm:$0xff] %vm479, 0.0
        %501 = vst.msk [vmem:[#allocation2 + $0xa0] sm:$0x3] %vm482, 0.0
        %502 = vst.msk [vmem:[#allocation2 + $0xa8] sm:$0xff] %vm479, 0.0
        %503 = vst.msk [vmem:[#allocation2 + $0xb0] sm:$0xff] %vm479, 0.0
        %504 = vst.msk [vmem:[#allocation2 + $0xb8] sm:$0x3] %vm482, 0.0
        %505 = vst.msk [vmem:[#allocation2 + $0xc0] sm:$0xff] %vm479, 0.0
        %506 = vst.msk [vmem:[#allocation2 + $0xc8] sm:$0xff] %vm479, 0.0
        %507 = vst.msk [vmem:[#allocation2 + $0xd0] sm:$0x3] %vm482, 0.0
        %508 = vst.msk [vmem:[#allocation2 + $0xd8] sm:$0xff] %vm479, 0.0
        %509 = vst.msk [vmem:[#allocation2 + $0xe0] sm:$0xff] %vm479, 0.0
        %510 = vst.msk [vmem:[#allocation2 + $0xe8] sm:$0x3] %vm482, 0.0
        %511 = vst.msk [vmem:[#allocation2 + $0xf0] sm:$0xff] %vm479, 0.0
        %512 = vst.msk [vmem:[#allocation2 + $0xf8] sm:$0xff] %vm479, 0.0
        %513 = vst.msk [vmem:[#allocation2 + $0x100] sm:$0x3] %vm482, 0.0
        %514 = vst.msk [vmem:[#allocation2 + $0x108] sm:$0xff] %vm479, 0.0
        %515 = vst.msk [vmem:[#allocation2 + $0x110] sm:$0xff] %vm479, 0.0
        %516 = vst.msk [vmem:[#allocation2 + $0x118] sm:$0x3] %vm482, 0.0
        %517 = vst.msk [vmem:[#allocation2 + $0x120] sm:$0xff] %vm479, 0.0
        %518 = vst.msk [vmem:[#allocation2 + $0x128] sm:$0xff] %vm479, 0.0
        %519 = vst.msk [vmem:[#allocation2 + $0x130] sm:$0x3] %vm482, 0.0
        %520 = vst.msk [vmem:[#allocation2 + $0x138] sm:$0xff] %vm479, 0.0
        %521 = vst.msk [vmem:[#allocation2 + $0x140] sm:$0xff] %vm479, 0.0
        %522 = vst.msk [vmem:[#allocation2 + $0x148] sm:$0x3] %vm482, 0.0
        %523 = vst.msk [vmem:[#allocation2 + $0x150] sm:$0xff] %vm479, 0.0
        %524 = vst.msk [vmem:[#allocation2 + $0x158] sm:$0xff] %vm479, 0.0
        %525 = vst.msk [vmem:[#allocation2 + $0x160] sm:$0x3] %vm482, 0.0
        %526 = vst.msk [vmem:[#allocation2 + $0x168] sm:$0xff] %vm479, 0.0
        %527 = vst.msk [vmem:[#allocation2 + $0x170] sm:$0xff] %vm479, 0.0
        %528 = vst.msk [vmem:[#allocation2 + $0x178] sm:$0x3] %vm482, 0.0
        %529 = vst.msk [vmem:[#allocation2 + $0x180] sm:$0xff] %vm479, 0.0
        %530 = vst.msk [vmem:[#allocation2 + $0x188] sm:$0xff] %vm479, 0.0
        %531 = vst.msk [vmem:[#allocation2 + $0x190] sm:$0x3] %vm482, 0.0
        %532 = vst.msk [vmem:[#allocation2 + $0x198] sm:$0xff] %vm479, 0.0
        %533 = vst.msk [vmem:[#allocation2 + $0x1a0] sm:$0xff] %vm479, 0.0
        %534 = vst.msk [vmem:[#allocation2 + $0x1a8] sm:$0x3] %vm482, 0.0
        %s535 = scalar_lea.vmem [#allocation2], 24
        %536 = vst.msk [vmem:[%s535 + $0x1] sm:$0xff] %vm479, %v447
        %537 = vst.msk [vmem:[%s535 + $0x9] sm:$0xff] %vm479, %v448
        %538 = vst.msk [vmem:[%s535 + $0x19] sm:$0xff] %vm479, %v449
        %539 = vst.msk [vmem:[%s535 + $0x21] sm:$0xff] %vm479, %v450
        %540 = vst.msk [vmem:[%s535 + $0x31] sm:$0xff] %vm479, %v451
        %541 = vst.msk [vmem:[%s535 + $0x39] sm:$0xff] %vm479, %v452
        %542 = vst.msk [vmem:[%s535 + $0x49] sm:$0xff] %vm479, %v453
        %543 = vst.msk [vmem:[%s535 + $0x51] sm:$0xff] %vm479, %v454
        %544 = vst.msk [vmem:[%s535 + $0x61] sm:$0xff] %vm479, %v455
        %545 = vst.msk [vmem:[%s535 + $0x69] sm:$0xff] %vm479, %v456
        %546 = vst.msk [vmem:[%s535 + $0x79] sm:$0xff] %vm479, %v457
        %547 = vst.msk [vmem:[%s535 + $0x81] sm:$0xff] %vm479, %v458
        %548 = vst.msk [vmem:[%s535 + $0x91] sm:$0xff] %vm479, %v459
        %549 = vst.msk [vmem:[%s535 + $0x99] sm:$0xff] %vm479, %v460
        %550 = vst.msk [vmem:[%s535 + $0xa9] sm:$0xff] %vm479, %v461
        %551 = vst.msk [vmem:[%s535 + $0xb1] sm:$0xff] %vm479, %v462
        %552 = vst.msk [vmem:[%s535 + $0xc1] sm:$0xff] %vm479, %v463
        %553 = vst.msk [vmem:[%s535 + $0xc9] sm:$0xff] %vm479, %v464
        %554 = vst.msk [vmem:[%s535 + $0xd9] sm:$0xff] %vm479, %v465
        %555 = vst.msk [vmem:[%s535 + $0xe1] sm:$0xff] %vm479, %v466
        %556 = vst.msk [vmem:[%s535 + $0xf1] sm:$0xff] %vm479, %v467
        %557 = vst.msk [vmem:[%s535 + $0xf9] sm:$0xff] %vm479, %v468
        %558 = vst.msk [vmem:[%s535 + $0x109] sm:$0xff] %vm479, %v469
        %559 = vst.msk [vmem:[%s535 + $0x111] sm:$0xff] %vm479, %v470
        %560 = vst.msk [vmem:[%s535 + $0x121] sm:$0xff] %vm479, %v471
        %561 = vst.msk [vmem:[%s535 + $0x129] sm:$0xff] %vm479, %v472
        %562 = vst.msk [vmem:[%s535 + $0x139] sm:$0xff] %vm479, %v473
        %563 = vst.msk [vmem:[%s535 + $0x141] sm:$0xff] %vm479, %v474
        %564 = vst.msk [vmem:[%s535 + $0x151] sm:$0xff] %vm479, %v475
        %565 = vst.msk [vmem:[%s535 + $0x159] sm:$0xff] %vm479, %v476
        %566 = vst.msk [vmem:[%s535 + $0x169] sm:$0xff] %vm479, %v477
        %567 = vst.msk [vmem:[%s535 + $0x171] sm:$0xff] %vm479, %v478
        %v568 = vld [vmem:[#allocation2] sm:$0xff]
        %v569 = vld [vmem:[#allocation2 + $0x8] sm:$0xff]
        %v570 = vld [vmem:[#allocation2 + $0x18] sm:$0xff]
        %v571 = vld [vmem:[#allocation2 + $0x20] sm:$0xff]
        %v572 = vld [vmem:[#allocation2 + $0x30] sm:$0xff]
        %v573 = vld [vmem:[#allocation2 + $0x38] sm:$0xff]
        %v574 = vld [vmem:[#allocation2 + $0x48] sm:$0xff]
        %v575 = vld [vmem:[#allocation2 + $0x50] sm:$0xff]
        %v576 = vld [vmem:[#allocation2 + $0x60] sm:$0xff]
        %v577 = vld [vmem:[#allocation2 + $0x68] sm:$0xff]
        %v578 = vld [vmem:[#allocation2 + $0x78] sm:$0xff]
        %v579 = vld [vmem:[#allocation2 + $0x80] sm:$0xff]
        %v580 = vld [vmem:[#allocation2 + $0x90] sm:$0xff]
        %v581 = vld [vmem:[#allocation2 + $0x98] sm:$0xff]
        %v582 = vld [vmem:[#allocation2 + $0xa8] sm:$0xff]
        %v583 = vld [vmem:[#allocation2 + $0xb0] sm:$0xff]
        %v584 = vld [vmem:[#allocation2 + $0xc0] sm:$0xff]
        %v585 = vld [vmem:[#allocation2 + $0xc8] sm:$0xff]
        %v586 = vld [vmem:[#allocation2 + $0xd8] sm:$0xff]
        %v587 = vld [vmem:[#allocation2 + $0xe0] sm:$0xff]
        %v588 = vld [vmem:[#allocation2 + $0xf0] sm:$0xff]
        %v589 = vld [vmem:[#allocation2 + $0xf8] sm:$0xff]
        %v590 = vld [vmem:[#allocation2 + $0x108] sm:$0xff]
        %v591 = vld [vmem:[#allocation2 + $0x110] sm:$0xff]
        %v592 = vld [vmem:[#allocation2 + $0x120] sm:$0xff]
        %v593 = vld [vmem:[#allocation2 + $0x128] sm:$0xff]
        %v594 = vld [vmem:[#allocation2 + $0x138] sm:$0xff]
        %v595 = vld [vmem:[#allocation2 + $0x140] sm:$0xff]
        %v596 = vld [vmem:[#allocation2 + $0x150] sm:$0xff]
        %v597 = vld [vmem:[#allocation2 + $0x158] sm:$0xff]
        %v598 = vld [vmem:[#allocation2 + $0x168] sm:$0xff]
        %v599 = vld [vmem:[#allocation2 + $0x170] sm:$0xff]
        %v600 = vpack.c.bf16 %v569, %v568
        %v601 = vpack.c.bf16 %v571, %v570
        %v602 = vpack.c.bf16 %v573, %v572
        %v603 = vpack.c.bf16 %v575, %v574
        %v604 = vpack.c.bf16 %v577, %v576
        %v605 = vpack.c.bf16 %v579, %v578
        %v606 = vpack.c.bf16 %v581, %v580
        %v607 = vpack.c.bf16 %v583, %v582
        %v608 = vpack.c.bf16 %v585, %v584
        %v609 = vpack.c.bf16 %v587, %v586
        %v610 = vpack.c.bf16 %v589, %v588
        %v611 = vpack.c.bf16 %v591, %v590
        %v612 = vpack.c.bf16 %v593, %v592
        %v613 = vpack.c.bf16 %v595, %v594
        %v614 = vpack.c.bf16 %v597, %v596
        %v615 = vpack.c.bf16 %v599, %v598
        %v616 = vld [vmem:[#allocation7] sm:$0xf]
        %v617 = vld [vmem:[#allocation7 + $0x4] sm:$0xf]
        %v618 = vld [vmem:[#allocation7 + $0x8] sm:$0xf]
        %v619 = vld [vmem:[#allocation7 + $0xc] sm:$0xf]
        %v620 = vld [vmem:[#allocation7 + $0x10] sm:$0xf]
        %v621 = vld [vmem:[#allocation7 + $0x14] sm:$0xf]
        %v622 = vld [vmem:[#allocation7 + $0x18] sm:$0xf]
        %v623 = vld [vmem:[#allocation7 + $0x1c] sm:$0xf]
        %v624 = vld [vmem:[#allocation2 + $0x1] sm:$0xff]
        %v625 = vld [vmem:[#allocation2 + $0x9] sm:$0xff]
        %v626 = vld [vmem:[#allocation2 + $0x19] sm:$0xff]
        %v627 = vld [vmem:[#allocation2 + $0x21] sm:$0xff]
        %v628 = vld [vmem:[#allocation2 + $0x31] sm:$0xff]
        %v629 = vld [vmem:[#allocation2 + $0x39] sm:$0xff]
        %v630 = vld [vmem:[#allocation2 + $0x49] sm:$0xff]
        %v631 = vld [vmem:[#allocation2 + $0x51] sm:$0xff]
        %v632 = vld [vmem:[#allocation2 + $0x61] sm:$0xff]
        %v633 = vld [vmem:[#allocation2 + $0x69] sm:$0xff]
        %v634 = vld [vmem:[#allocation2 + $0x79] sm:$0xff]
        %v635 = vld [vmem:[#allocation2 + $0x81] sm:$0xff]
        %v636 = vld [vmem:[#allocation2 + $0x91] sm:$0xff]
        %v637 = vld [vmem:[#allocation2 + $0x99] sm:$0xff]
        %v638 = vld [vmem:[#allocation2 + $0xa9] sm:$0xff]
        %v639 = vld [vmem:[#allocation2 + $0xb1] sm:$0xff]
        %v640 = vld [vmem:[#allocation2 + $0xc1] sm:$0xff]
        %v641 = vld [vmem:[#allocation2 + $0xc9] sm:$0xff]
        %v642 = vld [vmem:[#allocation2 + $0xd9] sm:$0xff]
        %v643 = vld [vmem:[#allocation2 + $0xe1] sm:$0xff]
        %v644 = vld [vmem:[#allocation2 + $0xf1] sm:$0xff]
        %v645 = vld [vmem:[#allocation2 + $0xf9] sm:$0xff]
        %v646 = vld [vmem:[#allocation2 + $0x109] sm:$0xff]
        %v647 = vld [vmem:[#allocation2 + $0x111] sm:$0xff]
        %v648 = vld [vmem:[#allocation2 + $0x121] sm:$0xff]
        %v649 = vld [vmem:[#allocation2 + $0x129] sm:$0xff]
        %v650 = vld [vmem:[#allocation2 + $0x139] sm:$0xff]
        %v651 = vld [vmem:[#allocation2 + $0x141] sm:$0xff]
        %v652 = vld [vmem:[#allocation2 + $0x151] sm:$0xff]
        %v653 = vld [vmem:[#allocation2 + $0x159] sm:$0xff]
        %v654 = vld [vmem:[#allocation2 + $0x169] sm:$0xff]
        %v655 = vld [vmem:[#allocation2 + $0x171] sm:$0xff]
        %v656 = vpack.c.bf16 %v625, %v624
        %v657 = vpack.c.bf16 %v627, %v626
        %v658 = vpack.c.bf16 %v629, %v628
        %v659 = vpack.c.bf16 %v631, %v630
        %v660 = vpack.c.bf16 %v633, %v632
        %v661 = vpack.c.bf16 %v635, %v634
        %v662 = vpack.c.bf16 %v637, %v636
        %v663 = vpack.c.bf16 %v639, %v638
        %v664 = vpack.c.bf16 %v641, %v640
        %v665 = vpack.c.bf16 %v643, %v642
        %v666 = vpack.c.bf16 %v645, %v644
        %v667 = vpack.c.bf16 %v647, %v646
        %v668 = vpack.c.bf16 %v649, %v648
        %v669 = vpack.c.bf16 %v651, %v650
        %v670 = vpack.c.bf16 %v653, %v652
        %v671 = vpack.c.bf16 %v655, %v654
        %s672 = scalar_lea.vmem [#allocation7], 32
        %v673 = vld [vmem:[%s672] sm:$0xf]
        %v674 = vld [vmem:[%s672 + $0x4] sm:$0xf]
        %v675 = vld [vmem:[%s672 + $0x8] sm:$0xf]
        %v676 = vld [vmem:[%s672 + $0xc] sm:$0xf]
        %v677 = vld [vmem:[%s672 + $0x10] sm:$0xf]
        %v678 = vld [vmem:[%s672 + $0x14] sm:$0xf]
        %v679 = vld [vmem:[%s672 + $0x18] sm:$0xf]
        %v680 = vld [vmem:[%s672 + $0x1c] sm:$0xf]
        %v689 = vunpack.c.l.b16 %v673
        %v690 = vunpack.c.l.b16 %v674
        %v691 = vunpack.c.l.b16 %v675
        %v692 = vunpack.c.l.b16 %v676
        %v693 = vunpack.c.l.b16 %v677
        %v694 = vunpack.c.l.b16 %v678
        %v695 = vunpack.c.l.b16 %v679
        %v696 = vunpack.c.l.b16 %v680
        %v697 = vpack.c.b16 %v690, %v689
        %v698 = vpack.c.b16 %v692, %v691
        %v699 = vpack.c.b16 %v694, %v693
        %v700 = vpack.c.b16 %v696, %v695
        %v706 = vsel %vm479, %v656, 0
        %v709 = vsel %vm479, %v657, 0
        %v712 = vsel %vm479, %v658, 0
        %v715 = vsel %vm479, %v659, 0
        %v718 = vsel %vm479, %v660, 0
        %v721 = vsel %vm479, %v661, 0
        %v724 = vsel %vm479, %v662, 0
        %v727 = vsel %vm479, %v663, 0
        %v730 = vsel %vm479, %v664, 0
        %v733 = vsel %vm479, %v665, 0
        %v736 = vsel %vm479, %v666, 0
        %v739 = vsel %vm479, %v667, 0
        %v742 = vsel %vm479, %v668, 0
        %v745 = vsel %vm479, %v669, 0
        %v748 = vsel %vm479, %v670, 0
        %v751 = vsel %vm479, %v671, 0
        %753 = vmatpush.bf16.msra.mxu0 0
        %754 = vmatpush.bf16.msra.mxu0 0
        %755 = vmatpush.bf16.msra.mxu0 0
        %756 = vmatpush.bf16.msra.mxu0 0
        %757 = vmatpush.bf16.msra.mxu0 %v700
        %758 = vmatpush.bf16.msra.mxu0 %v699
        %759 = vmatpush.bf16.msra.mxu0 %v698
        %760 = vmatpush.bf16.msra.mxu0 %v697
        %761 = vmatmul.bf16.gmra.mxu0 %v706
        %v762 = vpop.f32.mrf.mxu0
        %v763 = vadd.f32 0.0, %v762
        %v764 = vpop.f32.mrf.mxu0
        %v765 = vadd.f32 0.0, %v764
        %766 = vmatmul.bf16.gmra.mxu0 %v709
        %v767 = vpop.f32.mrf.mxu0
        %v768 = vadd.f32 0.0, %v767
        %v769 = vpop.f32.mrf.mxu0
        %v770 = vadd.f32 0.0, %v769
        %771 = vmatmul.bf16.gmra.mxu0 %v712
        %v772 = vpop.f32.mrf.mxu0
        %v773 = vadd.f32 0.0, %v772
        %v774 = vpop.f32.mrf.mxu0
        %v775 = vadd.f32 0.0, %v774
        %776 = vmatmul.bf16.gmra.mxu0 %v715
        %v777 = vpop.f32.mrf.mxu0
        %v778 = vadd.f32 0.0, %v777
        %v779 = vpop.f32.mrf.mxu0
        %v780 = vadd.f32 0.0, %v779
        %781 = vmatmul.bf16.gmra.mxu0 %v718
        %v782 = vpop.f32.mrf.mxu0
        %v783 = vadd.f32 0.0, %v782
        %v784 = vpop.f32.mrf.mxu0
        %v785 = vadd.f32 0.0, %v784
        %786 = vmatmul.bf16.gmra.mxu0 %v721
        %v787 = vpop.f32.mrf.mxu0
        %v788 = vadd.f32 0.0, %v787
        %v789 = vpop.f32.mrf.mxu0
        %v790 = vadd.f32 0.0, %v789
        %791 = vmatmul.bf16.gmra.mxu0 %v724
        %v792 = vpop.f32.mrf.mxu0
        %v793 = vadd.f32 0.0, %v792
        %v794 = vpop.f32.mrf.mxu0
        %v795 = vadd.f32 0.0, %v794
        %796 = vmatmul.bf16.gmra.mxu0 %v727
        %v797 = vpop.f32.mrf.mxu0
        %v798 = vadd.f32 0.0, %v797
        %v799 = vpop.f32.mrf.mxu0
        %v800 = vadd.f32 0.0, %v799
        %801 = vmatmul.bf16.gmra.mxu0 %v730
        %v802 = vpop.f32.mrf.mxu0
        %v803 = vadd.f32 0.0, %v802
        %v804 = vpop.f32.mrf.mxu0
        %v805 = vadd.f32 0.0, %v804
        %806 = vmatmul.bf16.gmra.mxu0 %v733
        %v807 = vpop.f32.mrf.mxu0
        %v808 = vadd.f32 0.0, %v807
        %v809 = vpop.f32.mrf.mxu0
        %v810 = vadd.f32 0.0, %v809
        %811 = vmatmul.bf16.gmra.mxu0 %v736
        %v812 = vpop.f32.mrf.mxu0
        %v813 = vadd.f32 0.0, %v812
        %v814 = vpop.f32.mrf.mxu0
        %v815 = vadd.f32 0.0, %v814
        %816 = vmatmul.bf16.gmra.mxu0 %v739
        %v817 = vpop.f32.mrf.mxu0
        %v818 = vadd.f32 0.0, %v817
        %v819 = vpop.f32.mrf.mxu0
        %v820 = vadd.f32 0.0, %v819
        %821 = vmatmul.bf16.gmra.mxu0 %v742
        %v822 = vpop.f32.mrf.mxu0
        %v823 = vadd.f32 0.0, %v822
        %v824 = vpop.f32.mrf.mxu0
        %v825 = vadd.f32 0.0, %v824
        %826 = vmatmul.bf16.gmra.mxu0 %v745
        %v827 = vpop.f32.mrf.mxu0
        %v828 = vadd.f32 0.0, %v827
        %v829 = vpop.f32.mrf.mxu0
        %v830 = vadd.f32 0.0, %v829
        %831 = vmatmul.bf16.gmra.mxu0 %v748
        %v832 = vpop.f32.mrf.mxu0
        %v833 = vadd.f32 0.0, %v832
        %v834 = vpop.f32.mrf.mxu0
        %v835 = vadd.f32 0.0, %v834
        %836 = vmatmul.bf16.gmra.mxu0 %v751
        %v837 = vpop.f32.mrf.mxu0
        %v838 = vadd.f32 0.0, %v837
        %v839 = vpop.f32.mrf.mxu0
        %v840 = vadd.f32 0.0, %v839
        %841 = vdwg.mxu0
        %v850 = vunpack.c.l.b16 %v616
        %v851 = vunpack.c.l.b16 %v617
        %v852 = vunpack.c.l.b16 %v618
        %v853 = vunpack.c.l.b16 %v619
        %v854 = vunpack.c.l.b16 %v620
        %v855 = vunpack.c.l.b16 %v621
        %v856 = vunpack.c.l.b16 %v622
        %v857 = vunpack.c.l.b16 %v623
        %v858 = vpack.c.b16 %v851, %v850
        %v859 = vpack.c.b16 %v853, %v852
        %v860 = vpack.c.b16 %v855, %v854
        %v861 = vpack.c.b16 %v857, %v856
        %v867 = vsel %vm479, %v600, 0
        %v870 = vsel %vm479, %v601, 0
        %v873 = vsel %vm479, %v602, 0
        %v876 = vsel %vm479, %v603, 0
        %v879 = vsel %vm479, %v604, 0
        %v882 = vsel %vm479, %v605, 0
        %v885 = vsel %vm479, %v606, 0
        %v888 = vsel %vm479, %v607, 0
        %v891 = vsel %vm479, %v608, 0
        %v894 = vsel %vm479, %v609, 0
        %v897 = vsel %vm479, %v610, 0
        %v900 = vsel %vm479, %v611, 0
        %v903 = vsel %vm479, %v612, 0
        %v906 = vsel %vm479, %v613, 0
        %v909 = vsel %vm479, %v614, 0
        %v912 = vsel %vm479, %v615, 0
        %914 = vmatpush.bf16.msra.mxu0 0
        %915 = vmatpush.bf16.msra.mxu0 0
        %916 = vmatpush.bf16.msra.mxu0 0
        %917 = vmatpush.bf16.msra.mxu0 0
        %918 = vmatpush.bf16.msra.mxu0 %v861
        %919 = vmatpush.bf16.msra.mxu0 %v860
        %920 = vmatpush.bf16.msra.mxu0 %v859
        %921 = vmatpush.bf16.msra.mxu0 %v858
        %922 = vmatmul.bf16.gmra.mxu0 %v867
        %v923 = vpop.f32.mrf.mxu0
        %v924 = vadd.f32 %v763, %v923
        %v925 = vpop.f32.mrf.mxu0
        %v926 = vadd.f32 %v765, %v925
        %927 = vmatmul.bf16.gmra.mxu0 %v870
        %v928 = vpop.f32.mrf.mxu0
        %v929 = vadd.f32 %v768, %v928
        %v930 = vpop.f32.mrf.mxu0
        %v931 = vadd.f32 %v770, %v930
        %932 = vmatmul.bf16.gmra.mxu0 %v873
        %v933 = vpop.f32.mrf.mxu0
        %v934 = vadd.f32 %v773, %v933
        %v935 = vpop.f32.mrf.mxu0
        %v936 = vadd.f32 %v775, %v935
        %937 = vmatmul.bf16.gmra.mxu0 %v876
        %v938 = vpop.f32.mrf.mxu0
        %v939 = vadd.f32 %v778, %v938
        %v940 = vpop.f32.mrf.mxu0
        %v941 = vadd.f32 %v780, %v940
        %942 = vmatmul.bf16.gmra.mxu0 %v879
        %v943 = vpop.f32.mrf.mxu0
        %v944 = vadd.f32 %v783, %v943
        %v945 = vpop.f32.mrf.mxu0
        %v946 = vadd.f32 %v785, %v945
        %947 = vmatmul.bf16.gmra.mxu0 %v882
        %v948 = vpop.f32.mrf.mxu0
        %v949 = vadd.f32 %v788, %v948
        %v950 = vpop.f32.mrf.mxu0
        %v951 = vadd.f32 %v790, %v950
        %952 = vmatmul.bf16.gmra.mxu0 %v885
        %v953 = vpop.f32.mrf.mxu0
        %v954 = vadd.f32 %v793, %v953
        %v955 = vpop.f32.mrf.mxu0
        %v956 = vadd.f32 %v795, %v955
        %957 = vmatmul.bf16.gmra.mxu0 %v888
        %v958 = vpop.f32.mrf.mxu0
        %v959 = vadd.f32 %v798, %v958
        %v960 = vpop.f32.mrf.mxu0
        %v961 = vadd.f32 %v800, %v960
        %962 = vmatmul.bf16.gmra.mxu0 %v891
        %v963 = vpop.f32.mrf.mxu0
        %v964 = vadd.f32 %v803, %v963
        %v965 = vpop.f32.mrf.mxu0
        %v966 = vadd.f32 %v805, %v965
        %967 = vmatmul.bf16.gmra.mxu0 %v894
        %v968 = vpop.f32.mrf.mxu0
        %v969 = vadd.f32 %v808, %v968
        %v970 = vpop.f32.mrf.mxu0
        %v971 = vadd.f32 %v810, %v970
        %972 = vmatmul.bf16.gmra.mxu0 %v897
        %v973 = vpop.f32.mrf.mxu0
        %v974 = vadd.f32 %v813, %v973
        %v975 = vpop.f32.mrf.mxu0
        %v976 = vadd.f32 %v815, %v975
        %977 = vmatmul.bf16.gmra.mxu0 %v900
        %v978 = vpop.f32.mrf.mxu0
        %v979 = vadd.f32 %v818, %v978
        %v980 = vpop.f32.mrf.mxu0
        %v981 = vadd.f32 %v820, %v980
        %982 = vmatmul.bf16.gmra.mxu0 %v903
        %v983 = vpop.f32.mrf.mxu0
        %v984 = vadd.f32 %v823, %v983
        %v985 = vpop.f32.mrf.mxu0
        %v986 = vadd.f32 %v825, %v985
        %987 = vmatmul.bf16.gmra.mxu0 %v906
        %v988 = vpop.f32.mrf.mxu0
        %v989 = vadd.f32 %v828, %v988
        %v990 = vpop.f32.mrf.mxu0
        %v991 = vadd.f32 %v830, %v990
        %992 = vmatmul.bf16.gmra.mxu0 %v909
        %v993 = vpop.f32.mrf.mxu0
        %v994 = vadd.f32 %v833, %v993
        %v995 = vpop.f32.mrf.mxu0
        %v996 = vadd.f32 %v835, %v995
        %997 = vmatmul.bf16.gmra.mxu0 %v912
        %v998 = vpop.f32.mrf.mxu0
        %v999 = vadd.f32 %v838, %v998
        %v1000 = vpop.f32.mrf.mxu0
        %v1001 = vadd.f32 %v840, %v1000
        %1002 = vdwg.mxu0
        %v1003 = vld [vmem:[#allocation2 + $0x2] sm:$0xff]
        %v1004 = vld [vmem:[#allocation2 + $0xa] sm:$0xff]
        %v1005 = vld [vmem:[#allocation2 + $0x1a] sm:$0xff]
        %v1006 = vld [vmem:[#allocation2 + $0x22] sm:$0xff]
        %v1007 = vld [vmem:[#allocation2 + $0x32] sm:$0xff]
        %v1008 = vld [vmem:[#allocation2 + $0x3a] sm:$0xff]
        %v1009 = vld [vmem:[#allocation2 + $0x4a] sm:$0xff]
        %v1010 = vld [vmem:[#allocation2 + $0x52] sm:$0xff]
        %v1011 = vld [vmem:[#allocation2 + $0x62] sm:$0xff]
        %v1012 = vld [vmem:[#allocation2 + $0x6a] sm:$0xff]
        %v1013 = vld [vmem:[#allocation2 + $0x7a] sm:$0xff]
        %v1014 = vld [vmem:[#allocation2 + $0x82] sm:$0xff]
        %v1015 = vld [vmem:[#allocation2 + $0x92] sm:$0xff]
        %v1016 = vld [vmem:[#allocation2 + $0x9a] sm:$0xff]
        %v1017 = vld [vmem:[#allocation2 + $0xaa] sm:$0xff]
        %v1018 = vld [vmem:[#allocation2 + $0xb2] sm:$0xff]
        %v1019 = vld [vmem:[#allocation2 + $0xc2] sm:$0xff]
        %v1020 = vld [vmem:[#allocation2 + $0xca] sm:$0xff]
        %v1021 = vld [vmem:[#allocation2 + $0xda] sm:$0xff]
        %v1022 = vld [vmem:[#allocation2 + $0xe2] sm:$0xff]
        %v1023 = vld [vmem:[#allocation2 + $0xf2] sm:$0xff]
        %v1024 = vld [vmem:[#allocation2 + $0xfa] sm:$0xff]
        %v1025 = vld [vmem:[#allocation2 + $0x10a] sm:$0xff]
        %v1026 = vld [vmem:[#allocation2 + $0x112] sm:$0xff]
        %v1027 = vld [vmem:[#allocation2 + $0x122] sm:$0xff]
        %v1028 = vld [vmem:[#allocation2 + $0x12a] sm:$0xff]
        %v1029 = vld [vmem:[#allocation2 + $0x13a] sm:$0xff]
        %v1030 = vld [vmem:[#allocation2 + $0x142] sm:$0xff]
        %v1031 = vld [vmem:[#allocation2 + $0x152] sm:$0xff]
        %v1032 = vld [vmem:[#allocation2 + $0x15a] sm:$0xff]
        %v1033 = vld [vmem:[#allocation2 + $0x16a] sm:$0xff]
        %v1034 = vld [vmem:[#allocation2 + $0x172] sm:$0xff]
        %v1035 = vpack.c.bf16 %v1004, %v1003
        %v1036 = vpack.c.bf16 %v1006, %v1005
        %v1037 = vpack.c.bf16 %v1008, %v1007
        %v1038 = vpack.c.bf16 %v1010, %v1009
        %v1039 = vpack.c.bf16 %v1012, %v1011
        %v1040 = vpack.c.bf16 %v1014, %v1013
        %v1041 = vpack.c.bf16 %v1016, %v1015
        %v1042 = vpack.c.bf16 %v1018, %v1017
        %v1043 = vpack.c.bf16 %v1020, %v1019
        %v1044 = vpack.c.bf16 %v1022, %v1021
        %v1045 = vpack.c.bf16 %v1024, %v1023
        %v1046 = vpack.c.bf16 %v1026, %v1025
        %v1047 = vpack.c.bf16 %v1028, %v1027
        %v1048 = vpack.c.bf16 %v1030, %v1029
        %v1049 = vpack.c.bf16 %v1032, %v1031
        %v1050 = vpack.c.bf16 %v1034, %v1033
        %s1051 = scalar_lea.vmem [#allocation7], 64
        %v1052 = vld [vmem:[%s1051] sm:$0xf]
        %v1053 = vld [vmem:[%s1051 + $0x4] sm:$0xf]
        %v1054 = vld [vmem:[%s1051 + $0x8] sm:$0xf]
        %v1055 = vld [vmem:[%s1051 + $0xc] sm:$0xf]
        %v1056 = vld [vmem:[%s1051 + $0x10] sm:$0xf]
        %v1057 = vld [vmem:[%s1051 + $0x14] sm:$0xf]
        %v1058 = vld [vmem:[%s1051 + $0x18] sm:$0xf]
        %v1059 = vld [vmem:[%s1051 + $0x1c] sm:$0xf]
        %v1068 = vunpack.c.l.b16 %v1052
        %v1069 = vunpack.c.l.b16 %v1053
        %v1070 = vunpack.c.l.b16 %v1054
        %v1071 = vunpack.c.l.b16 %v1055
        %v1072 = vunpack.c.l.b16 %v1056
        %v1073 = vunpack.c.l.b16 %v1057
        %v1074 = vunpack.c.l.b16 %v1058
        %v1075 = vunpack.c.l.b16 %v1059
        %v1076 = vpack.c.b16 %v1069, %v1068
        %v1077 = vpack.c.b16 %v1071, %v1070
        %v1078 = vpack.c.b16 %v1073, %v1072
        %v1079 = vpack.c.b16 %v1075, %v1074
        %v1085 = vsel %vm479, %v1035, 0
        %v1088 = vsel %vm479, %v1036, 0
        %v1091 = vsel %vm479, %v1037, 0
        %v1094 = vsel %vm479, %v1038, 0
        %v1097 = vsel %vm479, %v1039, 0
        %v1100 = vsel %vm479, %v1040, 0
        %v1103 = vsel %vm479, %v1041, 0
        %v1106 = vsel %vm479, %v1042, 0
        %v1109 = vsel %vm479, %v1043, 0
        %v1112 = vsel %vm479, %v1044, 0
        %v1115 = vsel %vm479, %v1045, 0
        %v1118 = vsel %vm479, %v1046, 0
        %v1121 = vsel %vm479, %v1047, 0
        %v1124 = vsel %vm479, %v1048, 0
        %v1127 = vsel %vm479, %v1049, 0
        %v1130 = vsel %vm479, %v1050, 0
        %1132 = vmatpush.bf16.msra.mxu0 0
        %1133 = vmatpush.bf16.msra.mxu0 0
        %1134 = vmatpush.bf16.msra.mxu0 0
        %1135 = vmatpush.bf16.msra.mxu0 0
        %1136 = vmatpush.bf16.msra.mxu0 %v1079
        %1137 = vmatpush.bf16.msra.mxu0 %v1078
        %1138 = vmatpush.bf16.msra.mxu0 %v1077
        %1139 = vmatpush.bf16.msra.mxu0 %v1076
        %1140 = vmatmul.bf16.gmra.mxu0 %v1085
        %v1141 = vpop.f32.mrf.mxu0
        %v1142 = vadd.f32 0.0, %v1141
        %v1143 = vpop.f32.mrf.mxu0
        %v1144 = vadd.f32 0.0, %v1143
        %1145 = vmatmul.bf16.gmra.mxu0 %v1088
        %v1146 = vpop.f32.mrf.mxu0
        %v1147 = vadd.f32 0.0, %v1146
        %v1148 = vpop.f32.mrf.mxu0
        %v1149 = vadd.f32 0.0, %v1148
        %1150 = vmatmul.bf16.gmra.mxu0 %v1091
        %v1151 = vpop.f32.mrf.mxu0
        %v1152 = vadd.f32 0.0, %v1151
        %v1153 = vpop.f32.mrf.mxu0
        %v1154 = vadd.f32 0.0, %v1153
        %1155 = vmatmul.bf16.gmra.mxu0 %v1094
        %v1156 = vpop.f32.mrf.mxu0
        %v1157 = vadd.f32 0.0, %v1156
        %v1158 = vpop.f32.mrf.mxu0
        %v1159 = vadd.f32 0.0, %v1158
        %1160 = vmatmul.bf16.gmra.mxu0 %v1097
        %v1161 = vpop.f32.mrf.mxu0
        %v1162 = vadd.f32 0.0, %v1161
        %v1163 = vpop.f32.mrf.mxu0
        %v1164 = vadd.f32 0.0, %v1163
        %1165 = vmatmul.bf16.gmra.mxu0 %v1100
        %v1166 = vpop.f32.mrf.mxu0
        %v1167 = vadd.f32 0.0, %v1166
        %v1168 = vpop.f32.mrf.mxu0
        %v1169 = vadd.f32 0.0, %v1168
        %1170 = vmatmul.bf16.gmra.mxu0 %v1103
        %v1171 = vpop.f32.mrf.mxu0
        %v1172 = vadd.f32 0.0, %v1171
        %v1173 = vpop.f32.mrf.mxu0
        %v1174 = vadd.f32 0.0, %v1173
        %1175 = vmatmul.bf16.gmra.mxu0 %v1106
        %v1176 = vpop.f32.mrf.mxu0
        %v1177 = vadd.f32 0.0, %v1176
        %v1178 = vpop.f32.mrf.mxu0
        %v1179 = vadd.f32 0.0, %v1178
        %1180 = vmatmul.bf16.gmra.mxu0 %v1109
        %v1181 = vpop.f32.mrf.mxu0
        %v1182 = vadd.f32 0.0, %v1181
        %v1183 = vpop.f32.mrf.mxu0
        %v1184 = vadd.f32 0.0, %v1183
        %1185 = vmatmul.bf16.gmra.mxu0 %v1112
        %v1186 = vpop.f32.mrf.mxu0
        %v1187 = vadd.f32 0.0, %v1186
        %v1188 = vpop.f32.mrf.mxu0
        %v1189 = vadd.f32 0.0, %v1188
        %1190 = vmatmul.bf16.gmra.mxu0 %v1115
        %v1191 = vpop.f32.mrf.mxu0
        %v1192 = vadd.f32 0.0, %v1191
        %v1193 = vpop.f32.mrf.mxu0
        %v1194 = vadd.f32 0.0, %v1193
        %1195 = vmatmul.bf16.gmra.mxu0 %v1118
        %v1196 = vpop.f32.mrf.mxu0
        %v1197 = vadd.f32 0.0, %v1196
        %v1198 = vpop.f32.mrf.mxu0
        %v1199 = vadd.f32 0.0, %v1198
        %1200 = vmatmul.bf16.gmra.mxu0 %v1121
        %v1201 = vpop.f32.mrf.mxu0
        %v1202 = vadd.f32 0.0, %v1201
        %v1203 = vpop.f32.mrf.mxu0
        %v1204 = vadd.f32 0.0, %v1203
        %1205 = vmatmul.bf16.gmra.mxu0 %v1124
        %v1206 = vpop.f32.mrf.mxu0
        %v1207 = vadd.f32 0.0, %v1206
        %v1208 = vpop.f32.mrf.mxu0
        %v1209 = vadd.f32 0.0, %v1208
        %1210 = vmatmul.bf16.gmra.mxu0 %v1127
        %v1211 = vpop.f32.mrf.mxu0
        %v1212 = vadd.f32 0.0, %v1211
        %v1213 = vpop.f32.mrf.mxu0
        %v1214 = vadd.f32 0.0, %v1213
        %1215 = vmatmul.bf16.gmra.mxu0 %v1130
        %v1216 = vpop.f32.mrf.mxu0
        %v1217 = vadd.f32 0.0, %v1216
        %v1218 = vpop.f32.mrf.mxu0
        %v1219 = vadd.f32 0.0, %v1218
        %1220 = vdwg.mxu0
        %v1221 = vadd.f32 %v924, %v1142
        %v1222 = vadd.f32 %v926, %v1144
        %v1223 = vadd.f32 %v929, %v1147
        %v1224 = vadd.f32 %v931, %v1149
        %v1225 = vadd.f32 %v934, %v1152
        %v1226 = vadd.f32 %v936, %v1154
        %v1227 = vadd.f32 %v939, %v1157
        %v1228 = vadd.f32 %v941, %v1159
        %v1229 = vadd.f32 %v944, %v1162
        %v1230 = vadd.f32 %v946, %v1164
        %v1231 = vadd.f32 %v949, %v1167
        %v1232 = vadd.f32 %v951, %v1169
        %v1233 = vadd.f32 %v954, %v1172
        %v1234 = vadd.f32 %v956, %v1174
        %v1235 = vadd.f32 %v959, %v1177
        %v1236 = vadd.f32 %v961, %v1179
        %v1237 = vadd.f32 %v964, %v1182
        %v1238 = vadd.f32 %v966, %v1184
        %v1239 = vadd.f32 %v969, %v1187
        %v1240 = vadd.f32 %v971, %v1189
        %v1241 = vadd.f32 %v974, %v1192
        %v1242 = vadd.f32 %v976, %v1194
        %v1243 = vadd.f32 %v979, %v1197
        %v1244 = vadd.f32 %v981, %v1199
        %v1245 = vadd.f32 %v984, %v1202
        %v1246 = vadd.f32 %v986, %v1204
        %v1247 = vadd.f32 %v989, %v1207
        %v1248 = vadd.f32 %v991, %v1209
        %v1249 = vadd.f32 %v994, %v1212
        %v1250 = vadd.f32 %v996, %v1214
        %v1251 = vadd.f32 %v999, %v1217
        %v1252 = vadd.f32 %v1001, %v1219
        %v1253 = vld [vmem:[%s535] sm:$0xff]
        %v1254 = vld [vmem:[%s535 + $0x8] sm:$0xff]
        %v1255 = vld [vmem:[%s535 + $0x18] sm:$0xff]
        %v1256 = vld [vmem:[%s535 + $0x20] sm:$0xff]
        %v1257 = vld [vmem:[%s535 + $0x30] sm:$0xff]
        %v1258 = vld [vmem:[%s535 + $0x38] sm:$0xff]
        %v1259 = vld [vmem:[%s535 + $0x48] sm:$0xff]
        %v1260 = vld [vmem:[%s535 + $0x50] sm:$0xff]
        %v1261 = vld [vmem:[%s535 + $0x60] sm:$0xff]
        %v1262 = vld [vmem:[%s535 + $0x68] sm:$0xff]
        %v1263 = vld [vmem:[%s535 + $0x78] sm:$0xff]
        %v1264 = vld [vmem:[%s535 + $0x80] sm:$0xff]
        %v1265 = vld [vmem:[%s535 + $0x90] sm:$0xff]
        %v1266 = vld [vmem:[%s535 + $0x98] sm:$0xff]
        %v1267 = vld [vmem:[%s535 + $0xa8] sm:$0xff]
        %v1268 = vld [vmem:[%s535 + $0xb0] sm:$0xff]
        %v1269 = vld [vmem:[%s535 + $0xc0] sm:$0xff]
        %v1270 = vld [vmem:[%s535 + $0xc8] sm:$0xff]
        %v1271 = vld [vmem:[%s535 + $0xd8] sm:$0xff]
        %v1272 = vld [vmem:[%s535 + $0xe0] sm:$0xff]
        %v1273 = vld [vmem:[%s535 + $0xf0] sm:$0xff]
        %v1274 = vld [vmem:[%s535 + $0xf8] sm:$0xff]
        %v1275 = vld [vmem:[%s535 + $0x108] sm:$0xff]
        %v1276 = vld [vmem:[%s535 + $0x110] sm:$0xff]
        %v1277 = vld [vmem:[%s535 + $0x120] sm:$0xff]
        %v1278 = vld [vmem:[%s535 + $0x128] sm:$0xff]
        %v1279 = vld [vmem:[%s535 + $0x138] sm:$0xff]
        %v1280 = vld [vmem:[%s535 + $0x140] sm:$0xff]
        %v1281 = vld [vmem:[%s535 + $0x150] sm:$0xff]
        %v1282 = vld [vmem:[%s535 + $0x158] sm:$0xff]
        %v1283 = vld [vmem:[%s535 + $0x168] sm:$0xff]
        %v1284 = vld [vmem:[%s535 + $0x170] sm:$0xff]
        %v1285 = vpack.c.bf16 %v1254, %v1253
        %v1286 = vpack.c.bf16 %v1256, %v1255
        %v1287 = vpack.c.bf16 %v1258, %v1257
        %v1288 = vpack.c.bf16 %v1260, %v1259
        %v1289 = vpack.c.bf16 %v1262, %v1261
        %v1290 = vpack.c.bf16 %v1264, %v1263
        %v1291 = vpack.c.bf16 %v1266, %v1265
        %v1292 = vpack.c.bf16 %v1268, %v1267
        %v1293 = vpack.c.bf16 %v1270, %v1269
        %v1294 = vpack.c.bf16 %v1272, %v1271
        %v1295 = vpack.c.bf16 %v1274, %v1273
        %v1296 = vpack.c.bf16 %v1276, %v1275
        %v1297 = vpack.c.bf16 %v1278, %v1277
        %v1298 = vpack.c.bf16 %v1280, %v1279
        %v1299 = vpack.c.bf16 %v1282, %v1281
        %v1300 = vpack.c.bf16 %v1284, %v1283
        %s1301 = scalar_lea.vmem [#allocation7], 96
        %v1302 = vld [vmem:[%s1301] sm:$0xf]
        %v1303 = vld [vmem:[%s1301 + $0x4] sm:$0xf]
        %v1304 = vld [vmem:[%s1301 + $0x8] sm:$0xf]
        %v1305 = vld [vmem:[%s1301 + $0xc] sm:$0xf]
        %v1306 = vld [vmem:[%s1301 + $0x10] sm:$0xf]
        %v1307 = vld [vmem:[%s1301 + $0x14] sm:$0xf]
        %v1308 = vld [vmem:[%s1301 + $0x18] sm:$0xf]
        %v1309 = vld [vmem:[%s1301 + $0x1c] sm:$0xf]
        %v1318 = vunpack.c.l.b16 %v1302
        %v1319 = vunpack.c.l.b16 %v1303
        %v1320 = vunpack.c.l.b16 %v1304
        %v1321 = vunpack.c.l.b16 %v1305
        %v1322 = vunpack.c.l.b16 %v1306
        %v1323 = vunpack.c.l.b16 %v1307
        %v1324 = vunpack.c.l.b16 %v1308
        %v1325 = vunpack.c.l.b16 %v1309
        %v1326 = vpack.c.b16 %v1319, %v1318
        %v1327 = vpack.c.b16 %v1321, %v1320
        %v1328 = vpack.c.b16 %v1323, %v1322
        %v1329 = vpack.c.b16 %v1325, %v1324
        %v1335 = vsel %vm479, %v1285, 0
        %v1338 = vsel %vm479, %v1286, 0
        %v1341 = vsel %vm479, %v1287, 0
        %v1344 = vsel %vm479, %v1288, 0
        %v1347 = vsel %vm479, %v1289, 0
        %v1350 = vsel %vm479, %v1290, 0
        %v1353 = vsel %vm479, %v1291, 0
        %v1356 = vsel %vm479, %v1292, 0
        %v1359 = vsel %vm479, %v1293, 0
        %v1362 = vsel %vm479, %v1294, 0
        %v1365 = vsel %vm479, %v1295, 0
        %v1368 = vsel %vm479, %v1296, 0
        %v1371 = vsel %vm479, %v1297, 0
        %v1374 = vsel %vm479, %v1298, 0
        %v1377 = vsel %vm479, %v1299, 0
        %v1380 = vsel %vm479, %v1300, 0
        %1382 = vmatpush.bf16.msra.mxu0 0
        %1383 = vmatpush.bf16.msra.mxu0 0
        %1384 = vmatpush.bf16.msra.mxu0 0
        %1385 = vmatpush.bf16.msra.mxu0 0
        %1386 = vmatpush.bf16.msra.mxu0 %v1329
        %1387 = vmatpush.bf16.msra.mxu0 %v1328
        %1388 = vmatpush.bf16.msra.mxu0 %v1327
        %1389 = vmatpush.bf16.msra.mxu0 %v1326
        %1390 = vmatmul.bf16.gmra.mxu0 %v1335
        %v1391 = vpop.f32.mrf.mxu0
        %v1392 = vadd.f32 0.0, %v1391
        %v1393 = vpop.f32.mrf.mxu0
        %v1394 = vadd.f32 0.0, %v1393
        %1395 = vmatmul.bf16.gmra.mxu0 %v1338
        %v1396 = vpop.f32.mrf.mxu0
        %v1397 = vadd.f32 0.0, %v1396
        %v1398 = vpop.f32.mrf.mxu0
        %v1399 = vadd.f32 0.0, %v1398
        %1400 = vmatmul.bf16.gmra.mxu0 %v1341
        %v1401 = vpop.f32.mrf.mxu0
        %v1402 = vadd.f32 0.0, %v1401
        %v1403 = vpop.f32.mrf.mxu0
        %v1404 = vadd.f32 0.0, %v1403
        %1405 = vmatmul.bf16.gmra.mxu0 %v1344
        %v1406 = vpop.f32.mrf.mxu0
        %v1407 = vadd.f32 0.0, %v1406
        %v1408 = vpop.f32.mrf.mxu0
        %v1409 = vadd.f32 0.0, %v1408
        %1410 = vmatmul.bf16.gmra.mxu0 %v1347
        %v1411 = vpop.f32.mrf.mxu0
        %v1412 = vadd.f32 0.0, %v1411
        %v1413 = vpop.f32.mrf.mxu0
        %v1414 = vadd.f32 0.0, %v1413
        %1415 = vmatmul.bf16.gmra.mxu0 %v1350
        %v1416 = vpop.f32.mrf.mxu0
        %v1417 = vadd.f32 0.0, %v1416
        %v1418 = vpop.f32.mrf.mxu0
        %v1419 = vadd.f32 0.0, %v1418
        %1420 = vmatmul.bf16.gmra.mxu0 %v1353
        %v1421 = vpop.f32.mrf.mxu0
        %v1422 = vadd.f32 0.0, %v1421
        %v1423 = vpop.f32.mrf.mxu0
        %v1424 = vadd.f32 0.0, %v1423
        %1425 = vmatmul.bf16.gmra.mxu0 %v1356
        %v1426 = vpop.f32.mrf.mxu0
        %v1427 = vadd.f32 0.0, %v1426
        %v1428 = vpop.f32.mrf.mxu0
        %v1429 = vadd.f32 0.0, %v1428
        %1430 = vmatmul.bf16.gmra.mxu0 %v1359
        %v1431 = vpop.f32.mrf.mxu0
        %v1432 = vadd.f32 0.0, %v1431
        %v1433 = vpop.f32.mrf.mxu0
        %v1434 = vadd.f32 0.0, %v1433
        %1435 = vmatmul.bf16.gmra.mxu0 %v1362
        %v1436 = vpop.f32.mrf.mxu0
        %v1437 = vadd.f32 0.0, %v1436
        %v1438 = vpop.f32.mrf.mxu0
        %v1439 = vadd.f32 0.0, %v1438
        %1440 = vmatmul.bf16.gmra.mxu0 %v1365
        %v1441 = vpop.f32.mrf.mxu0
        %v1442 = vadd.f32 0.0, %v1441
        %v1443 = vpop.f32.mrf.mxu0
        %v1444 = vadd.f32 0.0, %v1443
        %1445 = vmatmul.bf16.gmra.mxu0 %v1368
        %v1446 = vpop.f32.mrf.mxu0
        %v1447 = vadd.f32 0.0, %v1446
        %v1448 = vpop.f32.mrf.mxu0
        %v1449 = vadd.f32 0.0, %v1448
        %1450 = vmatmul.bf16.gmra.mxu0 %v1371
        %v1451 = vpop.f32.mrf.mxu0
        %v1452 = vadd.f32 0.0, %v1451
        %v1453 = vpop.f32.mrf.mxu0
        %v1454 = vadd.f32 0.0, %v1453
        %1455 = vmatmul.bf16.gmra.mxu0 %v1374
        %v1456 = vpop.f32.mrf.mxu0
        %v1457 = vadd.f32 0.0, %v1456
        %v1458 = vpop.f32.mrf.mxu0
        %v1459 = vadd.f32 0.0, %v1458
        %1460 = vmatmul.bf16.gmra.mxu0 %v1377
        %v1461 = vpop.f32.mrf.mxu0
        %v1462 = vadd.f32 0.0, %v1461
        %v1463 = vpop.f32.mrf.mxu0
        %v1464 = vadd.f32 0.0, %v1463
        %1465 = vmatmul.bf16.gmra.mxu0 %v1380
        %v1466 = vpop.f32.mrf.mxu0
        %v1467 = vadd.f32 0.0, %v1466
        %v1468 = vpop.f32.mrf.mxu0
        %v1469 = vadd.f32 0.0, %v1468
        %1470 = vdwg.mxu0
        %v1471 = vadd.f32 %v1221, %v1392
        %v1472 = vadd.f32 %v1222, %v1394
        %v1473 = vadd.f32 %v1223, %v1397
        %v1474 = vadd.f32 %v1224, %v1399
        %v1475 = vadd.f32 %v1225, %v1402
        %v1476 = vadd.f32 %v1226, %v1404
        %v1477 = vadd.f32 %v1227, %v1407
        %v1478 = vadd.f32 %v1228, %v1409
        %v1479 = vadd.f32 %v1229, %v1412
        %v1480 = vadd.f32 %v1230, %v1414
        %v1481 = vadd.f32 %v1231, %v1417
        %v1482 = vadd.f32 %v1232, %v1419
        %v1483 = vadd.f32 %v1233, %v1422
        %v1484 = vadd.f32 %v1234, %v1424
        %v1485 = vadd.f32 %v1235, %v1427
        %v1486 = vadd.f32 %v1236, %v1429
        %v1487 = vadd.f32 %v1237, %v1432
        %v1488 = vadd.f32 %v1238, %v1434
        %v1489 = vadd.f32 %v1239, %v1437
        %v1490 = vadd.f32 %v1240, %v1439
        %v1491 = vadd.f32 %v1241, %v1442
        %v1492 = vadd.f32 %v1242, %v1444
        %v1493 = vadd.f32 %v1243, %v1447
        %v1494 = vadd.f32 %v1244, %v1449
        %v1495 = vadd.f32 %v1245, %v1452
        %v1496 = vadd.f32 %v1246, %v1454
        %v1497 = vadd.f32 %v1247, %v1457
        %v1498 = vadd.f32 %v1248, %v1459
        %v1499 = vadd.f32 %v1249, %v1462
        %v1500 = vadd.f32 %v1250, %v1464
        %v1501 = vadd.f32 %v1251, %v1467
        %v1502 = vadd.f32 %v1252, %v1469
        %v1503 = vld [vmem:[%s535 + $0x1] sm:$0xff]
        %v1504 = vld [vmem:[%s535 + $0x9] sm:$0xff]
        %v1505 = vld [vmem:[%s535 + $0x19] sm:$0xff]
        %v1506 = vld [vmem:[%s535 + $0x21] sm:$0xff]
        %v1507 = vld [vmem:[%s535 + $0x31] sm:$0xff]
        %v1508 = vld [vmem:[%s535 + $0x39] sm:$0xff]
        %v1509 = vld [vmem:[%s535 + $0x49] sm:$0xff]
        %v1510 = vld [vmem:[%s535 + $0x51] sm:$0xff]
        %v1511 = vld [vmem:[%s535 + $0x61] sm:$0xff]
        %v1512 = vld [vmem:[%s535 + $0x69] sm:$0xff]
        %v1513 = vld [vmem:[%s535 + $0x79] sm:$0xff]
        %v1514 = vld [vmem:[%s535 + $0x81] sm:$0xff]
        %v1515 = vld [vmem:[%s535 + $0x91] sm:$0xff]
        %v1516 = vld [vmem:[%s535 + $0x99] sm:$0xff]
        %v1517 = vld [vmem:[%s535 + $0xa9] sm:$0xff]
        %v1518 = vld [vmem:[%s535 + $0xb1] sm:$0xff]
        %v1519 = vld [vmem:[%s535 + $0xc1] sm:$0xff]
        %v1520 = vld [vmem:[%s535 + $0xc9] sm:$0xff]
        %v1521 = vld [vmem:[%s535 + $0xd9] sm:$0xff]
        %v1522 = vld [vmem:[%s535 + $0xe1] sm:$0xff]
        %v1523 = vld [vmem:[%s535 + $0xf1] sm:$0xff]
        %v1524 = vld [vmem:[%s535 + $0xf9] sm:$0xff]
        %v1525 = vld [vmem:[%s535 + $0x109] sm:$0xff]
        %v1526 = vld [vmem:[%s535 + $0x111] sm:$0xff]
        %v1527 = vld [vmem:[%s535 + $0x121] sm:$0xff]
        %v1528 = vld [vmem:[%s535 + $0x129] sm:$0xff]
        %v1529 = vld [vmem:[%s535 + $0x139] sm:$0xff]
        %v1530 = vld [vmem:[%s535 + $0x141] sm:$0xff]
        %v1531 = vld [vmem:[%s535 + $0x151] sm:$0xff]
        %v1532 = vld [vmem:[%s535 + $0x159] sm:$0xff]
        %v1533 = vld [vmem:[%s535 + $0x169] sm:$0xff]
        %v1534 = vld [vmem:[%s535 + $0x171] sm:$0xff]
        %v1535 = vpack.c.bf16 %v1504, %v1503
        %v1536 = vpack.c.bf16 %v1506, %v1505
        %v1537 = vpack.c.bf16 %v1508, %v1507
        %v1538 = vpack.c.bf16 %v1510, %v1509
        %v1539 = vpack.c.bf16 %v1512, %v1511
        %v1540 = vpack.c.bf16 %v1514, %v1513
        %v1541 = vpack.c.bf16 %v1516, %v1515
        %v1542 = vpack.c.bf16 %v1518, %v1517
        %v1543 = vpack.c.bf16 %v1520, %v1519
        %v1544 = vpack.c.bf16 %v1522, %v1521
        %v1545 = vpack.c.bf16 %v1524, %v1523
        %v1546 = vpack.c.bf16 %v1526, %v1525
        %v1547 = vpack.c.bf16 %v1528, %v1527
        %v1548 = vpack.c.bf16 %v1530, %v1529
        %v1549 = vpack.c.bf16 %v1532, %v1531
        %v1550 = vpack.c.bf16 %v1534, %v1533
        %s1551 = scalar_lea.vmem [#allocation7], 128
        %v1552 = vld [vmem:[%s1551] sm:$0xf]
        %v1553 = vld [vmem:[%s1551 + $0x4] sm:$0xf]
        %v1554 = vld [vmem:[%s1551 + $0x8] sm:$0xf]
        %v1555 = vld [vmem:[%s1551 + $0xc] sm:$0xf]
        %v1556 = vld [vmem:[%s1551 + $0x10] sm:$0xf]
        %v1557 = vld [vmem:[%s1551 + $0x14] sm:$0xf]
        %v1558 = vld [vmem:[%s1551 + $0x18] sm:$0xf]
        %v1559 = vld [vmem:[%s1551 + $0x1c] sm:$0xf]
        %v1568 = vunpack.c.l.b16 %v1552
        %v1569 = vunpack.c.l.b16 %v1553
        %v1570 = vunpack.c.l.b16 %v1554
        %v1571 = vunpack.c.l.b16 %v1555
        %v1572 = vunpack.c.l.b16 %v1556
        %v1573 = vunpack.c.l.b16 %v1557
        %v1574 = vunpack.c.l.b16 %v1558
        %v1575 = vunpack.c.l.b16 %v1559
        %v1576 = vpack.c.b16 %v1569, %v1568
        %v1577 = vpack.c.b16 %v1571, %v1570
        %v1578 = vpack.c.b16 %v1573, %v1572
        %v1579 = vpack.c.b16 %v1575, %v1574
        %v1585 = vsel %vm479, %v1535, 0
        %v1588 = vsel %vm479, %v1536, 0
        %v1591 = vsel %vm479, %v1537, 0
        %v1594 = vsel %vm479, %v1538, 0
        %v1597 = vsel %vm479, %v1539, 0
        %v1600 = vsel %vm479, %v1540, 0
        %v1603 = vsel %vm479, %v1541, 0
        %v1606 = vsel %vm479, %v1542, 0
        %v1609 = vsel %vm479, %v1543, 0
        %v1612 = vsel %vm479, %v1544, 0
        %v1615 = vsel %vm479, %v1545, 0
        %v1618 = vsel %vm479, %v1546, 0
        %v1621 = vsel %vm479, %v1547, 0
        %v1624 = vsel %vm479, %v1548, 0
        %v1627 = vsel %vm479, %v1549, 0
        %v1630 = vsel %vm479, %v1550, 0
        %1632 = vmatpush.bf16.msra.mxu0 0
        %1633 = vmatpush.bf16.msra.mxu0 0
        %1634 = vmatpush.bf16.msra.mxu0 0
        %1635 = vmatpush.bf16.msra.mxu0 0
        %1636 = vmatpush.bf16.msra.mxu0 %v1579
        %1637 = vmatpush.bf16.msra.mxu0 %v1578
        %1638 = vmatpush.bf16.msra.mxu0 %v1577
        %1639 = vmatpush.bf16.msra.mxu0 %v1576
        %1640 = vmatmul.bf16.gmra.mxu0 %v1585
        %v1641 = vpop.f32.mrf.mxu0
        %v1642 = vadd.f32 0.0, %v1641
        %v1643 = vpop.f32.mrf.mxu0
        %v1644 = vadd.f32 0.0, %v1643
        %1645 = vmatmul.bf16.gmra.mxu0 %v1588
        %v1646 = vpop.f32.mrf.mxu0
        %v1647 = vadd.f32 0.0, %v1646
        %v1648 = vpop.f32.mrf.mxu0
        %v1649 = vadd.f32 0.0, %v1648
        %1650 = vmatmul.bf16.gmra.mxu0 %v1591
        %v1651 = vpop.f32.mrf.mxu0
        %v1652 = vadd.f32 0.0, %v1651
        %v1653 = vpop.f32.mrf.mxu0
        %v1654 = vadd.f32 0.0, %v1653
        %1655 = vmatmul.bf16.gmra.mxu0 %v1594
        %v1656 = vpop.f32.mrf.mxu0
        %v1657 = vadd.f32 0.0, %v1656
        %v1658 = vpop.f32.mrf.mxu0
        %v1659 = vadd.f32 0.0, %v1658
        %1660 = vmatmul.bf16.gmra.mxu0 %v1597
        %v1661 = vpop.f32.mrf.mxu0
        %v1662 = vadd.f32 0.0, %v1661
        %v1663 = vpop.f32.mrf.mxu0
        %v1664 = vadd.f32 0.0, %v1663
        %1665 = vmatmul.bf16.gmra.mxu0 %v1600
        %v1666 = vpop.f32.mrf.mxu0
        %v1667 = vadd.f32 0.0, %v1666
        %v1668 = vpop.f32.mrf.mxu0
        %v1669 = vadd.f32 0.0, %v1668
        %1670 = vmatmul.bf16.gmra.mxu0 %v1603
        %v1671 = vpop.f32.mrf.mxu0
        %v1672 = vadd.f32 0.0, %v1671
        %v1673 = vpop.f32.mrf.mxu0
        %v1674 = vadd.f32 0.0, %v1673
        %1675 = vmatmul.bf16.gmra.mxu0 %v1606
        %v1676 = vpop.f32.mrf.mxu0
        %v1677 = vadd.f32 0.0, %v1676
        %v1678 = vpop.f32.mrf.mxu0
        %v1679 = vadd.f32 0.0, %v1678
        %1680 = vmatmul.bf16.gmra.mxu0 %v1609
        %v1681 = vpop.f32.mrf.mxu0
        %v1682 = vadd.f32 0.0, %v1681
        %v1683 = vpop.f32.mrf.mxu0
        %v1684 = vadd.f32 0.0, %v1683
        %1685 = vmatmul.bf16.gmra.mxu0 %v1612
        %v1686 = vpop.f32.mrf.mxu0
        %v1687 = vadd.f32 0.0, %v1686
        %v1688 = vpop.f32.mrf.mxu0
        %v1689 = vadd.f32 0.0, %v1688
        %1690 = vmatmul.bf16.gmra.mxu0 %v1615
        %v1691 = vpop.f32.mrf.mxu0
        %v1692 = vadd.f32 0.0, %v1691
        %v1693 = vpop.f32.mrf.mxu0
        %v1694 = vadd.f32 0.0, %v1693
        %1695 = vmatmul.bf16.gmra.mxu0 %v1618
        %v1696 = vpop.f32.mrf.mxu0
        %v1697 = vadd.f32 0.0, %v1696
        %v1698 = vpop.f32.mrf.mxu0
        %v1699 = vadd.f32 0.0, %v1698
        %1700 = vmatmul.bf16.gmra.mxu0 %v1621
        %v1701 = vpop.f32.mrf.mxu0
        %v1702 = vadd.f32 0.0, %v1701
        %v1703 = vpop.f32.mrf.mxu0
        %v1704 = vadd.f32 0.0, %v1703
        %1705 = vmatmul.bf16.gmra.mxu0 %v1624
        %v1706 = vpop.f32.mrf.mxu0
        %v1707 = vadd.f32 0.0, %v1706
        %v1708 = vpop.f32.mrf.mxu0
        %v1709 = vadd.f32 0.0, %v1708
        %1710 = vmatmul.bf16.gmra.mxu0 %v1627
        %v1711 = vpop.f32.mrf.mxu0
        %v1712 = vadd.f32 0.0, %v1711
        %v1713 = vpop.f32.mrf.mxu0
        %v1714 = vadd.f32 0.0, %v1713
        %1715 = vmatmul.bf16.gmra.mxu0 %v1630
        %v1716 = vpop.f32.mrf.mxu0
        %v1717 = vadd.f32 0.0, %v1716
        %v1718 = vpop.f32.mrf.mxu0
        %v1719 = vadd.f32 0.0, %v1718
        %1720 = vdwg.mxu0
        %v1721 = vadd.f32 %v1471, %v1642
        %v1722 = vadd.f32 %v1472, %v1644
        %v1723 = vadd.f32 %v1473, %v1647
        %v1724 = vadd.f32 %v1474, %v1649
        %v1725 = vadd.f32 %v1475, %v1652
        %v1726 = vadd.f32 %v1476, %v1654
        %v1727 = vadd.f32 %v1477, %v1657
        %v1728 = vadd.f32 %v1478, %v1659
        %v1729 = vadd.f32 %v1479, %v1662
        %v1730 = vadd.f32 %v1480, %v1664
        %v1731 = vadd.f32 %v1481, %v1667
        %v1732 = vadd.f32 %v1482, %v1669
        %v1733 = vadd.f32 %v1483, %v1672
        %v1734 = vadd.f32 %v1484, %v1674
        %v1735 = vadd.f32 %v1485, %v1677
        %v1736 = vadd.f32 %v1486, %v1679
        %v1737 = vadd.f32 %v1487, %v1682
        %v1738 = vadd.f32 %v1488, %v1684
        %v1739 = vadd.f32 %v1489, %v1687
        %v1740 = vadd.f32 %v1490, %v1689
        %v1741 = vadd.f32 %v1491, %v1692
        %v1742 = vadd.f32 %v1492, %v1694
        %v1743 = vadd.f32 %v1493, %v1697
        %v1744 = vadd.f32 %v1494, %v1699
        %v1745 = vadd.f32 %v1495, %v1702
        %v1746 = vadd.f32 %v1496, %v1704
        %v1747 = vadd.f32 %v1497, %v1707
        %v1748 = vadd.f32 %v1498, %v1709
        %v1749 = vadd.f32 %v1499, %v1712
        %v1750 = vadd.f32 %v1500, %v1714
        %v1751 = vadd.f32 %v1501, %v1717
        %v1752 = vadd.f32 %v1502, %v1719
        %v1753 = vld [vmem:[%s535 + $0x2] sm:$0xff]
        %v1754 = vld [vmem:[%s535 + $0xa] sm:$0xff]
        %v1755 = vld [vmem:[%s535 + $0x1a] sm:$0xff]
        %v1756 = vld [vmem:[%s535 + $0x22] sm:$0xff]
        %v1757 = vld [vmem:[%s535 + $0x32] sm:$0xff]
        %v1758 = vld [vmem:[%s535 + $0x3a] sm:$0xff]
        %v1759 = vld [vmem:[%s535 + $0x4a] sm:$0xff]
        %v1760 = vld [vmem:[%s535 + $0x52] sm:$0xff]
        %v1761 = vld [vmem:[%s535 + $0x62] sm:$0xff]
        %v1762 = vld [vmem:[%s535 + $0x6a] sm:$0xff]
        %v1763 = vld [vmem:[%s535 + $0x7a] sm:$0xff]
        %v1764 = vld [vmem:[%s535 + $0x82] sm:$0xff]
        %v1765 = vld [vmem:[%s535 + $0x92] sm:$0xff]
        %v1766 = vld [vmem:[%s535 + $0x9a] sm:$0xff]
        %v1767 = vld [vmem:[%s535 + $0xaa] sm:$0xff]
        %v1768 = vld [vmem:[%s535 + $0xb2] sm:$0xff]
        %v1769 = vld [vmem:[%s535 + $0xc2] sm:$0xff]
        %v1770 = vld [vmem:[%s535 + $0xca] sm:$0xff]
        %v1771 = vld [vmem:[%s535 + $0xda] sm:$0xff]
        %v1772 = vld [vmem:[%s535 + $0xe2] sm:$0xff]
        %v1773 = vld [vmem:[%s535 + $0xf2] sm:$0xff]
        %v1774 = vld [vmem:[%s535 + $0xfa] sm:$0xff]
        %v1775 = vld [vmem:[%s535 + $0x10a] sm:$0xff]
        %v1776 = vld [vmem:[%s535 + $0x112] sm:$0xff]
        %v1777 = vld [vmem:[%s535 + $0x122] sm:$0xff]
        %v1778 = vld [vmem:[%s535 + $0x12a] sm:$0xff]
        %v1779 = vld [vmem:[%s535 + $0x13a] sm:$0xff]
        %v1780 = vld [vmem:[%s535 + $0x142] sm:$0xff]
        %v1781 = vld [vmem:[%s535 + $0x152] sm:$0xff]
        %v1782 = vld [vmem:[%s535 + $0x15a] sm:$0xff]
        %v1783 = vld [vmem:[%s535 + $0x16a] sm:$0xff]
        %v1784 = vld [vmem:[%s535 + $0x172] sm:$0xff]
        %v1785 = vpack.c.bf16 %v1754, %v1753
        %v1786 = vpack.c.bf16 %v1756, %v1755
        %v1787 = vpack.c.bf16 %v1758, %v1757
        %v1788 = vpack.c.bf16 %v1760, %v1759
        %v1789 = vpack.c.bf16 %v1762, %v1761
        %v1790 = vpack.c.bf16 %v1764, %v1763
        %v1791 = vpack.c.bf16 %v1766, %v1765
        %v1792 = vpack.c.bf16 %v1768, %v1767
        %v1793 = vpack.c.bf16 %v1770, %v1769
        %v1794 = vpack.c.bf16 %v1772, %v1771
        %v1795 = vpack.c.bf16 %v1774, %v1773
        %v1796 = vpack.c.bf16 %v1776, %v1775
        %v1797 = vpack.c.bf16 %v1778, %v1777
        %v1798 = vpack.c.bf16 %v1780, %v1779
        %v1799 = vpack.c.bf16 %v1782, %v1781
        %v1800 = vpack.c.bf16 %v1784, %v1783
        %s1801 = scalar_lea.vmem [#allocation7], 160
        %v1802 = vld [vmem:[%s1801] sm:$0xf]
        %v1803 = vld [vmem:[%s1801 + $0x4] sm:$0xf]
        %v1804 = vld [vmem:[%s1801 + $0x8] sm:$0xf]
        %v1805 = vld [vmem:[%s1801 + $0xc] sm:$0xf]
        %v1806 = vld [vmem:[%s1801 + $0x10] sm:$0xf]
        %v1807 = vld [vmem:[%s1801 + $0x14] sm:$0xf]
        %v1808 = vld [vmem:[%s1801 + $0x18] sm:$0xf]
        %v1809 = vld [vmem:[%s1801 + $0x1c] sm:$0xf]
        %v1818 = vunpack.c.l.b16 %v1802
        %v1819 = vunpack.c.l.b16 %v1803
        %v1820 = vunpack.c.l.b16 %v1804
        %v1821 = vunpack.c.l.b16 %v1805
        %v1822 = vunpack.c.l.b16 %v1806
        %v1823 = vunpack.c.l.b16 %v1807
        %v1824 = vunpack.c.l.b16 %v1808
        %v1825 = vunpack.c.l.b16 %v1809
        %v1826 = vpack.c.b16 %v1819, %v1818
        %v1827 = vpack.c.b16 %v1821, %v1820
        %v1828 = vpack.c.b16 %v1823, %v1822
        %v1829 = vpack.c.b16 %v1825, %v1824
        %v1835 = vsel %vm479, %v1785, 0
        %v1838 = vsel %vm479, %v1786, 0
        %v1841 = vsel %vm479, %v1787, 0
        %v1844 = vsel %vm479, %v1788, 0
        %v1847 = vsel %vm479, %v1789, 0
        %v1850 = vsel %vm479, %v1790, 0
        %v1853 = vsel %vm479, %v1791, 0
        %v1856 = vsel %vm479, %v1792, 0
        %v1859 = vsel %vm479, %v1793, 0
        %v1862 = vsel %vm479, %v1794, 0
        %v1865 = vsel %vm479, %v1795, 0
        %v1868 = vsel %vm479, %v1796, 0
        %v1871 = vsel %vm479, %v1797, 0
        %v1874 = vsel %vm479, %v1798, 0
        %v1877 = vsel %vm479, %v1799, 0
        %v1880 = vsel %vm479, %v1800, 0
        %1882 = vmatpush.bf16.msra.mxu0 0
        %1883 = vmatpush.bf16.msra.mxu0 0
        %1884 = vmatpush.bf16.msra.mxu0 0
        %1885 = vmatpush.bf16.msra.mxu0 0
        %1886 = vmatpush.bf16.msra.mxu0 %v1829
        %1887 = vmatpush.bf16.msra.mxu0 %v1828
        %1888 = vmatpush.bf16.msra.mxu0 %v1827
        %1889 = vmatpush.bf16.msra.mxu0 %v1826
        %1890 = vmatmul.bf16.gmra.mxu0 %v1835
        %v1891 = vpop.f32.mrf.mxu0
        %v1892 = vadd.f32 0.0, %v1891
        %v1893 = vpop.f32.mrf.mxu0
        %v1894 = vadd.f32 0.0, %v1893
        %1895 = vmatmul.bf16.gmra.mxu0 %v1838
        %v1896 = vpop.f32.mrf.mxu0
        %v1897 = vadd.f32 0.0, %v1896
        %v1898 = vpop.f32.mrf.mxu0
        %v1899 = vadd.f32 0.0, %v1898
        %1900 = vmatmul.bf16.gmra.mxu0 %v1841
        %v1901 = vpop.f32.mrf.mxu0
        %v1902 = vadd.f32 0.0, %v1901
        %v1903 = vpop.f32.mrf.mxu0
        %v1904 = vadd.f32 0.0, %v1903
        %1905 = vmatmul.bf16.gmra.mxu0 %v1844
        %v1906 = vpop.f32.mrf.mxu0
        %v1907 = vadd.f32 0.0, %v1906
        %v1908 = vpop.f32.mrf.mxu0
        %v1909 = vadd.f32 0.0, %v1908
        %1910 = vmatmul.bf16.gmra.mxu0 %v1847
        %v1911 = vpop.f32.mrf.mxu0
        %v1912 = vadd.f32 0.0, %v1911
        %v1913 = vpop.f32.mrf.mxu0
        %v1914 = vadd.f32 0.0, %v1913
        %1915 = vmatmul.bf16.gmra.mxu0 %v1850
        %v1916 = vpop.f32.mrf.mxu0
        %v1917 = vadd.f32 0.0, %v1916
        %v1918 = vpop.f32.mrf.mxu0
        %v1919 = vadd.f32 0.0, %v1918
        %1920 = vmatmul.bf16.gmra.mxu0 %v1853
        %v1921 = vpop.f32.mrf.mxu0
        %v1922 = vadd.f32 0.0, %v1921
        %v1923 = vpop.f32.mrf.mxu0
        %v1924 = vadd.f32 0.0, %v1923
        %1925 = vmatmul.bf16.gmra.mxu0 %v1856
        %v1926 = vpop.f32.mrf.mxu0
        %v1927 = vadd.f32 0.0, %v1926
        %v1928 = vpop.f32.mrf.mxu0
        %v1929 = vadd.f32 0.0, %v1928
        %1930 = vmatmul.bf16.gmra.mxu0 %v1859
        %v1931 = vpop.f32.mrf.mxu0
        %v1932 = vadd.f32 0.0, %v1931
        %v1933 = vpop.f32.mrf.mxu0
        %v1934 = vadd.f32 0.0, %v1933
        %1935 = vmatmul.bf16.gmra.mxu0 %v1862
        %v1936 = vpop.f32.mrf.mxu0
        %v1937 = vadd.f32 0.0, %v1936
        %v1938 = vpop.f32.mrf.mxu0
        %v1939 = vadd.f32 0.0, %v1938
        %1940 = vmatmul.bf16.gmra.mxu0 %v1865
        %v1941 = vpop.f32.mrf.mxu0
        %v1942 = vadd.f32 0.0, %v1941
        %v1943 = vpop.f32.mrf.mxu0
        %v1944 = vadd.f32 0.0, %v1943
        %1945 = vmatmul.bf16.gmra.mxu0 %v1868
        %v1946 = vpop.f32.mrf.mxu0
        %v1947 = vadd.f32 0.0, %v1946
        %v1948 = vpop.f32.mrf.mxu0
        %v1949 = vadd.f32 0.0, %v1948
        %1950 = vmatmul.bf16.gmra.mxu0 %v1871
        %v1951 = vpop.f32.mrf.mxu0
        %v1952 = vadd.f32 0.0, %v1951
        %v1953 = vpop.f32.mrf.mxu0
        %v1954 = vadd.f32 0.0, %v1953
        %1955 = vmatmul.bf16.gmra.mxu0 %v1874
        %v1956 = vpop.f32.mrf.mxu0
        %v1957 = vadd.f32 0.0, %v1956
        %v1958 = vpop.f32.mrf.mxu0
        %v1959 = vadd.f32 0.0, %v1958
        %1960 = vmatmul.bf16.gmra.mxu0 %v1877
        %v1961 = vpop.f32.mrf.mxu0
        %v1962 = vadd.f32 0.0, %v1961
        %v1963 = vpop.f32.mrf.mxu0
        %v1964 = vadd.f32 0.0, %v1963
        %1965 = vmatmul.bf16.gmra.mxu0 %v1880
        %v1966 = vpop.f32.mrf.mxu0
        %v1967 = vadd.f32 0.0, %v1966
        %v1968 = vpop.f32.mrf.mxu0
        %v1969 = vadd.f32 0.0, %v1968
        %1970 = vdwg.mxu0
        %v1971 = vadd.f32 %v1721, %v1892
        %v1972 = vadd.f32 %v1722, %v1894
        %v1973 = vadd.f32 %v1723, %v1897
        %v1974 = vadd.f32 %v1724, %v1899
        %v1975 = vadd.f32 %v1725, %v1902
        %v1976 = vadd.f32 %v1726, %v1904
        %v1977 = vadd.f32 %v1727, %v1907
        %v1978 = vadd.f32 %v1728, %v1909
        %v1979 = vadd.f32 %v1729, %v1912
        %v1980 = vadd.f32 %v1730, %v1914
        %v1981 = vadd.f32 %v1731, %v1917
        %v1982 = vadd.f32 %v1732, %v1919
        %v1983 = vadd.f32 %v1733, %v1922
        %v1984 = vadd.f32 %v1734, %v1924
        %v1985 = vadd.f32 %v1735, %v1927
        %v1986 = vadd.f32 %v1736, %v1929
        %v1987 = vadd.f32 %v1737, %v1932
        %v1988 = vadd.f32 %v1738, %v1934
        %v1989 = vadd.f32 %v1739, %v1937
        %v1990 = vadd.f32 %v1740, %v1939
        %v1991 = vadd.f32 %v1741, %v1942
        %v1992 = vadd.f32 %v1742, %v1944
        %v1993 = vadd.f32 %v1743, %v1947
        %v1994 = vadd.f32 %v1744, %v1949
        %v1995 = vadd.f32 %v1745, %v1952
        %v1996 = vadd.f32 %v1746, %v1954
        %v1997 = vadd.f32 %v1747, %v1957
        %v1998 = vadd.f32 %v1748, %v1959
        %v1999 = vadd.f32 %v1749, %v1962
        %v2000 = vadd.f32 %v1750, %v1964
        %v2001 = vadd.f32 %v1751, %v1967
        %v2002 = vadd.f32 %v1752, %v1969
        %s2003 = scalar_lea.vmem [#allocation2], 48
        %v2004 = vld [vmem:[%s2003] sm:$0xff]
        %v2005 = vld [vmem:[%s2003 + $0x8] sm:$0xff]
        %v2006 = vld [vmem:[%s2003 + $0x18] sm:$0xff]
        %v2007 = vld [vmem:[%s2003 + $0x20] sm:$0xff]
        %v2008 = vld [vmem:[%s2003 + $0x30] sm:$0xff]
        %v2009 = vld [vmem:[%s2003 + $0x38] sm:$0xff]
        %v2010 = vld [vmem:[%s2003 + $0x48] sm:$0xff]
        %v2011 = vld [vmem:[%s2003 + $0x50] sm:$0xff]
        %v2012 = vld [vmem:[%s2003 + $0x60] sm:$0xff]
        %v2013 = vld [vmem:[%s2003 + $0x68] sm:$0xff]
        %v2014 = vld [vmem:[%s2003 + $0x78] sm:$0xff]
        %v2015 = vld [vmem:[%s2003 + $0x80] sm:$0xff]
        %v2016 = vld [vmem:[%s2003 + $0x90] sm:$0xff]
        %v2017 = vld [vmem:[%s2003 + $0x98] sm:$0xff]
        %v2018 = vld [vmem:[%s2003 + $0xa8] sm:$0xff]
        %v2019 = vld [vmem:[%s2003 + $0xb0] sm:$0xff]
        %v2020 = vld [vmem:[%s2003 + $0xc0] sm:$0xff]
        %v2021 = vld [vmem:[%s2003 + $0xc8] sm:$0xff]
        %v2022 = vld [vmem:[%s2003 + $0xd8] sm:$0xff]
        %v2023 = vld [vmem:[%s2003 + $0xe0] sm:$0xff]
        %v2024 = vld [vmem:[%s2003 + $0xf0] sm:$0xff]
        %v2025 = vld [vmem:[%s2003 + $0xf8] sm:$0xff]
        %v2026 = vld [vmem:[%s2003 + $0x108] sm:$0xff]
        %v2027 = vld [vmem:[%s2003 + $0x110] sm:$0xff]
        %v2028 = vld [vmem:[%s2003 + $0x120] sm:$0xff]
        %v2029 = vld [vmem:[%s2003 + $0x128] sm:$0xff]
        %v2030 = vld [vmem:[%s2003 + $0x138] sm:$0xff]
        %v2031 = vld [vmem:[%s2003 + $0x140] sm:$0xff]
        %v2032 = vld [vmem:[%s2003 + $0x150] sm:$0xff]
        %v2033 = vld [vmem:[%s2003 + $0x158] sm:$0xff]
        %v2034 = vld [vmem:[%s2003 + $0x168] sm:$0xff]
        %v2035 = vld [vmem:[%s2003 + $0x170] sm:$0xff]
        %v2036 = vpack.c.bf16 %v2005, %v2004
        %v2037 = vpack.c.bf16 %v2007, %v2006
        %v2038 = vpack.c.bf16 %v2009, %v2008
        %v2039 = vpack.c.bf16 %v2011, %v2010
        %v2040 = vpack.c.bf16 %v2013, %v2012
        %v2041 = vpack.c.bf16 %v2015, %v2014
        %v2042 = vpack.c.bf16 %v2017, %v2016
        %v2043 = vpack.c.bf16 %v2019, %v2018
        %v2044 = vpack.c.bf16 %v2021, %v2020
        %v2045 = vpack.c.bf16 %v2023, %v2022
        %v2046 = vpack.c.bf16 %v2025, %v2024
        %v2047 = vpack.c.bf16 %v2027, %v2026
        %v2048 = vpack.c.bf16 %v2029, %v2028
        %v2049 = vpack.c.bf16 %v2031, %v2030
        %v2050 = vpack.c.bf16 %v2033, %v2032
        %v2051 = vpack.c.bf16 %v2035, %v2034
        %s2052 = scalar_lea.vmem [#allocation7], 192
        %v2053 = vld [vmem:[%s2052] sm:$0xf]
        %v2054 = vld [vmem:[%s2052 + $0x4] sm:$0xf]
        %v2055 = vld [vmem:[%s2052 + $0x8] sm:$0xf]
        %v2056 = vld [vmem:[%s2052 + $0xc] sm:$0xf]
        %v2057 = vld [vmem:[%s2052 + $0x10] sm:$0xf]
        %v2058 = vld [vmem:[%s2052 + $0x14] sm:$0xf]
        %v2059 = vld [vmem:[%s2052 + $0x18] sm:$0xf]
        %v2060 = vld [vmem:[%s2052 + $0x1c] sm:$0xf]
        %v2069 = vunpack.c.l.b16 %v2053
        %v2070 = vunpack.c.l.b16 %v2054
        %v2071 = vunpack.c.l.b16 %v2055
        %v2072 = vunpack.c.l.b16 %v2056
        %v2073 = vunpack.c.l.b16 %v2057
        %v2074 = vunpack.c.l.b16 %v2058
        %v2075 = vunpack.c.l.b16 %v2059
        %v2076 = vunpack.c.l.b16 %v2060
        %v2077 = vpack.c.b16 %v2070, %v2069
        %v2078 = vpack.c.b16 %v2072, %v2071
        %v2079 = vpack.c.b16 %v2074, %v2073
        %v2080 = vpack.c.b16 %v2076, %v2075
        %v2086 = vsel %vm479, %v2036, 0
        %v2089 = vsel %vm479, %v2037, 0
        %v2092 = vsel %vm479, %v2038, 0
        %v2095 = vsel %vm479, %v2039, 0
        %v2098 = vsel %vm479, %v2040, 0
        %v2101 = vsel %vm479, %v2041, 0
        %v2104 = vsel %vm479, %v2042, 0
        %v2107 = vsel %vm479, %v2043, 0
        %v2110 = vsel %vm479, %v2044, 0
        %v2113 = vsel %vm479, %v2045, 0
        %v2116 = vsel %vm479, %v2046, 0
        %v2119 = vsel %vm479, %v2047, 0
        %v2122 = vsel %vm479, %v2048, 0
        %v2125 = vsel %vm479, %v2049, 0
        %v2128 = vsel %vm479, %v2050, 0
        %v2131 = vsel %vm479, %v2051, 0
        %2133 = vmatpush.bf16.msra.mxu0 0
        %2134 = vmatpush.bf16.msra.mxu0 0
        %2135 = vmatpush.bf16.msra.mxu0 0
        %2136 = vmatpush.bf16.msra.mxu0 0
        %2137 = vmatpush.bf16.msra.mxu0 %v2080
        %2138 = vmatpush.bf16.msra.mxu0 %v2079
        %2139 = vmatpush.bf16.msra.mxu0 %v2078
        %2140 = vmatpush.bf16.msra.mxu0 %v2077
        %2141 = vmatmul.bf16.gmra.mxu0 %v2086
        %v2142 = vpop.f32.mrf.mxu0
        %v2143 = vadd.f32 0.0, %v2142
        %v2144 = vpop.f32.mrf.mxu0
        %v2145 = vadd.f32 0.0, %v2144
        %2146 = vmatmul.bf16.gmra.mxu0 %v2089
        %v2147 = vpop.f32.mrf.mxu0
        %v2148 = vadd.f32 0.0, %v2147
        %v2149 = vpop.f32.mrf.mxu0
        %v2150 = vadd.f32 0.0, %v2149
        %2151 = vmatmul.bf16.gmra.mxu0 %v2092
        %v2152 = vpop.f32.mrf.mxu0
        %v2153 = vadd.f32 0.0, %v2152
        %v2154 = vpop.f32.mrf.mxu0
        %v2155 = vadd.f32 0.0, %v2154
        %2156 = vmatmul.bf16.gmra.mxu0 %v2095
        %v2157 = vpop.f32.mrf.mxu0
        %v2158 = vadd.f32 0.0, %v2157
        %v2159 = vpop.f32.mrf.mxu0
        %v2160 = vadd.f32 0.0, %v2159
        %2161 = vmatmul.bf16.gmra.mxu0 %v2098
        %v2162 = vpop.f32.mrf.mxu0
        %v2163 = vadd.f32 0.0, %v2162
        %v2164 = vpop.f32.mrf.mxu0
        %v2165 = vadd.f32 0.0, %v2164
        %2166 = vmatmul.bf16.gmra.mxu0 %v2101
        %v2167 = vpop.f32.mrf.mxu0
        %v2168 = vadd.f32 0.0, %v2167
        %v2169 = vpop.f32.mrf.mxu0
        %v2170 = vadd.f32 0.0, %v2169
        %2171 = vmatmul.bf16.gmra.mxu0 %v2104
        %v2172 = vpop.f32.mrf.mxu0
        %v2173 = vadd.f32 0.0, %v2172
        %v2174 = vpop.f32.mrf.mxu0
        %v2175 = vadd.f32 0.0, %v2174
        %2176 = vmatmul.bf16.gmra.mxu0 %v2107
        %v2177 = vpop.f32.mrf.mxu0
        %v2178 = vadd.f32 0.0, %v2177
        %v2179 = vpop.f32.mrf.mxu0
        %v2180 = vadd.f32 0.0, %v2179
        %2181 = vmatmul.bf16.gmra.mxu0 %v2110
        %v2182 = vpop.f32.mrf.mxu0
        %v2183 = vadd.f32 0.0, %v2182
        %v2184 = vpop.f32.mrf.mxu0
        %v2185 = vadd.f32 0.0, %v2184
        %2186 = vmatmul.bf16.gmra.mxu0 %v2113
        %v2187 = vpop.f32.mrf.mxu0
        %v2188 = vadd.f32 0.0, %v2187
        %v2189 = vpop.f32.mrf.mxu0
        %v2190 = vadd.f32 0.0, %v2189
        %2191 = vmatmul.bf16.gmra.mxu0 %v2116
        %v2192 = vpop.f32.mrf.mxu0
        %v2193 = vadd.f32 0.0, %v2192
        %v2194 = vpop.f32.mrf.mxu0
        %v2195 = vadd.f32 0.0, %v2194
        %2196 = vmatmul.bf16.gmra.mxu0 %v2119
        %v2197 = vpop.f32.mrf.mxu0
        %v2198 = vadd.f32 0.0, %v2197
        %v2199 = vpop.f32.mrf.mxu0
        %v2200 = vadd.f32 0.0, %v2199
        %2201 = vmatmul.bf16.gmra.mxu0 %v2122
        %v2202 = vpop.f32.mrf.mxu0
        %v2203 = vadd.f32 0.0, %v2202
        %v2204 = vpop.f32.mrf.mxu0
        %v2205 = vadd.f32 0.0, %v2204
        %2206 = vmatmul.bf16.gmra.mxu0 %v2125
        %v2207 = vpop.f32.mrf.mxu0
        %v2208 = vadd.f32 0.0, %v2207
        %v2209 = vpop.f32.mrf.mxu0
        %v2210 = vadd.f32 0.0, %v2209
        %2211 = vmatmul.bf16.gmra.mxu0 %v2128
        %v2212 = vpop.f32.mrf.mxu0
        %v2213 = vadd.f32 0.0, %v2212
        %v2214 = vpop.f32.mrf.mxu0
        %v2215 = vadd.f32 0.0, %v2214
        %2216 = vmatmul.bf16.gmra.mxu0 %v2131
        %v2217 = vpop.f32.mrf.mxu0
        %v2218 = vadd.f32 0.0, %v2217
        %v2219 = vpop.f32.mrf.mxu0
        %v2220 = vadd.f32 0.0, %v2219
        %2221 = vdwg.mxu0
        %v2222 = vadd.f32 %v1971, %v2143
        %v2223 = vadd.f32 %v1972, %v2145
        %v2224 = vadd.f32 %v1973, %v2148
        %v2225 = vadd.f32 %v1974, %v2150
        %v2226 = vadd.f32 %v1975, %v2153
        %v2227 = vadd.f32 %v1976, %v2155
        %v2228 = vadd.f32 %v1977, %v2158
        %v2229 = vadd.f32 %v1978, %v2160
        %v2230 = vadd.f32 %v1979, %v2163
        %v2231 = vadd.f32 %v1980, %v2165
        %v2232 = vadd.f32 %v1981, %v2168
        %v2233 = vadd.f32 %v1982, %v2170
        %v2234 = vadd.f32 %v1983, %v2173
        %v2235 = vadd.f32 %v1984, %v2175
        %v2236 = vadd.f32 %v1985, %v2178
        %v2237 = vadd.f32 %v1986, %v2180
        %v2238 = vadd.f32 %v1987, %v2183
        %v2239 = vadd.f32 %v1988, %v2185
        %v2240 = vadd.f32 %v1989, %v2188
        %v2241 = vadd.f32 %v1990, %v2190
        %v2242 = vadd.f32 %v1991, %v2193
        %v2243 = vadd.f32 %v1992, %v2195
        %v2244 = vadd.f32 %v1993, %v2198
        %v2245 = vadd.f32 %v1994, %v2200
        %v2246 = vadd.f32 %v1995, %v2203
        %v2247 = vadd.f32 %v1996, %v2205
        %v2248 = vadd.f32 %v1997, %v2208
        %v2249 = vadd.f32 %v1998, %v2210
        %v2250 = vadd.f32 %v1999, %v2213
        %v2251 = vadd.f32 %v2000, %v2215
        %v2252 = vadd.f32 %v2001, %v2218
        %v2253 = vadd.f32 %v2002, %v2220
        %v2254 = vld [vmem:[%s2003 + $0x1] sm:$0xff]
        %v2255 = vld [vmem:[%s2003 + $0x9] sm:$0xff]
        %v2256 = vld [vmem:[%s2003 + $0x19] sm:$0xff]
        %v2257 = vld [vmem:[%s2003 + $0x21] sm:$0xff]
        %v2258 = vld [vmem:[%s2003 + $0x31] sm:$0xff]
        %v2259 = vld [vmem:[%s2003 + $0x39] sm:$0xff]
        %v2260 = vld [vmem:[%s2003 + $0x49] sm:$0xff]
        %v2261 = vld [vmem:[%s2003 + $0x51] sm:$0xff]
        %v2262 = vld [vmem:[%s2003 + $0x61] sm:$0xff]
        %v2263 = vld [vmem:[%s2003 + $0x69] sm:$0xff]
        %v2264 = vld [vmem:[%s2003 + $0x79] sm:$0xff]
        %v2265 = vld [vmem:[%s2003 + $0x81] sm:$0xff]
        %v2266 = vld [vmem:[%s2003 + $0x91] sm:$0xff]
        %v2267 = vld [vmem:[%s2003 + $0x99] sm:$0xff]
        %v2268 = vld [vmem:[%s2003 + $0xa9] sm:$0xff]
        %v2269 = vld [vmem:[%s2003 + $0xb1] sm:$0xff]
        %v2270 = vld [vmem:[%s2003 + $0xc1] sm:$0xff]
        %v2271 = vld [vmem:[%s2003 + $0xc9] sm:$0xff]
        %v2272 = vld [vmem:[%s2003 + $0xd9] sm:$0xff]
        %v2273 = vld [vmem:[%s2003 + $0xe1] sm:$0xff]
        %v2274 = vld [vmem:[%s2003 + $0xf1] sm:$0xff]
        %v2275 = vld [vmem:[%s2003 + $0xf9] sm:$0xff]
        %v2276 = vld [vmem:[%s2003 + $0x109] sm:$0xff]
        %v2277 = vld [vmem:[%s2003 + $0x111] sm:$0xff]
        %v2278 = vld [vmem:[%s2003 + $0x121] sm:$0xff]
        %v2279 = vld [vmem:[%s2003 + $0x129] sm:$0xff]
        %v2280 = vld [vmem:[%s2003 + $0x139] sm:$0xff]
        %v2281 = vld [vmem:[%s2003 + $0x141] sm:$0xff]
        %v2282 = vld [vmem:[%s2003 + $0x151] sm:$0xff]
        %v2283 = vld [vmem:[%s2003 + $0x159] sm:$0xff]
        %v2284 = vld [vmem:[%s2003 + $0x169] sm:$0xff]
        %v2285 = vld [vmem:[%s2003 + $0x171] sm:$0xff]
        %v2286 = vpack.c.bf16 %v2255, %v2254
        %v2287 = vpack.c.bf16 %v2257, %v2256
        %v2288 = vpack.c.bf16 %v2259, %v2258
        %v2289 = vpack.c.bf16 %v2261, %v2260
        %v2290 = vpack.c.bf16 %v2263, %v2262
        %v2291 = vpack.c.bf16 %v2265, %v2264
        %v2292 = vpack.c.bf16 %v2267, %v2266
        %v2293 = vpack.c.bf16 %v2269, %v2268
        %v2294 = vpack.c.bf16 %v2271, %v2270
        %v2295 = vpack.c.bf16 %v2273, %v2272
        %v2296 = vpack.c.bf16 %v2275, %v2274
        %v2297 = vpack.c.bf16 %v2277, %v2276
        %v2298 = vpack.c.bf16 %v2279, %v2278
        %v2299 = vpack.c.bf16 %v2281, %v2280
        %v2300 = vpack.c.bf16 %v2283, %v2282
        %v2301 = vpack.c.bf16 %v2285, %v2284
        %s2302 = scalar_lea.vmem [#allocation7], 224
        %v2303 = vld [vmem:[%s2302] sm:$0xf]
        %v2304 = vld [vmem:[%s2302 + $0x4] sm:$0xf]
        %v2305 = vld [vmem:[%s2302 + $0x8] sm:$0xf]
        %v2306 = vld [vmem:[%s2302 + $0xc] sm:$0xf]
        %v2307 = vld [vmem:[%s2302 + $0x10] sm:$0xf]
        %v2308 = vld [vmem:[%s2302 + $0x14] sm:$0xf]
        %v2309 = vld [vmem:[%s2302 + $0x18] sm:$0xf]
        %v2310 = vld [vmem:[%s2302 + $0x1c] sm:$0xf]
        %v2319 = vunpack.c.l.b16 %v2303
        %v2320 = vunpack.c.l.b16 %v2304
        %v2321 = vunpack.c.l.b16 %v2305
        %v2322 = vunpack.c.l.b16 %v2306
        %v2323 = vunpack.c.l.b16 %v2307
        %v2324 = vunpack.c.l.b16 %v2308
        %v2325 = vunpack.c.l.b16 %v2309
        %v2326 = vunpack.c.l.b16 %v2310
        %v2327 = vpack.c.b16 %v2320, %v2319
        %v2328 = vpack.c.b16 %v2322, %v2321
        %v2329 = vpack.c.b16 %v2324, %v2323
        %v2330 = vpack.c.b16 %v2326, %v2325
        %v2336 = vsel %vm479, %v2286, 0
        %v2339 = vsel %vm479, %v2287, 0
        %v2342 = vsel %vm479, %v2288, 0
        %v2345 = vsel %vm479, %v2289, 0
        %v2348 = vsel %vm479, %v2290, 0
        %v2351 = vsel %vm479, %v2291, 0
        %v2354 = vsel %vm479, %v2292, 0
        %v2357 = vsel %vm479, %v2293, 0
        %v2360 = vsel %vm479, %v2294, 0
        %v2363 = vsel %vm479, %v2295, 0
        %v2366 = vsel %vm479, %v2296, 0
        %v2369 = vsel %vm479, %v2297, 0
        %v2372 = vsel %vm479, %v2298, 0
        %v2375 = vsel %vm479, %v2299, 0
        %v2378 = vsel %vm479, %v2300, 0
        %v2381 = vsel %vm479, %v2301, 0
        %2383 = vmatpush.bf16.msra.mxu0 0
        %2384 = vmatpush.bf16.msra.mxu0 0
        %2385 = vmatpush.bf16.msra.mxu0 0
        %2386 = vmatpush.bf16.msra.mxu0 0
        %2387 = vmatpush.bf16.msra.mxu0 %v2330
        %2388 = vmatpush.bf16.msra.mxu0 %v2329
        %2389 = vmatpush.bf16.msra.mxu0 %v2328
        %2390 = vmatpush.bf16.msra.mxu0 %v2327
        %2391 = vmatmul.bf16.gmra.mxu0 %v2336
        %v2392 = vpop.f32.mrf.mxu0
        %v2393 = vadd.f32 0.0, %v2392
        %v2394 = vpop.f32.mrf.mxu0
        %v2395 = vadd.f32 0.0, %v2394
        %2396 = vmatmul.bf16.gmra.mxu0 %v2339
        %v2397 = vpop.f32.mrf.mxu0
        %v2398 = vadd.f32 0.0, %v2397
        %v2399 = vpop.f32.mrf.mxu0
        %v2400 = vadd.f32 0.0, %v2399
        %2401 = vmatmul.bf16.gmra.mxu0 %v2342
        %v2402 = vpop.f32.mrf.mxu0
        %v2403 = vadd.f32 0.0, %v2402
        %v2404 = vpop.f32.mrf.mxu0
        %v2405 = vadd.f32 0.0, %v2404
        %2406 = vmatmul.bf16.gmra.mxu0 %v2345
        %v2407 = vpop.f32.mrf.mxu0
        %v2408 = vadd.f32 0.0, %v2407
        %v2409 = vpop.f32.mrf.mxu0
        %v2410 = vadd.f32 0.0, %v2409
        %2411 = vmatmul.bf16.gmra.mxu0 %v2348
        %v2412 = vpop.f32.mrf.mxu0
        %v2413 = vadd.f32 0.0, %v2412
        %v2414 = vpop.f32.mrf.mxu0
        %v2415 = vadd.f32 0.0, %v2414
        %2416 = vmatmul.bf16.gmra.mxu0 %v2351
        %v2417 = vpop.f32.mrf.mxu0
        %v2418 = vadd.f32 0.0, %v2417
        %v2419 = vpop.f32.mrf.mxu0
        %v2420 = vadd.f32 0.0, %v2419
        %2421 = vmatmul.bf16.gmra.mxu0 %v2354
        %v2422 = vpop.f32.mrf.mxu0
        %v2423 = vadd.f32 0.0, %v2422
        %v2424 = vpop.f32.mrf.mxu0
        %v2425 = vadd.f32 0.0, %v2424
        %2426 = vmatmul.bf16.gmra.mxu0 %v2357
        %v2427 = vpop.f32.mrf.mxu0
        %v2428 = vadd.f32 0.0, %v2427
        %v2429 = vpop.f32.mrf.mxu0
        %v2430 = vadd.f32 0.0, %v2429
        %2431 = vmatmul.bf16.gmra.mxu0 %v2360
        %v2432 = vpop.f32.mrf.mxu0
        %v2433 = vadd.f32 0.0, %v2432
        %v2434 = vpop.f32.mrf.mxu0
        %v2435 = vadd.f32 0.0, %v2434
        %2436 = vmatmul.bf16.gmra.mxu0 %v2363
        %v2437 = vpop.f32.mrf.mxu0
        %v2438 = vadd.f32 0.0, %v2437
        %v2439 = vpop.f32.mrf.mxu0
        %v2440 = vadd.f32 0.0, %v2439
        %2441 = vmatmul.bf16.gmra.mxu0 %v2366
        %v2442 = vpop.f32.mrf.mxu0
        %v2443 = vadd.f32 0.0, %v2442
        %v2444 = vpop.f32.mrf.mxu0
        %v2445 = vadd.f32 0.0, %v2444
        %2446 = vmatmul.bf16.gmra.mxu0 %v2369
        %v2447 = vpop.f32.mrf.mxu0
        %v2448 = vadd.f32 0.0, %v2447
        %v2449 = vpop.f32.mrf.mxu0
        %v2450 = vadd.f32 0.0, %v2449
        %2451 = vmatmul.bf16.gmra.mxu0 %v2372
        %v2452 = vpop.f32.mrf.mxu0
        %v2453 = vadd.f32 0.0, %v2452
        %v2454 = vpop.f32.mrf.mxu0
        %v2455 = vadd.f32 0.0, %v2454
        %2456 = vmatmul.bf16.gmra.mxu0 %v2375
        %v2457 = vpop.f32.mrf.mxu0
        %v2458 = vadd.f32 0.0, %v2457
        %v2459 = vpop.f32.mrf.mxu0
        %v2460 = vadd.f32 0.0, %v2459
        %2461 = vmatmul.bf16.gmra.mxu0 %v2378
        %v2462 = vpop.f32.mrf.mxu0
        %v2463 = vadd.f32 0.0, %v2462
        %v2464 = vpop.f32.mrf.mxu0
        %v2465 = vadd.f32 0.0, %v2464
        %2466 = vmatmul.bf16.gmra.mxu0 %v2381
        %v2467 = vpop.f32.mrf.mxu0
        %v2468 = vadd.f32 0.0, %v2467
        %v2469 = vpop.f32.mrf.mxu0
        %v2470 = vadd.f32 0.0, %v2469
        %2471 = vdwg.mxu0
        %v2472 = vadd.f32 %v2222, %v2393
        %v2473 = vadd.f32 %v2223, %v2395
        %v2474 = vadd.f32 %v2224, %v2398
        %v2475 = vadd.f32 %v2225, %v2400
        %v2476 = vadd.f32 %v2226, %v2403
        %v2477 = vadd.f32 %v2227, %v2405
        %v2478 = vadd.f32 %v2228, %v2408
        %v2479 = vadd.f32 %v2229, %v2410
        %v2480 = vadd.f32 %v2230, %v2413
        %v2481 = vadd.f32 %v2231, %v2415
        %v2482 = vadd.f32 %v2232, %v2418
        %v2483 = vadd.f32 %v2233, %v2420
        %v2484 = vadd.f32 %v2234, %v2423
        %v2485 = vadd.f32 %v2235, %v2425
        %v2486 = vadd.f32 %v2236, %v2428
        %v2487 = vadd.f32 %v2237, %v2430
        %v2488 = vadd.f32 %v2238, %v2433
        %v2489 = vadd.f32 %v2239, %v2435
        %v2490 = vadd.f32 %v2240, %v2438
        %v2491 = vadd.f32 %v2241, %v2440
        %v2492 = vadd.f32 %v2242, %v2443
        %v2493 = vadd.f32 %v2243, %v2445
        %v2494 = vadd.f32 %v2244, %v2448
        %v2495 = vadd.f32 %v2245, %v2450
        %v2496 = vadd.f32 %v2246, %v2453
        %v2497 = vadd.f32 %v2247, %v2455
        %v2498 = vadd.f32 %v2248, %v2458
        %v2499 = vadd.f32 %v2249, %v2460
        %v2500 = vadd.f32 %v2250, %v2463
        %v2501 = vadd.f32 %v2251, %v2465
        %v2502 = vadd.f32 %v2252, %v2468
        %v2503 = vadd.f32 %v2253, %v2470
        %v2504 = vld [vmem:[%s2003 + $0x2] sm:$0xff]
        %v2505 = vld [vmem:[%s2003 + $0xa] sm:$0xff]
        %v2506 = vld [vmem:[%s2003 + $0x1a] sm:$0xff]
        %v2507 = vld [vmem:[%s2003 + $0x22] sm:$0xff]
        %v2508 = vld [vmem:[%s2003 + $0x32] sm:$0xff]
        %v2509 = vld [vmem:[%s2003 + $0x3a] sm:$0xff]
        %v2510 = vld [vmem:[%s2003 + $0x4a] sm:$0xff]
        %v2511 = vld [vmem:[%s2003 + $0x52] sm:$0xff]
        %v2512 = vld [vmem:[%s2003 + $0x62] sm:$0xff]
        %v2513 = vld [vmem:[%s2003 + $0x6a] sm:$0xff]
        %v2514 = vld [vmem:[%s2003 + $0x7a] sm:$0xff]
        %v2515 = vld [vmem:[%s2003 + $0x82] sm:$0xff]
        %v2516 = vld [vmem:[%s2003 + $0x92] sm:$0xff]
        %v2517 = vld [vmem:[%s2003 + $0x9a] sm:$0xff]
        %v2518 = vld [vmem:[%s2003 + $0xaa] sm:$0xff]
        %v2519 = vld [vmem:[%s2003 + $0xb2] sm:$0xff]
        %v2520 = vld [vmem:[%s2003 + $0xc2] sm:$0xff]
        %v2521 = vld [vmem:[%s2003 + $0xca] sm:$0xff]
        %v2522 = vld [vmem:[%s2003 + $0xda] sm:$0xff]
        %v2523 = vld [vmem:[%s2003 + $0xe2] sm:$0xff]
        %v2524 = vld [vmem:[%s2003 + $0xf2] sm:$0xff]
        %v2525 = vld [vmem:[%s2003 + $0xfa] sm:$0xff]
        %v2526 = vld [vmem:[%s2003 + $0x10a] sm:$0xff]
        %v2527 = vld [vmem:[%s2003 + $0x112] sm:$0xff]
        %v2528 = vld [vmem:[%s2003 + $0x122] sm:$0xff]
        %v2529 = vld [vmem:[%s2003 + $0x12a] sm:$0xff]
        %v2530 = vld [vmem:[%s2003 + $0x13a] sm:$0xff]
        %v2531 = vld [vmem:[%s2003 + $0x142] sm:$0xff]
        %v2532 = vld [vmem:[%s2003 + $0x152] sm:$0xff]
        %v2533 = vld [vmem:[%s2003 + $0x15a] sm:$0xff]
        %v2534 = vld [vmem:[%s2003 + $0x16a] sm:$0xff]
        %v2535 = vld [vmem:[%s2003 + $0x172] sm:$0xff]
        %v2536 = vpack.c.bf16 %v2505, %v2504
        %v2537 = vpack.c.bf16 %v2507, %v2506
        %v2538 = vpack.c.bf16 %v2509, %v2508
        %v2539 = vpack.c.bf16 %v2511, %v2510
        %v2540 = vpack.c.bf16 %v2513, %v2512
        %v2541 = vpack.c.bf16 %v2515, %v2514
        %v2542 = vpack.c.bf16 %v2517, %v2516
        %v2543 = vpack.c.bf16 %v2519, %v2518
        %v2544 = vpack.c.bf16 %v2521, %v2520
        %v2545 = vpack.c.bf16 %v2523, %v2522
        %v2546 = vpack.c.bf16 %v2525, %v2524
        %v2547 = vpack.c.bf16 %v2527, %v2526
        %v2548 = vpack.c.bf16 %v2529, %v2528
        %v2549 = vpack.c.bf16 %v2531, %v2530
        %v2550 = vpack.c.bf16 %v2533, %v2532
        %v2551 = vpack.c.bf16 %v2535, %v2534
        %s2552 = scalar_lea.vmem [#allocation7], 256
        %v2553 = vld [vmem:[%s2552] sm:$0xf]
        %v2554 = vld [vmem:[%s2552 + $0x4] sm:$0xf]
        %v2555 = vld [vmem:[%s2552 + $0x8] sm:$0xf]
        %v2556 = vld [vmem:[%s2552 + $0xc] sm:$0xf]
        %v2557 = vld [vmem:[%s2552 + $0x10] sm:$0xf]
        %v2558 = vld [vmem:[%s2552 + $0x14] sm:$0xf]
        %v2559 = vld [vmem:[%s2552 + $0x18] sm:$0xf]
        %v2560 = vld [vmem:[%s2552 + $0x1c] sm:$0xf]
        %v2569 = vunpack.c.l.b16 %v2553
        %v2570 = vunpack.c.l.b16 %v2554
        %v2571 = vunpack.c.l.b16 %v2555
        %v2572 = vunpack.c.l.b16 %v2556
        %v2573 = vunpack.c.l.b16 %v2557
        %v2574 = vunpack.c.l.b16 %v2558
        %v2575 = vunpack.c.l.b16 %v2559
        %v2576 = vunpack.c.l.b16 %v2560
        %v2577 = vpack.c.b16 %v2570, %v2569
        %v2578 = vpack.c.b16 %v2572, %v2571
        %v2579 = vpack.c.b16 %v2574, %v2573
        %v2580 = vpack.c.b16 %v2576, %v2575
        %v2586 = vsel %vm479, %v2536, 0
        %v2589 = vsel %vm479, %v2537, 0
        %v2592 = vsel %vm479, %v2538, 0
        %v2595 = vsel %vm479, %v2539, 0
        %v2598 = vsel %vm479, %v2540, 0
        %v2601 = vsel %vm479, %v2541, 0
        %v2604 = vsel %vm479, %v2542, 0
        %v2607 = vsel %vm479, %v2543, 0
        %v2610 = vsel %vm479, %v2544, 0
        %v2613 = vsel %vm479, %v2545, 0
        %v2616 = vsel %vm479, %v2546, 0
        %v2619 = vsel %vm479, %v2547, 0
        %v2622 = vsel %vm479, %v2548, 0
        %v2625 = vsel %vm479, %v2549, 0
        %v2628 = vsel %vm479, %v2550, 0
        %v2631 = vsel %vm479, %v2551, 0
        %2633 = vmatpush.bf16.msra.mxu0 0
        %2634 = vmatpush.bf16.msra.mxu0 0
        %2635 = vmatpush.bf16.msra.mxu0 0
        %2636 = vmatpush.bf16.msra.mxu0 0
        %2637 = vmatpush.bf16.msra.mxu0 %v2580
        %2638 = vmatpush.bf16.msra.mxu0 %v2579
        %2639 = vmatpush.bf16.msra.mxu0 %v2578
        %2640 = vmatpush.bf16.msra.mxu0 %v2577
        %2641 = vmatmul.bf16.gmra.mxu0 %v2586
        %v2642 = vpop.f32.mrf.mxu0
        %v2643 = vadd.f32 0.0, %v2642
        %v2644 = vpop.f32.mrf.mxu0
        %v2645 = vadd.f32 0.0, %v2644
        %2646 = vmatmul.bf16.gmra.mxu0 %v2589
        %v2647 = vpop.f32.mrf.mxu0
        %v2648 = vadd.f32 0.0, %v2647
        %v2649 = vpop.f32.mrf.mxu0
        %v2650 = vadd.f32 0.0, %v2649
        %2651 = vmatmul.bf16.gmra.mxu0 %v2592
        %v2652 = vpop.f32.mrf.mxu0
        %v2653 = vadd.f32 0.0, %v2652
        %v2654 = vpop.f32.mrf.mxu0
        %v2655 = vadd.f32 0.0, %v2654
        %2656 = vmatmul.bf16.gmra.mxu0 %v2595
        %v2657 = vpop.f32.mrf.mxu0
        %v2658 = vadd.f32 0.0, %v2657
        %v2659 = vpop.f32.mrf.mxu0
        %v2660 = vadd.f32 0.0, %v2659
        %2661 = vmatmul.bf16.gmra.mxu0 %v2598
        %v2662 = vpop.f32.mrf.mxu0
        %v2663 = vadd.f32 0.0, %v2662
        %v2664 = vpop.f32.mrf.mxu0
        %v2665 = vadd.f32 0.0, %v2664
        %2666 = vmatmul.bf16.gmra.mxu0 %v2601
        %v2667 = vpop.f32.mrf.mxu0
        %v2668 = vadd.f32 0.0, %v2667
        %v2669 = vpop.f32.mrf.mxu0
        %v2670 = vadd.f32 0.0, %v2669
        %2671 = vmatmul.bf16.gmra.mxu0 %v2604
        %v2672 = vpop.f32.mrf.mxu0
        %v2673 = vadd.f32 0.0, %v2672
        %v2674 = vpop.f32.mrf.mxu0
        %v2675 = vadd.f32 0.0, %v2674
        %2676 = vmatmul.bf16.gmra.mxu0 %v2607
        %v2677 = vpop.f32.mrf.mxu0
        %v2678 = vadd.f32 0.0, %v2677
        %v2679 = vpop.f32.mrf.mxu0
        %v2680 = vadd.f32 0.0, %v2679
        %2681 = vmatmul.bf16.gmra.mxu0 %v2610
        %v2682 = vpop.f32.mrf.mxu0
        %v2683 = vadd.f32 0.0, %v2682
        %v2684 = vpop.f32.mrf.mxu0
        %v2685 = vadd.f32 0.0, %v2684
        %2686 = vmatmul.bf16.gmra.mxu0 %v2613
        %v2687 = vpop.f32.mrf.mxu0
        %v2688 = vadd.f32 0.0, %v2687
        %v2689 = vpop.f32.mrf.mxu0
        %v2690 = vadd.f32 0.0, %v2689
        %2691 = vmatmul.bf16.gmra.mxu0 %v2616
        %v2692 = vpop.f32.mrf.mxu0
        %v2693 = vadd.f32 0.0, %v2692
        %v2694 = vpop.f32.mrf.mxu0
        %v2695 = vadd.f32 0.0, %v2694
        %2696 = vmatmul.bf16.gmra.mxu0 %v2619
        %v2697 = vpop.f32.mrf.mxu0
        %v2698 = vadd.f32 0.0, %v2697
        %v2699 = vpop.f32.mrf.mxu0
        %v2700 = vadd.f32 0.0, %v2699
        %2701 = vmatmul.bf16.gmra.mxu0 %v2622
        %v2702 = vpop.f32.mrf.mxu0
        %v2703 = vadd.f32 0.0, %v2702
        %v2704 = vpop.f32.mrf.mxu0
        %v2705 = vadd.f32 0.0, %v2704
        %2706 = vmatmul.bf16.gmra.mxu0 %v2625
        %v2707 = vpop.f32.mrf.mxu0
        %v2708 = vadd.f32 0.0, %v2707
        %v2709 = vpop.f32.mrf.mxu0
        %v2710 = vadd.f32 0.0, %v2709
        %2711 = vmatmul.bf16.gmra.mxu0 %v2628
        %v2712 = vpop.f32.mrf.mxu0
        %v2713 = vadd.f32 0.0, %v2712
        %v2714 = vpop.f32.mrf.mxu0
        %v2715 = vadd.f32 0.0, %v2714
        %2716 = vmatmul.bf16.gmra.mxu0 %v2631
        %v2717 = vpop.f32.mrf.mxu0
        %v2718 = vadd.f32 0.0, %v2717
        %v2719 = vpop.f32.mrf.mxu0
        %v2720 = vadd.f32 0.0, %v2719
        %2721 = vdwg.mxu0
        %v2722 = vadd.f32 %v2472, %v2643
        %v2723 = vadd.f32 %v2473, %v2645
        %v2724 = vadd.f32 %v2474, %v2648
        %v2725 = vadd.f32 %v2475, %v2650
        %v2726 = vadd.f32 %v2476, %v2653
        %v2727 = vadd.f32 %v2477, %v2655
        %v2728 = vadd.f32 %v2478, %v2658
        %v2729 = vadd.f32 %v2479, %v2660
        %v2730 = vadd.f32 %v2480, %v2663
        %v2731 = vadd.f32 %v2481, %v2665
        %v2732 = vadd.f32 %v2482, %v2668
        %v2733 = vadd.f32 %v2483, %v2670
        %v2734 = vadd.f32 %v2484, %v2673
        %v2735 = vadd.f32 %v2485, %v2675
        %v2736 = vadd.f32 %v2486, %v2678
        %v2737 = vadd.f32 %v2487, %v2680
        %v2738 = vadd.f32 %v2488, %v2683
        %v2739 = vadd.f32 %v2489, %v2685
        %v2740 = vadd.f32 %v2490, %v2688
        %v2741 = vadd.f32 %v2491, %v2690
        %v2742 = vadd.f32 %v2492, %v2693
        %v2743 = vadd.f32 %v2493, %v2695
        %v2744 = vadd.f32 %v2494, %v2698
        %v2745 = vadd.f32 %v2495, %v2700
        %v2746 = vadd.f32 %v2496, %v2703
        %v2747 = vadd.f32 %v2497, %v2705
        %v2748 = vadd.f32 %v2498, %v2708
        %v2749 = vadd.f32 %v2499, %v2710
        %v2750 = vadd.f32 %v2500, %v2713
        %v2751 = vadd.f32 %v2501, %v2715
        %v2752 = vadd.f32 %v2502, %v2718
        %v2753 = vadd.f32 %v2503, %v2720
        %v2754 = vld [vmem:[#allocation9] sm:$0x1]
        %v2755 = vperm.slane %v2754, 0
        %v2756 = vmul.f32 %v2722, %v2755
        %v2757 = vmul.f32 %v2723, %v2755
        %v2758 = vmul.f32 %v2724, %v2755
        %v2759 = vmul.f32 %v2725, %v2755
        %v2760 = vmul.f32 %v2726, %v2755
        %v2761 = vmul.f32 %v2727, %v2755
        %v2762 = vmul.f32 %v2728, %v2755
        %v2763 = vmul.f32 %v2729, %v2755
        %v2764 = vmul.f32 %v2730, %v2755
        %v2765 = vmul.f32 %v2731, %v2755
        %v2766 = vmul.f32 %v2732, %v2755
        %v2767 = vmul.f32 %v2733, %v2755
        %v2768 = vmul.f32 %v2734, %v2755
        %v2769 = vmul.f32 %v2735, %v2755
        %v2770 = vmul.f32 %v2736, %v2755
        %v2771 = vmul.f32 %v2737, %v2755
        %v2772 = vmul.f32 %v2738, %v2755
        %v2773 = vmul.f32 %v2739, %v2755
        %v2774 = vmul.f32 %v2740, %v2755
        %v2775 = vmul.f32 %v2741, %v2755
        %v2776 = vmul.f32 %v2742, %v2755
        %v2777 = vmul.f32 %v2743, %v2755
        %v2778 = vmul.f32 %v2744, %v2755
        %v2779 = vmul.f32 %v2745, %v2755
        %v2780 = vmul.f32 %v2746, %v2755
        %v2781 = vmul.f32 %v2747, %v2755
        %v2782 = vmul.f32 %v2748, %v2755
        %v2783 = vmul.f32 %v2749, %v2755
        %v2784 = vmul.f32 %v2750, %v2755
        %v2785 = vmul.f32 %v2751, %v2755
        %v2786 = vmul.f32 %v2752, %v2755
        %v2787 = vmul.f32 %v2753, %v2755
        %v2788 = vld [vmem:[#allocation9 + $0x1] sm:$0x1]
        %v2789 = vperm.slane %v2788, 0
        %v2790 = vadd.f32 %v2756, %v2789
        %v2791 = vadd.f32 %v2757, %v2789
        %v2792 = vadd.f32 %v2758, %v2789
        %v2793 = vadd.f32 %v2759, %v2789
        %v2794 = vadd.f32 %v2760, %v2789
        %v2795 = vadd.f32 %v2761, %v2789
        %v2796 = vadd.f32 %v2762, %v2789
        %v2797 = vadd.f32 %v2763, %v2789
        %v2798 = vadd.f32 %v2764, %v2789
        %v2799 = vadd.f32 %v2765, %v2789
        %v2800 = vadd.f32 %v2766, %v2789
        %v2801 = vadd.f32 %v2767, %v2789
        %v2802 = vadd.f32 %v2768, %v2789
        %v2803 = vadd.f32 %v2769, %v2789
        %v2804 = vadd.f32 %v2770, %v2789
        %v2805 = vadd.f32 %v2771, %v2789
        %v2806 = vadd.f32 %v2772, %v2789
        %v2807 = vadd.f32 %v2773, %v2789
        %v2808 = vadd.f32 %v2774, %v2789
        %v2809 = vadd.f32 %v2775, %v2789
        %v2810 = vadd.f32 %v2776, %v2789
        %v2811 = vadd.f32 %v2777, %v2789
        %v2812 = vadd.f32 %v2778, %v2789
        %v2813 = vadd.f32 %v2779, %v2789
        %v2814 = vadd.f32 %v2780, %v2789
        %v2815 = vadd.f32 %v2781, %v2789
        %v2816 = vadd.f32 %v2782, %v2789
        %v2817 = vadd.f32 %v2783, %v2789
        %v2818 = vadd.f32 %v2784, %v2789
        %v2819 = vadd.f32 %v2785, %v2789
        %v2820 = vadd.f32 %v2786, %v2789
        %v2821 = vadd.f32 %v2787, %v2789
        %vm2822 = vcmp.gt.f32.partialorder %v2790, 0.0
        %vm2823 = vcmp.gt.f32.partialorder %v2791, 0.0
        %vm2824 = vcmp.gt.f32.partialorder %v2792, 0.0
        %vm2825 = vcmp.gt.f32.partialorder %v2793, 0.0
        %vm2826 = vcmp.gt.f32.partialorder %v2794, 0.0
        %vm2827 = vcmp.gt.f32.partialorder %v2795, 0.0
        %vm2828 = vcmp.gt.f32.partialorder %v2796, 0.0
        %vm2829 = vcmp.gt.f32.partialorder %v2797, 0.0
        %vm2830 = vcmp.gt.f32.partialorder %v2798, 0.0
        %vm2831 = vcmp.gt.f32.partialorder %v2799, 0.0
        %vm2832 = vcmp.gt.f32.partialorder %v2800, 0.0
        %vm2833 = vcmp.gt.f32.partialorder %v2801, 0.0
        %vm2834 = vcmp.gt.f32.partialorder %v2802, 0.0
        %vm2835 = vcmp.gt.f32.partialorder %v2803, 0.0
        %vm2836 = vcmp.gt.f32.partialorder %v2804, 0.0
        %vm2837 = vcmp.gt.f32.partialorder %v2805, 0.0
        %vm2838 = vcmp.gt.f32.partialorder %v2806, 0.0
        %vm2839 = vcmp.gt.f32.partialorder %v2807, 0.0
        %vm2840 = vcmp.gt.f32.partialorder %v2808, 0.0
        %vm2841 = vcmp.gt.f32.partialorder %v2809, 0.0
        %vm2842 = vcmp.gt.f32.partialorder %v2810, 0.0
        %vm2843 = vcmp.gt.f32.partialorder %v2811, 0.0
        %vm2844 = vcmp.gt.f32.partialorder %v2812, 0.0
        %vm2845 = vcmp.gt.f32.partialorder %v2813, 0.0
        %vm2846 = vcmp.gt.f32.partialorder %v2814, 0.0
        %vm2847 = vcmp.gt.f32.partialorder %v2815, 0.0
        %vm2848 = vcmp.gt.f32.partialorder %v2816, 0.0
        %vm2849 = vcmp.gt.f32.partialorder %v2817, 0.0
        %vm2850 = vcmp.gt.f32.partialorder %v2818, 0.0
        %vm2851 = vcmp.gt.f32.partialorder %v2819, 0.0
        %vm2852 = vcmp.gt.f32.partialorder %v2820, 0.0
        %vm2853 = vcmp.gt.f32.partialorder %v2821, 0.0
        %v2854 = vld [vmem:[#allocation9 + $0x2] sm:$0x1]
        %v2855 = vperm.slane %v2854, 0
        %v2856 = vmul.f32 %v2790, %v2855
        %v2857 = vmul.f32 %v2791, %v2855
        %v2858 = vmul.f32 %v2792, %v2855
        %v2859 = vmul.f32 %v2793, %v2855
        %v2860 = vmul.f32 %v2794, %v2855
        %v2861 = vmul.f32 %v2795, %v2855
        %v2862 = vmul.f32 %v2796, %v2855
        %v2863 = vmul.f32 %v2797, %v2855
        %v2864 = vmul.f32 %v2798, %v2855
        %v2865 = vmul.f32 %v2799, %v2855
        %v2866 = vmul.f32 %v2800, %v2855
        %v2867 = vmul.f32 %v2801, %v2855
        %v2868 = vmul.f32 %v2802, %v2855
        %v2869 = vmul.f32 %v2803, %v2855
        %v2870 = vmul.f32 %v2804, %v2855
        %v2871 = vmul.f32 %v2805, %v2855
        %v2872 = vmul.f32 %v2806, %v2855
        %v2873 = vmul.f32 %v2807, %v2855
        %v2874 = vmul.f32 %v2808, %v2855
        %v2875 = vmul.f32 %v2809, %v2855
        %v2876 = vmul.f32 %v2810, %v2855
        %v2877 = vmul.f32 %v2811, %v2855
        %v2878 = vmul.f32 %v2812, %v2855
        %v2879 = vmul.f32 %v2813, %v2855
        %v2880 = vmul.f32 %v2814, %v2855
        %v2881 = vmul.f32 %v2815, %v2855
        %v2882 = vmul.f32 %v2816, %v2855
        %v2883 = vmul.f32 %v2817, %v2855
        %v2884 = vmul.f32 %v2818, %v2855
        %v2885 = vmul.f32 %v2819, %v2855
        %v2886 = vmul.f32 %v2820, %v2855
        %v2887 = vmul.f32 %v2821, %v2855
        %v2888 = vsel %vm2822, %v2790, %v2856
        %v2889 = vsel %vm2823, %v2791, %v2857
        %v2890 = vsel %vm2824, %v2792, %v2858
        %v2891 = vsel %vm2825, %v2793, %v2859
        %v2892 = vsel %vm2826, %v2794, %v2860
        %v2893 = vsel %vm2827, %v2795, %v2861
        %v2894 = vsel %vm2828, %v2796, %v2862
        %v2895 = vsel %vm2829, %v2797, %v2863
        %v2896 = vsel %vm2830, %v2798, %v2864
        %v2897 = vsel %vm2831, %v2799, %v2865
        %v2898 = vsel %vm2832, %v2800, %v2866
        %v2899 = vsel %vm2833, %v2801, %v2867
        %v2900 = vsel %vm2834, %v2802, %v2868
        %v2901 = vsel %vm2835, %v2803, %v2869
        %v2902 = vsel %vm2836, %v2804, %v2870
        %v2903 = vsel %vm2837, %v2805, %v2871
        %v2904 = vsel %vm2838, %v2806, %v2872
        %v2905 = vsel %vm2839, %v2807, %v2873
        %v2906 = vsel %vm2840, %v2808, %v2874
        %v2907 = vsel %vm2841, %v2809, %v2875
        %v2908 = vsel %vm2842, %v2810, %v2876
        %v2909 = vsel %vm2843, %v2811, %v2877
        %v2910 = vsel %vm2844, %v2812, %v2878
        %v2911 = vsel %vm2845, %v2813, %v2879
        %v2912 = vsel %vm2846, %v2814, %v2880
        %v2913 = vsel %vm2847, %v2815, %v2881
        %v2914 = vsel %vm2848, %v2816, %v2882
        %v2915 = vsel %vm2849, %v2817, %v2883
        %v2916 = vsel %vm2850, %v2818, %v2884
        %v2917 = vsel %vm2851, %v2819, %v2885
        %v2918 = vsel %vm2852, %v2820, %v2886
        %v2919 = vsel %vm2853, %v2821, %v2887
        %vm2920 = vcmask 31744
        %2921 = vst.msk [vmem:[#allocation3] sm:$0xff] %vm2920, 0.0
        %2922 = vst.msk [vmem:[#allocation3 + $0x8] sm:$0xff] %vm2920, 0.0
        %vm2923 = vcmask 25600
        %2924 = vst.msk [vmem:[#allocation3 + $0x10] sm:$0x3] %vm2923, 0.0
        %2925 = vst.msk [vmem:[#allocation3 + $0x18] sm:$0xff] %vm2920, 0.0
        %2926 = vst.msk [vmem:[#allocation3 + $0x20] sm:$0xff] %vm2920, 0.0
        %2927 = vst.msk [vmem:[#allocation3 + $0x28] sm:$0x3] %vm2923, 0.0
        %2928 = vst.msk [vmem:[#allocation3 + $0x30] sm:$0xff] %vm2920, 0.0
        %2929 = vst.msk [vmem:[#allocation3 + $0x38] sm:$0xff] %vm2920, 0.0
        %2930 = vst.msk [vmem:[#allocation3 + $0x40] sm:$0x3] %vm2923, 0.0
        %2931 = vst.msk [vmem:[#allocation3 + $0x48] sm:$0xff] %vm2920, 0.0
        %2932 = vst.msk [vmem:[#allocation3 + $0x50] sm:$0xff] %vm2920, 0.0
        %2933 = vst.msk [vmem:[#allocation3 + $0x58] sm:$0x3] %vm2923, 0.0
        %2934 = vst.msk [vmem:[#allocation3 + $0x60] sm:$0xff] %vm2920, 0.0
        %2935 = vst.msk [vmem:[#allocation3 + $0x68] sm:$0xff] %vm2920, 0.0
        %2936 = vst.msk [vmem:[#allocation3 + $0x70] sm:$0x3] %vm2923, 0.0
        %2937 = vst.msk [vmem:[#allocation3 + $0x78] sm:$0xff] %vm2920, 0.0
        %2938 = vst.msk [vmem:[#allocation3 + $0x80] sm:$0xff] %vm2920, 0.0
        %2939 = vst.msk [vmem:[#allocation3 + $0x88] sm:$0x3] %vm2923, 0.0
        %2940 = vst.msk [vmem:[#allocation3 + $0x90] sm:$0xff] %vm2920, 0.0
        %2941 = vst.msk [vmem:[#allocation3 + $0x98] sm:$0xff] %vm2920, 0.0
        %2942 = vst.msk [vmem:[#allocation3 + $0xa0] sm:$0x3] %vm2923, 0.0
        %2943 = vst.msk [vmem:[#allocation3 + $0xa8] sm:$0xff] %vm2920, 0.0
        %2944 = vst.msk [vmem:[#allocation3 + $0xb0] sm:$0xff] %vm2920, 0.0
        %2945 = vst.msk [vmem:[#allocation3 + $0xb8] sm:$0x3] %vm2923, 0.0
        %2946 = vst.msk [vmem:[#allocation3 + $0xc0] sm:$0xff] %vm2920, 0.0
        %2947 = vst.msk [vmem:[#allocation3 + $0xc8] sm:$0xff] %vm2920, 0.0
        %2948 = vst.msk [vmem:[#allocation3 + $0xd0] sm:$0x3] %vm2923, 0.0
        %2949 = vst.msk [vmem:[#allocation3 + $0xd8] sm:$0xff] %vm2920, 0.0
        %2950 = vst.msk [vmem:[#allocation3 + $0xe0] sm:$0xff] %vm2920, 0.0
        %2951 = vst.msk [vmem:[#allocation3 + $0xe8] sm:$0x3] %vm2923, 0.0
        %2952 = vst.msk [vmem:[#allocation3 + $0xf0] sm:$0xff] %vm2920, 0.0
        %2953 = vst.msk [vmem:[#allocation3 + $0xf8] sm:$0xff] %vm2920, 0.0
        %2954 = vst.msk [vmem:[#allocation3 + $0x100] sm:$0x3] %vm2923, 0.0
        %2955 = vst.msk [vmem:[#allocation3 + $0x108] sm:$0xff] %vm2920, 0.0
        %2956 = vst.msk [vmem:[#allocation3 + $0x110] sm:$0xff] %vm2920, 0.0
        %2957 = vst.msk [vmem:[#allocation3 + $0x118] sm:$0x3] %vm2923, 0.0
        %2958 = vst.msk [vmem:[#allocation3 + $0x120] sm:$0xff] %vm2920, 0.0
        %2959 = vst.msk [vmem:[#allocation3 + $0x128] sm:$0xff] %vm2920, 0.0
        %2960 = vst.msk [vmem:[#allocation3 + $0x130] sm:$0x3] %vm2923, 0.0
        %2961 = vst.msk [vmem:[#allocation3 + $0x138] sm:$0xff] %vm2920, 0.0
        %2962 = vst.msk [vmem:[#allocation3 + $0x140] sm:$0xff] %vm2920, 0.0
        %2963 = vst.msk [vmem:[#allocation3 + $0x148] sm:$0x3] %vm2923, 0.0
        %2964 = vst.msk [vmem:[#allocation3 + $0x150] sm:$0xff] %vm2920, 0.0
        %2965 = vst.msk [vmem:[#allocation3 + $0x158] sm:$0xff] %vm2920, 0.0
        %2966 = vst.msk [vmem:[#allocation3 + $0x160] sm:$0x3] %vm2923, 0.0
        %2967 = vst.msk [vmem:[#allocation3 + $0x168] sm:$0xff] %vm2920, 0.0
        %2968 = vst.msk [vmem:[#allocation3 + $0x170] sm:$0xff] %vm2920, 0.0
        %2969 = vst.msk [vmem:[#allocation3 + $0x178] sm:$0x3] %vm2923, 0.0
        %2970 = vst.msk [vmem:[#allocation3 + $0x180] sm:$0xff] %vm2920, 0.0
        %2971 = vst.msk [vmem:[#allocation3 + $0x188] sm:$0xff] %vm2920, 0.0
        %2972 = vst.msk [vmem:[#allocation3 + $0x190] sm:$0x3] %vm2923, 0.0
        %2973 = vst.msk [vmem:[#allocation3 + $0x198] sm:$0xff] %vm2920, 0.0
        %2974 = vst.msk [vmem:[#allocation3 + $0x1a0] sm:$0xff] %vm2920, 0.0
        %2975 = vst.msk [vmem:[#allocation3 + $0x1a8] sm:$0x3] %vm2923, 0.0
        %s2976 = scalar_lea.vmem [#allocation3], 24
        %2977 = vst.msk [vmem:[%s2976 + $0x1] sm:$0xff] %vm2920, %v2888
        %2978 = vst.msk [vmem:[%s2976 + $0x9] sm:$0xff] %vm2920, %v2889
        %2979 = vst.msk [vmem:[%s2976 + $0x19] sm:$0xff] %vm2920, %v2890
        %2980 = vst.msk [vmem:[%s2976 + $0x21] sm:$0xff] %vm2920, %v2891
        %2981 = vst.msk [vmem:[%s2976 + $0x31] sm:$0xff] %vm2920, %v2892
        %2982 = vst.msk [vmem:[%s2976 + $0x39] sm:$0xff] %vm2920, %v2893
        %2983 = vst.msk [vmem:[%s2976 + $0x49] sm:$0xff] %vm2920, %v2894
        %2984 = vst.msk [vmem:[%s2976 + $0x51] sm:$0xff] %vm2920, %v2895
        %2985 = vst.msk [vmem:[%s2976 + $0x61] sm:$0xff] %vm2920, %v2896
        %2986 = vst.msk [vmem:[%s2976 + $0x69] sm:$0xff] %vm2920, %v2897
        %2987 = vst.msk [vmem:[%s2976 + $0x79] sm:$0xff] %vm2920, %v2898
        %2988 = vst.msk [vmem:[%s2976 + $0x81] sm:$0xff] %vm2920, %v2899
        %2989 = vst.msk [vmem:[%s2976 + $0x91] sm:$0xff] %vm2920, %v2900
        %2990 = vst.msk [vmem:[%s2976 + $0x99] sm:$0xff] %vm2920, %v2901
        %2991 = vst.msk [vmem:[%s2976 + $0xa9] sm:$0xff] %vm2920, %v2902
        %2992 = vst.msk [vmem:[%s2976 + $0xb1] sm:$0xff] %vm2920, %v2903
        %2993 = vst.msk [vmem:[%s2976 + $0xc1] sm:$0xff] %vm2920, %v2904
        %2994 = vst.msk [vmem:[%s2976 + $0xc9] sm:$0xff] %vm2920, %v2905
        %2995 = vst.msk [vmem:[%s2976 + $0xd9] sm:$0xff] %vm2920, %v2906
        %2996 = vst.msk [vmem:[%s2976 + $0xe1] sm:$0xff] %vm2920, %v2907
        %2997 = vst.msk [vmem:[%s2976 + $0xf1] sm:$0xff] %vm2920, %v2908
        %2998 = vst.msk [vmem:[%s2976 + $0xf9] sm:$0xff] %vm2920, %v2909
        %2999 = vst.msk [vmem:[%s2976 + $0x109] sm:$0xff] %vm2920, %v2910
        %3000 = vst.msk [vmem:[%s2976 + $0x111] sm:$0xff] %vm2920, %v2911
        %3001 = vst.msk [vmem:[%s2976 + $0x121] sm:$0xff] %vm2920, %v2912
        %3002 = vst.msk [vmem:[%s2976 + $0x129] sm:$0xff] %vm2920, %v2913
        %3003 = vst.msk [vmem:[%s2976 + $0x139] sm:$0xff] %vm2920, %v2914
        %3004 = vst.msk [vmem:[%s2976 + $0x141] sm:$0xff] %vm2920, %v2915
        %3005 = vst.msk [vmem:[%s2976 + $0x151] sm:$0xff] %vm2920, %v2916
        %3006 = vst.msk [vmem:[%s2976 + $0x159] sm:$0xff] %vm2920, %v2917
        %3007 = vst.msk [vmem:[%s2976 + $0x169] sm:$0xff] %vm2920, %v2918
        %3008 = vst.msk [vmem:[%s2976 + $0x171] sm:$0xff] %vm2920, %v2919
        %v3009 = vld [vmem:[#allocation3] sm:$0xff]
        %v3010 = vld [vmem:[#allocation3 + $0x8] sm:$0xff]
        %v3011 = vld [vmem:[#allocation3 + $0x18] sm:$0xff]
        %v3012 = vld [vmem:[#allocation3 + $0x20] sm:$0xff]
        %v3013 = vld [vmem:[#allocation3 + $0x30] sm:$0xff]
        %v3014 = vld [vmem:[#allocation3 + $0x38] sm:$0xff]
        %v3015 = vld [vmem:[#allocation3 + $0x48] sm:$0xff]
        %v3016 = vld [vmem:[#allocation3 + $0x50] sm:$0xff]
        %v3017 = vld [vmem:[#allocation3 + $0x60] sm:$0xff]
        %v3018 = vld [vmem:[#allocation3 + $0x68] sm:$0xff]
        %v3019 = vld [vmem:[#allocation3 + $0x78] sm:$0xff]
        %v3020 = vld [vmem:[#allocation3 + $0x80] sm:$0xff]
        %v3021 = vld [vmem:[#allocation3 + $0x90] sm:$0xff]
        %v3022 = vld [vmem:[#allocation3 + $0x98] sm:$0xff]
        %v3023 = vld [vmem:[#allocation3 + $0xa8] sm:$0xff]
        %v3024 = vld [vmem:[#allocation3 + $0xb0] sm:$0xff]
        %v3025 = vld [vmem:[#allocation3 + $0xc0] sm:$0xff]
        %v3026 = vld [vmem:[#allocation3 + $0xc8] sm:$0xff]
        %v3027 = vld [vmem:[#allocation3 + $0xd8] sm:$0xff]
        %v3028 = vld [vmem:[#allocation3 + $0xe0] sm:$0xff]
        %v3029 = vld [vmem:[#allocation3 + $0xf0] sm:$0xff]
        %v3030 = vld [vmem:[#allocation3 + $0xf8] sm:$0xff]
        %v3031 = vld [vmem:[#allocation3 + $0x108] sm:$0xff]
        %v3032 = vld [vmem:[#allocation3 + $0x110] sm:$0xff]
        %v3033 = vld [vmem:[#allocation3 + $0x120] sm:$0xff]
        %v3034 = vld [vmem:[#allocation3 + $0x128] sm:$0xff]
        %v3035 = vld [vmem:[#allocation3 + $0x138] sm:$0xff]
        %v3036 = vld [vmem:[#allocation3 + $0x140] sm:$0xff]
        %v3037 = vld [vmem:[#allocation3 + $0x150] sm:$0xff]
        %v3038 = vld [vmem:[#allocation3 + $0x158] sm:$0xff]
        %v3039 = vld [vmem:[#allocation3 + $0x168] sm:$0xff]
        %v3040 = vld [vmem:[#allocation3 + $0x170] sm:$0xff]
        %v3041 = vpack.c.bf16 %v3010, %v3009
        %v3042 = vpack.c.bf16 %v3012, %v3011
        %v3043 = vpack.c.bf16 %v3014, %v3013
        %v3044 = vpack.c.bf16 %v3016, %v3015
        %v3045 = vpack.c.bf16 %v3018, %v3017
        %v3046 = vpack.c.bf16 %v3020, %v3019
        %v3047 = vpack.c.bf16 %v3022, %v3021
        %v3048 = vpack.c.bf16 %v3024, %v3023
        %v3049 = vpack.c.bf16 %v3026, %v3025
        %v3050 = vpack.c.bf16 %v3028, %v3027
        %v3051 = vpack.c.bf16 %v3030, %v3029
        %v3052 = vpack.c.bf16 %v3032, %v3031
        %v3053 = vpack.c.bf16 %v3034, %v3033
        %v3054 = vpack.c.bf16 %v3036, %v3035
        %v3055 = vpack.c.bf16 %v3038, %v3037
        %v3056 = vpack.c.bf16 %v3040, %v3039
        %v3057 = vld [vmem:[#allocation10] sm:$0x3]
        %v3058 = vld [vmem:[#allocation3 + $0x1] sm:$0xff]
        %v3059 = vld [vmem:[#allocation3 + $0x9] sm:$0xff]
        %v3060 = vld [vmem:[#allocation3 + $0x19] sm:$0xff]
        %v3061 = vld [vmem:[#allocation3 + $0x21] sm:$0xff]
        %v3062 = vld [vmem:[#allocation3 + $0x31] sm:$0xff]
        %v3063 = vld [vmem:[#allocation3 + $0x39] sm:$0xff]
        %v3064 = vld [vmem:[#allocation3 + $0x49] sm:$0xff]
        %v3065 = vld [vmem:[#allocation3 + $0x51] sm:$0xff]
        %v3066 = vld [vmem:[#allocation3 + $0x61] sm:$0xff]
        %v3067 = vld [vmem:[#allocation3 + $0x69] sm:$0xff]
        %v3068 = vld [vmem:[#allocation3 + $0x79] sm:$0xff]
        %v3069 = vld [vmem:[#allocation3 + $0x81] sm:$0xff]
        %v3070 = vld [vmem:[#allocation3 + $0x91] sm:$0xff]
        %v3071 = vld [vmem:[#allocation3 + $0x99] sm:$0xff]
        %v3072 = vld [vmem:[#allocation3 + $0xa9] sm:$0xff]
        %v3073 = vld [vmem:[#allocation3 + $0xb1] sm:$0xff]
        %v3074 = vld [vmem:[#allocation3 + $0xc1] sm:$0xff]
        %v3075 = vld [vmem:[#allocation3 + $0xc9] sm:$0xff]
        %v3076 = vld [vmem:[#allocation3 + $0xd9] sm:$0xff]
        %v3077 = vld [vmem:[#allocation3 + $0xe1] sm:$0xff]
        %v3078 = vld [vmem:[#allocation3 + $0xf1] sm:$0xff]
        %v3079 = vld [vmem:[#allocation3 + $0xf9] sm:$0xff]
        %v3080 = vld [vmem:[#allocation3 + $0x109] sm:$0xff]
        %v3081 = vld [vmem:[#allocation3 + $0x111] sm:$0xff]
        %v3082 = vld [vmem:[#allocation3 + $0x121] sm:$0xff]
        %v3083 = vld [vmem:[#allocation3 + $0x129] sm:$0xff]
        %v3084 = vld [vmem:[#allocation3 + $0x139] sm:$0xff]
        %v3085 = vld [vmem:[#allocation3 + $0x141] sm:$0xff]
        %v3086 = vld [vmem:[#allocation3 + $0x151] sm:$0xff]
        %v3087 = vld [vmem:[#allocation3 + $0x159] sm:$0xff]
        %v3088 = vld [vmem:[#allocation3 + $0x169] sm:$0xff]
        %v3089 = vld [vmem:[#allocation3 + $0x171] sm:$0xff]
        %v3090 = vpack.c.bf16 %v3059, %v3058
        %v3091 = vpack.c.bf16 %v3061, %v3060
        %v3092 = vpack.c.bf16 %v3063, %v3062
        %v3093 = vpack.c.bf16 %v3065, %v3064
        %v3094 = vpack.c.bf16 %v3067, %v3066
        %v3095 = vpack.c.bf16 %v3069, %v3068
        %v3096 = vpack.c.bf16 %v3071, %v3070
        %v3097 = vpack.c.bf16 %v3073, %v3072
        %v3098 = vpack.c.bf16 %v3075, %v3074
        %v3099 = vpack.c.bf16 %v3077, %v3076
        %v3100 = vpack.c.bf16 %v3079, %v3078
        %v3101 = vpack.c.bf16 %v3081, %v3080
        %v3102 = vpack.c.bf16 %v3083, %v3082
        %v3103 = vpack.c.bf16 %v3085, %v3084
        %v3104 = vpack.c.bf16 %v3087, %v3086
        %v3105 = vpack.c.bf16 %v3089, %v3088
        %s3106 = scalar_lea.vmem [#allocation10], 2
        %v3107 = vld [vmem:[%s3106] sm:$0x3]
        %v3109 = vsel %vm2920, %v3090, 0
        %v3112 = vsel %vm2920, %v3091, 0
        %v3115 = vsel %vm2920, %v3092, 0
        %v3118 = vsel %vm2920, %v3093, 0
        %v3121 = vsel %vm2920, %v3094, 0
        %v3124 = vsel %vm2920, %v3095, 0
        %v3127 = vsel %vm2920, %v3096, 0
        %v3130 = vsel %vm2920, %v3097, 0
        %v3133 = vsel %vm2920, %v3098, 0
        %v3136 = vsel %vm2920, %v3099, 0
        %v3139 = vsel %vm2920, %v3100, 0
        %v3142 = vsel %vm2920, %v3101, 0
        %v3145 = vsel %vm2920, %v3102, 0
        %v3148 = vsel %vm2920, %v3103, 0
        %v3151 = vsel %vm2920, %v3104, 0
        %v3154 = vsel %vm2920, %v3105, 0
        %vm3156 = vcmask 1041408
        %v3158 = vsel %vm3156, %v3107, 0
        %3160 = vmatpush.bf16.msra.mxu0 0
        %3161 = vmatpush.bf16.msra.mxu0 0
        %3162 = vmatpush.bf16.msra.mxu0 0
        %3163 = vmatpush.bf16.msra.mxu0 0
        %3164 = vmatpush.bf16.msra.mxu0 0
        %3165 = vmatpush.bf16.msra.mxu0 0
        %3166 = vmatpush.bf16.msra.mxu0 0
        %3167 = vmatpush.bf16.msra.mxu0 %v3158
        %3168 = vmatmul.bf16.gmra.mxu0 %v3109
        %v3169 = vpop.f32.mrf.mxu0
        %v3170 = vadd.f32 0.0, %v3169
        %v3171 = vpop.f32.mrf.mxu0
        %v3172 = vadd.f32 0.0, %v3171
        %3173 = vmatmul.bf16.gmra.mxu0 %v3112
        %v3174 = vpop.f32.mrf.mxu0
        %v3175 = vadd.f32 0.0, %v3174
        %v3176 = vpop.f32.mrf.mxu0
        %v3177 = vadd.f32 0.0, %v3176
        %3178 = vmatmul.bf16.gmra.mxu0 %v3115
        %v3179 = vpop.f32.mrf.mxu0
        %v3180 = vadd.f32 0.0, %v3179
        %v3181 = vpop.f32.mrf.mxu0
        %v3182 = vadd.f32 0.0, %v3181
        %3183 = vmatmul.bf16.gmra.mxu0 %v3118
        %v3184 = vpop.f32.mrf.mxu0
        %v3185 = vadd.f32 0.0, %v3184
        %v3186 = vpop.f32.mrf.mxu0
        %v3187 = vadd.f32 0.0, %v3186
        %3188 = vmatmul.bf16.gmra.mxu0 %v3121
        %v3189 = vpop.f32.mrf.mxu0
        %v3190 = vadd.f32 0.0, %v3189
        %v3191 = vpop.f32.mrf.mxu0
        %v3192 = vadd.f32 0.0, %v3191
        %3193 = vmatmul.bf16.gmra.mxu0 %v3124
        %v3194 = vpop.f32.mrf.mxu0
        %v3195 = vadd.f32 0.0, %v3194
        %v3196 = vpop.f32.mrf.mxu0
        %v3197 = vadd.f32 0.0, %v3196
        %3198 = vmatmul.bf16.gmra.mxu0 %v3127
        %v3199 = vpop.f32.mrf.mxu0
        %v3200 = vadd.f32 0.0, %v3199
        %v3201 = vpop.f32.mrf.mxu0
        %v3202 = vadd.f32 0.0, %v3201
        %3203 = vmatmul.bf16.gmra.mxu0 %v3130
        %v3204 = vpop.f32.mrf.mxu0
        %v3205 = vadd.f32 0.0, %v3204
        %v3206 = vpop.f32.mrf.mxu0
        %v3207 = vadd.f32 0.0, %v3206
        %3208 = vmatmul.bf16.gmra.mxu0 %v3133
        %v3209 = vpop.f32.mrf.mxu0
        %v3210 = vadd.f32 0.0, %v3209
        %v3211 = vpop.f32.mrf.mxu0
        %v3212 = vadd.f32 0.0, %v3211
        %3213 = vmatmul.bf16.gmra.mxu0 %v3136
        %v3214 = vpop.f32.mrf.mxu0
        %v3215 = vadd.f32 0.0, %v3214
        %v3216 = vpop.f32.mrf.mxu0
        %v3217 = vadd.f32 0.0, %v3216
        %3218 = vmatmul.bf16.gmra.mxu0 %v3139
        %v3219 = vpop.f32.mrf.mxu0
        %v3220 = vadd.f32 0.0, %v3219
        %v3221 = vpop.f32.mrf.mxu0
        %v3222 = vadd.f32 0.0, %v3221
        %3223 = vmatmul.bf16.gmra.mxu0 %v3142
        %v3224 = vpop.f32.mrf.mxu0
        %v3225 = vadd.f32 0.0, %v3224
        %v3226 = vpop.f32.mrf.mxu0
        %v3227 = vadd.f32 0.0, %v3226
        %3228 = vmatmul.bf16.gmra.mxu0 %v3145
        %v3229 = vpop.f32.mrf.mxu0
        %v3230 = vadd.f32 0.0, %v3229
        %v3231 = vpop.f32.mrf.mxu0
        %v3232 = vadd.f32 0.0, %v3231
        %3233 = vmatmul.bf16.gmra.mxu0 %v3148
        %v3234 = vpop.f32.mrf.mxu0
        %v3235 = vadd.f32 0.0, %v3234
        %v3236 = vpop.f32.mrf.mxu0
        %v3237 = vadd.f32 0.0, %v3236
        %3238 = vmatmul.bf16.gmra.mxu0 %v3151
        %v3239 = vpop.f32.mrf.mxu0
        %v3240 = vadd.f32 0.0, %v3239
        %v3241 = vpop.f32.mrf.mxu0
        %v3242 = vadd.f32 0.0, %v3241
        %3243 = vmatmul.bf16.gmra.mxu0 %v3154
        %v3244 = vpop.f32.mrf.mxu0
        %v3245 = vadd.f32 0.0, %v3244
        %v3246 = vpop.f32.mrf.mxu0
        %v3247 = vadd.f32 0.0, %v3246
        %3248 = vdwg.mxu0
        %v3250 = vsel %vm2920, %v3041, 0
        %v3253 = vsel %vm2920, %v3042, 0
        %v3256 = vsel %vm2920, %v3043, 0
        %v3259 = vsel %vm2920, %v3044, 0
        %v3262 = vsel %vm2920, %v3045, 0
        %v3265 = vsel %vm2920, %v3046, 0
        %v3268 = vsel %vm2920, %v3047, 0
        %v3271 = vsel %vm2920, %v3048, 0
        %v3274 = vsel %vm2920, %v3049, 0
        %v3277 = vsel %vm2920, %v3050, 0
        %v3280 = vsel %vm2920, %v3051, 0
        %v3283 = vsel %vm2920, %v3052, 0
        %v3286 = vsel %vm2920, %v3053, 0
        %v3289 = vsel %vm2920, %v3054, 0
        %v3292 = vsel %vm2920, %v3055, 0
        %v3295 = vsel %vm2920, %v3056, 0
        %v3298 = vsel %vm3156, %v3057, 0
        %3300 = vmatpush.bf16.msra.mxu0 0
        %3301 = vmatpush.bf16.msra.mxu0 0
        %3302 = vmatpush.bf16.msra.mxu0 0
        %3303 = vmatpush.bf16.msra.mxu0 0
        %3304 = vmatpush.bf16.msra.mxu0 0
        %3305 = vmatpush.bf16.msra.mxu0 0
        %3306 = vmatpush.bf16.msra.mxu0 0
        %3307 = vmatpush.bf16.msra.mxu0 %v3298
        %3308 = vmatmul.bf16.gmra.mxu0 %v3250
        %v3309 = vpop.f32.mrf.mxu0
        %v3310 = vadd.f32 %v3170, %v3309
        %v3311 = vpop.f32.mrf.mxu0
        %v3312 = vadd.f32 %v3172, %v3311
        %3313 = vmatmul.bf16.gmra.mxu0 %v3253
        %v3314 = vpop.f32.mrf.mxu0
        %v3315 = vadd.f32 %v3175, %v3314
        %v3316 = vpop.f32.mrf.mxu0
        %v3317 = vadd.f32 %v3177, %v3316
        %3318 = vmatmul.bf16.gmra.mxu0 %v3256
        %v3319 = vpop.f32.mrf.mxu0
        %v3320 = vadd.f32 %v3180, %v3319
        %v3321 = vpop.f32.mrf.mxu0
        %v3322 = vadd.f32 %v3182, %v3321
        %3323 = vmatmul.bf16.gmra.mxu0 %v3259
        %v3324 = vpop.f32.mrf.mxu0
        %v3325 = vadd.f32 %v3185, %v3324
        %v3326 = vpop.f32.mrf.mxu0
        %v3327 = vadd.f32 %v3187, %v3326
        %3328 = vmatmul.bf16.gmra.mxu0 %v3262
        %v3329 = vpop.f32.mrf.mxu0
        %v3330 = vadd.f32 %v3190, %v3329
        %v3331 = vpop.f32.mrf.mxu0
        %v3332 = vadd.f32 %v3192, %v3331
        %3333 = vmatmul.bf16.gmra.mxu0 %v3265
        %v3334 = vpop.f32.mrf.mxu0
        %v3335 = vadd.f32 %v3195, %v3334
        %v3336 = vpop.f32.mrf.mxu0
        %v3337 = vadd.f32 %v3197, %v3336
        %3338 = vmatmul.bf16.gmra.mxu0 %v3268
        %v3339 = vpop.f32.mrf.mxu0
        %v3340 = vadd.f32 %v3200, %v3339
        %v3341 = vpop.f32.mrf.mxu0
        %v3342 = vadd.f32 %v3202, %v3341
        %3343 = vmatmul.bf16.gmra.mxu0 %v3271
        %v3344 = vpop.f32.mrf.mxu0
        %v3345 = vadd.f32 %v3205, %v3344
        %v3346 = vpop.f32.mrf.mxu0
        %v3347 = vadd.f32 %v3207, %v3346
        %3348 = vmatmul.bf16.gmra.mxu0 %v3274
        %v3349 = vpop.f32.mrf.mxu0
        %v3350 = vadd.f32 %v3210, %v3349
        %v3351 = vpop.f32.mrf.mxu0
        %v3352 = vadd.f32 %v3212, %v3351
        %3353 = vmatmul.bf16.gmra.mxu0 %v3277
        %v3354 = vpop.f32.mrf.mxu0
        %v3355 = vadd.f32 %v3215, %v3354
        %v3356 = vpop.f32.mrf.mxu0
        %v3357 = vadd.f32 %v3217, %v3356
        %3358 = vmatmul.bf16.gmra.mxu0 %v3280
        %v3359 = vpop.f32.mrf.mxu0
        %v3360 = vadd.f32 %v3220, %v3359
        %v3361 = vpop.f32.mrf.mxu0
        %v3362 = vadd.f32 %v3222, %v3361
        %3363 = vmatmul.bf16.gmra.mxu0 %v3283
        %v3364 = vpop.f32.mrf.mxu0
        %v3365 = vadd.f32 %v3225, %v3364
        %v3366 = vpop.f32.mrf.mxu0
        %v3367 = vadd.f32 %v3227, %v3366
        %3368 = vmatmul.bf16.gmra.mxu0 %v3286
        %v3369 = vpop.f32.mrf.mxu0
        %v3370 = vadd.f32 %v3230, %v3369
        %v3371 = vpop.f32.mrf.mxu0
        %v3372 = vadd.f32 %v3232, %v3371
        %3373 = vmatmul.bf16.gmra.mxu0 %v3289
        %v3374 = vpop.f32.mrf.mxu0
        %v3375 = vadd.f32 %v3235, %v3374
        %v3376 = vpop.f32.mrf.mxu0
        %v3377 = vadd.f32 %v3237, %v3376
        %3378 = vmatmul.bf16.gmra.mxu0 %v3292
        %v3379 = vpop.f32.mrf.mxu0
        %v3380 = vadd.f32 %v3240, %v3379
        %v3381 = vpop.f32.mrf.mxu0
        %v3382 = vadd.f32 %v3242, %v3381
        %3383 = vmatmul.bf16.gmra.mxu0 %v3295
        %v3384 = vpop.f32.mrf.mxu0
        %v3385 = vadd.f32 %v3245, %v3384
        %v3386 = vpop.f32.mrf.mxu0
        %v3387 = vadd.f32 %v3247, %v3386
        %3388 = vdwg.mxu0
        %v3389 = vld [vmem:[#allocation3 + $0x2] sm:$0xff]
        %v3390 = vld [vmem:[#allocation3 + $0xa] sm:$0xff]
        %v3391 = vld [vmem:[#allocation3 + $0x1a] sm:$0xff]
        %v3392 = vld [vmem:[#allocation3 + $0x22] sm:$0xff]
        %v3393 = vld [vmem:[#allocation3 + $0x32] sm:$0xff]
        %v3394 = vld [vmem:[#allocation3 + $0x3a] sm:$0xff]
        %v3395 = vld [vmem:[#allocation3 + $0x4a] sm:$0xff]
        %v3396 = vld [vmem:[#allocation3 + $0x52] sm:$0xff]
        %v3397 = vld [vmem:[#allocation3 + $0x62] sm:$0xff]
        %v3398 = vld [vmem:[#allocation3 + $0x6a] sm:$0xff]
        %v3399 = vld [vmem:[#allocation3 + $0x7a] sm:$0xff]
        %v3400 = vld [vmem:[#allocation3 + $0x82] sm:$0xff]
        %v3401 = vld [vmem:[#allocation3 + $0x92] sm:$0xff]
        %v3402 = vld [vmem:[#allocation3 + $0x9a] sm:$0xff]
        %v3403 = vld [vmem:[#allocation3 + $0xaa] sm:$0xff]
        %v3404 = vld [vmem:[#allocation3 + $0xb2] sm:$0xff]
        %v3405 = vld [vmem:[#allocation3 + $0xc2] sm:$0xff]
        %v3406 = vld [vmem:[#allocation3 + $0xca] sm:$0xff]
        %v3407 = vld [vmem:[#allocation3 + $0xda] sm:$0xff]
        %v3408 = vld [vmem:[#allocation3 + $0xe2] sm:$0xff]
        %v3409 = vld [vmem:[#allocation3 + $0xf2] sm:$0xff]
        %v3410 = vld [vmem:[#allocation3 + $0xfa] sm:$0xff]
        %v3411 = vld [vmem:[#allocation3 + $0x10a] sm:$0xff]
        %v3412 = vld [vmem:[#allocation3 + $0x112] sm:$0xff]
        %v3413 = vld [vmem:[#allocation3 + $0x122] sm:$0xff]
        %v3414 = vld [vmem:[#allocation3 + $0x12a] sm:$0xff]
        %v3415 = vld [vmem:[#allocation3 + $0x13a] sm:$0xff]
        %v3416 = vld [vmem:[#allocation3 + $0x142] sm:$0xff]
        %v3417 = vld [vmem:[#allocation3 + $0x152] sm:$0xff]
        %v3418 = vld [vmem:[#allocation3 + $0x15a] sm:$0xff]
        %v3419 = vld [vmem:[#allocation3 + $0x16a] sm:$0xff]
        %v3420 = vld [vmem:[#allocation3 + $0x172] sm:$0xff]
        %v3421 = vpack.c.bf16 %v3390, %v3389
        %v3422 = vpack.c.bf16 %v3392, %v3391
        %v3423 = vpack.c.bf16 %v3394, %v3393
        %v3424 = vpack.c.bf16 %v3396, %v3395
        %v3425 = vpack.c.bf16 %v3398, %v3397
        %v3426 = vpack.c.bf16 %v3400, %v3399
        %v3427 = vpack.c.bf16 %v3402, %v3401
        %v3428 = vpack.c.bf16 %v3404, %v3403
        %v3429 = vpack.c.bf16 %v3406, %v3405
        %v3430 = vpack.c.bf16 %v3408, %v3407
        %v3431 = vpack.c.bf16 %v3410, %v3409
        %v3432 = vpack.c.bf16 %v3412, %v3411
        %v3433 = vpack.c.bf16 %v3414, %v3413
        %v3434 = vpack.c.bf16 %v3416, %v3415
        %v3435 = vpack.c.bf16 %v3418, %v3417
        %v3436 = vpack.c.bf16 %v3420, %v3419
        %s3437 = scalar_lea.vmem [#allocation10], 4
        %v3438 = vld [vmem:[%s3437] sm:$0x3]
        %v3440 = vsel %vm2920, %v3421, 0
        %v3443 = vsel %vm2920, %v3422, 0
        %v3446 = vsel %vm2920, %v3423, 0
        %v3449 = vsel %vm2920, %v3424, 0
        %v3452 = vsel %vm2920, %v3425, 0
        %v3455 = vsel %vm2920, %v3426, 0
        %v3458 = vsel %vm2920, %v3427, 0
        %v3461 = vsel %vm2920, %v3428, 0
        %v3464 = vsel %vm2920, %v3429, 0
        %v3467 = vsel %vm2920, %v3430, 0
        %v3470 = vsel %vm2920, %v3431, 0
        %v3473 = vsel %vm2920, %v3432, 0
        %v3476 = vsel %vm2920, %v3433, 0
        %v3479 = vsel %vm2920, %v3434, 0
        %v3482 = vsel %vm2920, %v3435, 0
        %v3485 = vsel %vm2920, %v3436, 0
        %v3488 = vsel %vm3156, %v3438, 0
        %3490 = vmatpush.bf16.msra.mxu0 0
        %3491 = vmatpush.bf16.msra.mxu0 0
        %3492 = vmatpush.bf16.msra.mxu0 0
        %3493 = vmatpush.bf16.msra.mxu0 0
        %3494 = vmatpush.bf16.msra.mxu0 0
        %3495 = vmatpush.bf16.msra.mxu0 0
        %3496 = vmatpush.bf16.msra.mxu0 0
        %3497 = vmatpush.bf16.msra.mxu0 %v3488
        %3498 = vmatmul.bf16.gmra.mxu0 %v3440
        %v3499 = vpop.f32.mrf.mxu0
        %v3500 = vadd.f32 0.0, %v3499
        %v3501 = vpop.f32.mrf.mxu0
        %v3502 = vadd.f32 0.0, %v3501
        %3503 = vmatmul.bf16.gmra.mxu0 %v3443
        %v3504 = vpop.f32.mrf.mxu0
        %v3505 = vadd.f32 0.0, %v3504
        %v3506 = vpop.f32.mrf.mxu0
        %v3507 = vadd.f32 0.0, %v3506
        %3508 = vmatmul.bf16.gmra.mxu0 %v3446
        %v3509 = vpop.f32.mrf.mxu0
        %v3510 = vadd.f32 0.0, %v3509
        %v3511 = vpop.f32.mrf.mxu0
        %v3512 = vadd.f32 0.0, %v3511
        %3513 = vmatmul.bf16.gmra.mxu0 %v3449
        %v3514 = vpop.f32.mrf.mxu0
        %v3515 = vadd.f32 0.0, %v3514
        %v3516 = vpop.f32.mrf.mxu0
        %v3517 = vadd.f32 0.0, %v3516
        %3518 = vmatmul.bf16.gmra.mxu0 %v3452
        %v3519 = vpop.f32.mrf.mxu0
        %v3520 = vadd.f32 0.0, %v3519
        %v3521 = vpop.f32.mrf.mxu0
        %v3522 = vadd.f32 0.0, %v3521
        %3523 = vmatmul.bf16.gmra.mxu0 %v3455
        %v3524 = vpop.f32.mrf.mxu0
        %v3525 = vadd.f32 0.0, %v3524
        %v3526 = vpop.f32.mrf.mxu0
        %v3527 = vadd.f32 0.0, %v3526
        %3528 = vmatmul.bf16.gmra.mxu0 %v3458
        %v3529 = vpop.f32.mrf.mxu0
        %v3530 = vadd.f32 0.0, %v3529
        %v3531 = vpop.f32.mrf.mxu0
        %v3532 = vadd.f32 0.0, %v3531
        %3533 = vmatmul.bf16.gmra.mxu0 %v3461
        %v3534 = vpop.f32.mrf.mxu0
        %v3535 = vadd.f32 0.0, %v3534
        %v3536 = vpop.f32.mrf.mxu0
        %v3537 = vadd.f32 0.0, %v3536
        %3538 = vmatmul.bf16.gmra.mxu0 %v3464
        %v3539 = vpop.f32.mrf.mxu0
        %v3540 = vadd.f32 0.0, %v3539
        %v3541 = vpop.f32.mrf.mxu0
        %v3542 = vadd.f32 0.0, %v3541
        %3543 = vmatmul.bf16.gmra.mxu0 %v3467
        %v3544 = vpop.f32.mrf.mxu0
        %v3545 = vadd.f32 0.0, %v3544
        %v3546 = vpop.f32.mrf.mxu0
        %v3547 = vadd.f32 0.0, %v3546
        %3548 = vmatmul.bf16.gmra.mxu0 %v3470
        %v3549 = vpop.f32.mrf.mxu0
        %v3550 = vadd.f32 0.0, %v3549
        %v3551 = vpop.f32.mrf.mxu0
        %v3552 = vadd.f32 0.0, %v3551
        %3553 = vmatmul.bf16.gmra.mxu0 %v3473
        %v3554 = vpop.f32.mrf.mxu0
        %v3555 = vadd.f32 0.0, %v3554
        %v3556 = vpop.f32.mrf.mxu0
        %v3557 = vadd.f32 0.0, %v3556
        %3558 = vmatmul.bf16.gmra.mxu0 %v3476
        %v3559 = vpop.f32.mrf.mxu0
        %v3560 = vadd.f32 0.0, %v3559
        %v3561 = vpop.f32.mrf.mxu0
        %v3562 = vadd.f32 0.0, %v3561
        %3563 = vmatmul.bf16.gmra.mxu0 %v3479
        %v3564 = vpop.f32.mrf.mxu0
        %v3565 = vadd.f32 0.0, %v3564
        %v3566 = vpop.f32.mrf.mxu0
        %v3567 = vadd.f32 0.0, %v3566
        %3568 = vmatmul.bf16.gmra.mxu0 %v3482
        %v3569 = vpop.f32.mrf.mxu0
        %v3570 = vadd.f32 0.0, %v3569
        %v3571 = vpop.f32.mrf.mxu0
        %v3572 = vadd.f32 0.0, %v3571
        %3573 = vmatmul.bf16.gmra.mxu0 %v3485
        %v3574 = vpop.f32.mrf.mxu0
        %v3575 = vadd.f32 0.0, %v3574
        %v3576 = vpop.f32.mrf.mxu0
        %v3577 = vadd.f32 0.0, %v3576
        %3578 = vdwg.mxu0
        %v3579 = vadd.f32 %v3310, %v3500
        %v3580 = vadd.f32 %v3312, %v3502
        %v3581 = vadd.f32 %v3315, %v3505
        %v3582 = vadd.f32 %v3317, %v3507
        %v3583 = vadd.f32 %v3320, %v3510
        %v3584 = vadd.f32 %v3322, %v3512
        %v3585 = vadd.f32 %v3325, %v3515
        %v3586 = vadd.f32 %v3327, %v3517
        %v3587 = vadd.f32 %v3330, %v3520
        %v3588 = vadd.f32 %v3332, %v3522
        %v3589 = vadd.f32 %v3335, %v3525
        %v3590 = vadd.f32 %v3337, %v3527
        %v3591 = vadd.f32 %v3340, %v3530
        %v3592 = vadd.f32 %v3342, %v3532
        %v3593 = vadd.f32 %v3345, %v3535
        %v3594 = vadd.f32 %v3347, %v3537
        %v3595 = vadd.f32 %v3350, %v3540
        %v3596 = vadd.f32 %v3352, %v3542
        %v3597 = vadd.f32 %v3355, %v3545
        %v3598 = vadd.f32 %v3357, %v3547
        %v3599 = vadd.f32 %v3360, %v3550
        %v3600 = vadd.f32 %v3362, %v3552
        %v3601 = vadd.f32 %v3365, %v3555
        %v3602 = vadd.f32 %v3367, %v3557
        %v3603 = vadd.f32 %v3370, %v3560
        %v3604 = vadd.f32 %v3372, %v3562
        %v3605 = vadd.f32 %v3375, %v3565
        %v3606 = vadd.f32 %v3377, %v3567
        %v3607 = vadd.f32 %v3380, %v3570
        %v3608 = vadd.f32 %v3382, %v3572
        %v3609 = vadd.f32 %v3385, %v3575
        %v3610 = vadd.f32 %v3387, %v3577
        %v3611 = vld [vmem:[%s2976] sm:$0xff]
        %v3612 = vld [vmem:[%s2976 + $0x8] sm:$0xff]
        %v3613 = vld [vmem:[%s2976 + $0x18] sm:$0xff]
        %v3614 = vld [vmem:[%s2976 + $0x20] sm:$0xff]
        %v3615 = vld [vmem:[%s2976 + $0x30] sm:$0xff]
        %v3616 = vld [vmem:[%s2976 + $0x38] sm:$0xff]
        %v3617 = vld [vmem:[%s2976 + $0x48] sm:$0xff]
        %v3618 = vld [vmem:[%s2976 + $0x50] sm:$0xff]
        %v3619 = vld [vmem:[%s2976 + $0x60] sm:$0xff]
        %v3620 = vld [vmem:[%s2976 + $0x68] sm:$0xff]
        %v3621 = vld [vmem:[%s2976 + $0x78] sm:$0xff]
        %v3622 = vld [vmem:[%s2976 + $0x80] sm:$0xff]
        %v3623 = vld [vmem:[%s2976 + $0x90] sm:$0xff]
        %v3624 = vld [vmem:[%s2976 + $0x98] sm:$0xff]
        %v3625 = vld [vmem:[%s2976 + $0xa8] sm:$0xff]
        %v3626 = vld [vmem:[%s2976 + $0xb0] sm:$0xff]
        %v3627 = vld [vmem:[%s2976 + $0xc0] sm:$0xff]
        %v3628 = vld [vmem:[%s2976 + $0xc8] sm:$0xff]
        %v3629 = vld [vmem:[%s2976 + $0xd8] sm:$0xff]
        %v3630 = vld [vmem:[%s2976 + $0xe0] sm:$0xff]
        %v3631 = vld [vmem:[%s2976 + $0xf0] sm:$0xff]
        %v3632 = vld [vmem:[%s2976 + $0xf8] sm:$0xff]
        %v3633 = vld [vmem:[%s2976 + $0x108] sm:$0xff]
        %v3634 = vld [vmem:[%s2976 + $0x110] sm:$0xff]
        %v3635 = vld [vmem:[%s2976 + $0x120] sm:$0xff]
        %v3636 = vld [vmem:[%s2976 + $0x128] sm:$0xff]
        %v3637 = vld [vmem:[%s2976 + $0x138] sm:$0xff]
        %v3638 = vld [vmem:[%s2976 + $0x140] sm:$0xff]
        %v3639 = vld [vmem:[%s2976 + $0x150] sm:$0xff]
        %v3640 = vld [vmem:[%s2976 + $0x158] sm:$0xff]
        %v3641 = vld [vmem:[%s2976 + $0x168] sm:$0xff]
        %v3642 = vld [vmem:[%s2976 + $0x170] sm:$0xff]
        %v3643 = vpack.c.bf16 %v3612, %v3611
        %v3644 = vpack.c.bf16 %v3614, %v3613
        %v3645 = vpack.c.bf16 %v3616, %v3615
        %v3646 = vpack.c.bf16 %v3618, %v3617
        %v3647 = vpack.c.bf16 %v3620, %v3619
        %v3648 = vpack.c.bf16 %v3622, %v3621
        %v3649 = vpack.c.bf16 %v3624, %v3623
        %v3650 = vpack.c.bf16 %v3626, %v3625
        %v3651 = vpack.c.bf16 %v3628, %v3627
        %v3652 = vpack.c.bf16 %v3630, %v3629
        %v3653 = vpack.c.bf16 %v3632, %v3631
        %v3654 = vpack.c.bf16 %v3634, %v3633
        %v3655 = vpack.c.bf16 %v3636, %v3635
        %v3656 = vpack.c.bf16 %v3638, %v3637
        %v3657 = vpack.c.bf16 %v3640, %v3639
        %v3658 = vpack.c.bf16 %v3642, %v3641
        %s3659 = scalar_lea.vmem [#allocation10], 6
        %v3660 = vld [vmem:[%s3659] sm:$0x3]
        %v3662 = vsel %vm2920, %v3643, 0
        %v3665 = vsel %vm2920, %v3644, 0
        %v3668 = vsel %vm2920, %v3645, 0
        %v3671 = vsel %vm2920, %v3646, 0
        %v3674 = vsel %vm2920, %v3647, 0
        %v3677 = vsel %vm2920, %v3648, 0
        %v3680 = vsel %vm2920, %v3649, 0
        %v3683 = vsel %vm2920, %v3650, 0
        %v3686 = vsel %vm2920, %v3651, 0
        %v3689 = vsel %vm2920, %v3652, 0
        %v3692 = vsel %vm2920, %v3653, 0
        %v3695 = vsel %vm2920, %v3654, 0
        %v3698 = vsel %vm2920, %v3655, 0
        %v3701 = vsel %vm2920, %v3656, 0
        %v3704 = vsel %vm2920, %v3657, 0
        %v3707 = vsel %vm2920, %v3658, 0
        %v3710 = vsel %vm3156, %v3660, 0
        %3712 = vmatpush.bf16.msra.mxu0 0
        %3713 = vmatpush.bf16.msra.mxu0 0
        %3714 = vmatpush.bf16.msra.mxu0 0
        %3715 = vmatpush.bf16.msra.mxu0 0
        %3716 = vmatpush.bf16.msra.mxu0 0
        %3717 = vmatpush.bf16.msra.mxu0 0
        %3718 = vmatpush.bf16.msra.mxu0 0
        %3719 = vmatpush.bf16.msra.mxu0 %v3710
        %3720 = vmatmul.bf16.gmra.mxu0 %v3662
        %v3721 = vpop.f32.mrf.mxu0
        %v3722 = vadd.f32 0.0, %v3721
        %v3723 = vpop.f32.mrf.mxu0
        %v3724 = vadd.f32 0.0, %v3723
        %3725 = vmatmul.bf16.gmra.mxu0 %v3665
        %v3726 = vpop.f32.mrf.mxu0
        %v3727 = vadd.f32 0.0, %v3726
        %v3728 = vpop.f32.mrf.mxu0
        %v3729 = vadd.f32 0.0, %v3728
        %3730 = vmatmul.bf16.gmra.mxu0 %v3668
        %v3731 = vpop.f32.mrf.mxu0
        %v3732 = vadd.f32 0.0, %v3731
        %v3733 = vpop.f32.mrf.mxu0
        %v3734 = vadd.f32 0.0, %v3733
        %3735 = vmatmul.bf16.gmra.mxu0 %v3671
        %v3736 = vpop.f32.mrf.mxu0
        %v3737 = vadd.f32 0.0, %v3736
        %v3738 = vpop.f32.mrf.mxu0
        %v3739 = vadd.f32 0.0, %v3738
        %3740 = vmatmul.bf16.gmra.mxu0 %v3674
        %v3741 = vpop.f32.mrf.mxu0
        %v3742 = vadd.f32 0.0, %v3741
        %v3743 = vpop.f32.mrf.mxu0
        %v3744 = vadd.f32 0.0, %v3743
        %3745 = vmatmul.bf16.gmra.mxu0 %v3677
        %v3746 = vpop.f32.mrf.mxu0
        %v3747 = vadd.f32 0.0, %v3746
        %v3748 = vpop.f32.mrf.mxu0
        %v3749 = vadd.f32 0.0, %v3748
        %3750 = vmatmul.bf16.gmra.mxu0 %v3680
        %v3751 = vpop.f32.mrf.mxu0
        %v3752 = vadd.f32 0.0, %v3751
        %v3753 = vpop.f32.mrf.mxu0
        %v3754 = vadd.f32 0.0, %v3753
        %3755 = vmatmul.bf16.gmra.mxu0 %v3683
        %v3756 = vpop.f32.mrf.mxu0
        %v3757 = vadd.f32 0.0, %v3756
        %v3758 = vpop.f32.mrf.mxu0
        %v3759 = vadd.f32 0.0, %v3758
        %3760 = vmatmul.bf16.gmra.mxu0 %v3686
        %v3761 = vpop.f32.mrf.mxu0
        %v3762 = vadd.f32 0.0, %v3761
        %v3763 = vpop.f32.mrf.mxu0
        %v3764 = vadd.f32 0.0, %v3763
        %3765 = vmatmul.bf16.gmra.mxu0 %v3689
        %v3766 = vpop.f32.mrf.mxu0
        %v3767 = vadd.f32 0.0, %v3766
        %v3768 = vpop.f32.mrf.mxu0
        %v3769 = vadd.f32 0.0, %v3768
        %3770 = vmatmul.bf16.gmra.mxu0 %v3692
        %v3771 = vpop.f32.mrf.mxu0
        %v3772 = vadd.f32 0.0, %v3771
        %v3773 = vpop.f32.mrf.mxu0
        %v3774 = vadd.f32 0.0, %v3773
        %3775 = vmatmul.bf16.gmra.mxu0 %v3695
        %v3776 = vpop.f32.mrf.mxu0
        %v3777 = vadd.f32 0.0, %v3776
        %v3778 = vpop.f32.mrf.mxu0
        %v3779 = vadd.f32 0.0, %v3778
        %3780 = vmatmul.bf16.gmra.mxu0 %v3698
        %v3781 = vpop.f32.mrf.mxu0
        %v3782 = vadd.f32 0.0, %v3781
        %v3783 = vpop.f32.mrf.mxu0
        %v3784 = vadd.f32 0.0, %v3783
        %3785 = vmatmul.bf16.gmra.mxu0 %v3701
        %v3786 = vpop.f32.mrf.mxu0
        %v3787 = vadd.f32 0.0, %v3786
        %v3788 = vpop.f32.mrf.mxu0
        %v3789 = vadd.f32 0.0, %v3788
        %3790 = vmatmul.bf16.gmra.mxu0 %v3704
        %v3791 = vpop.f32.mrf.mxu0
        %v3792 = vadd.f32 0.0, %v3791
        %v3793 = vpop.f32.mrf.mxu0
        %v3794 = vadd.f32 0.0, %v3793
        %3795 = vmatmul.bf16.gmra.mxu0 %v3707
        %v3796 = vpop.f32.mrf.mxu0
        %v3797 = vadd.f32 0.0, %v3796
        %v3798 = vpop.f32.mrf.mxu0
        %v3799 = vadd.f32 0.0, %v3798
        %3800 = vdwg.mxu0
        %v3801 = vadd.f32 %v3579, %v3722
        %v3802 = vadd.f32 %v3580, %v3724
        %v3803 = vadd.f32 %v3581, %v3727
        %v3804 = vadd.f32 %v3582, %v3729
        %v3805 = vadd.f32 %v3583, %v3732
        %v3806 = vadd.f32 %v3584, %v3734
        %v3807 = vadd.f32 %v3585, %v3737
        %v3808 = vadd.f32 %v3586, %v3739
        %v3809 = vadd.f32 %v3587, %v3742
        %v3810 = vadd.f32 %v3588, %v3744
        %v3811 = vadd.f32 %v3589, %v3747
        %v3812 = vadd.f32 %v3590, %v3749
        %v3813 = vadd.f32 %v3591, %v3752
        %v3814 = vadd.f32 %v3592, %v3754
        %v3815 = vadd.f32 %v3593, %v3757
        %v3816 = vadd.f32 %v3594, %v3759
        %v3817 = vadd.f32 %v3595, %v3762
        %v3818 = vadd.f32 %v3596, %v3764
        %v3819 = vadd.f32 %v3597, %v3767
        %v3820 = vadd.f32 %v3598, %v3769
        %v3821 = vadd.f32 %v3599, %v3772
        %v3822 = vadd.f32 %v3600, %v3774
        %v3823 = vadd.f32 %v3601, %v3777
        %v3824 = vadd.f32 %v3602, %v3779
        %v3825 = vadd.f32 %v3603, %v3782
        %v3826 = vadd.f32 %v3604, %v3784
        %v3827 = vadd.f32 %v3605, %v3787
        %v3828 = vadd.f32 %v3606, %v3789
        %v3829 = vadd.f32 %v3607, %v3792
        %v3830 = vadd.f32 %v3608, %v3794
        %v3831 = vadd.f32 %v3609, %v3797
        %v3832 = vadd.f32 %v3610, %v3799
        %v3833 = vld [vmem:[%s2976 + $0x1] sm:$0xff]
        %v3834 = vld [vmem:[%s2976 + $0x9] sm:$0xff]
        %v3835 = vld [vmem:[%s2976 + $0x19] sm:$0xff]
        %v3836 = vld [vmem:[%s2976 + $0x21] sm:$0xff]
        %v3837 = vld [vmem:[%s2976 + $0x31] sm:$0xff]
        %v3838 = vld [vmem:[%s2976 + $0x39] sm:$0xff]
        %v3839 = vld [vmem:[%s2976 + $0x49] sm:$0xff]
        %v3840 = vld [vmem:[%s2976 + $0x51] sm:$0xff]
        %v3841 = vld [vmem:[%s2976 + $0x61] sm:$0xff]
        %v3842 = vld [vmem:[%s2976 + $0x69] sm:$0xff]
        %v3843 = vld [vmem:[%s2976 + $0x79] sm:$0xff]
        %v3844 = vld [vmem:[%s2976 + $0x81] sm:$0xff]
        %v3845 = vld [vmem:[%s2976 + $0x91] sm:$0xff]
        %v3846 = vld [vmem:[%s2976 + $0x99] sm:$0xff]
        %v3847 = vld [vmem:[%s2976 + $0xa9] sm:$0xff]
        %v3848 = vld [vmem:[%s2976 + $0xb1] sm:$0xff]
        %v3849 = vld [vmem:[%s2976 + $0xc1] sm:$0xff]
        %v3850 = vld [vmem:[%s2976 + $0xc9] sm:$0xff]
        %v3851 = vld [vmem:[%s2976 + $0xd9] sm:$0xff]
        %v3852 = vld [vmem:[%s2976 + $0xe1] sm:$0xff]
        %v3853 = vld [vmem:[%s2976 + $0xf1] sm:$0xff]
        %v3854 = vld [vmem:[%s2976 + $0xf9] sm:$0xff]
        %v3855 = vld [vmem:[%s2976 + $0x109] sm:$0xff]
        %v3856 = vld [vmem:[%s2976 + $0x111] sm:$0xff]
        %v3857 = vld [vmem:[%s2976 + $0x121] sm:$0xff]
        %v3858 = vld [vmem:[%s2976 + $0x129] sm:$0xff]
        %v3859 = vld [vmem:[%s2976 + $0x139] sm:$0xff]
        %v3860 = vld [vmem:[%s2976 + $0x141] sm:$0xff]
        %v3861 = vld [vmem:[%s2976 + $0x151] sm:$0xff]
        %v3862 = vld [vmem:[%s2976 + $0x159] sm:$0xff]
        %v3863 = vld [vmem:[%s2976 + $0x169] sm:$0xff]
        %v3864 = vld [vmem:[%s2976 + $0x171] sm:$0xff]
        %v3865 = vpack.c.bf16 %v3834, %v3833
        %v3866 = vpack.c.bf16 %v3836, %v3835
        %v3867 = vpack.c.bf16 %v3838, %v3837
        %v3868 = vpack.c.bf16 %v3840, %v3839
        %v3869 = vpack.c.bf16 %v3842, %v3841
        %v3870 = vpack.c.bf16 %v3844, %v3843
        %v3871 = vpack.c.bf16 %v3846, %v3845
        %v3872 = vpack.c.bf16 %v3848, %v3847
        %v3873 = vpack.c.bf16 %v3850, %v3849
        %v3874 = vpack.c.bf16 %v3852, %v3851
        %v3875 = vpack.c.bf16 %v3854, %v3853
        %v3876 = vpack.c.bf16 %v3856, %v3855
        %v3877 = vpack.c.bf16 %v3858, %v3857
        %v3878 = vpack.c.bf16 %v3860, %v3859
        %v3879 = vpack.c.bf16 %v3862, %v3861
        %v3880 = vpack.c.bf16 %v3864, %v3863
        %s3881 = scalar_lea.vmem [#allocation10], 8
        %v3882 = vld [vmem:[%s3881] sm:$0x3]
        %v3884 = vsel %vm2920, %v3865, 0
        %v3887 = vsel %vm2920, %v3866, 0
        %v3890 = vsel %vm2920, %v3867, 0
        %v3893 = vsel %vm2920, %v3868, 0
        %v3896 = vsel %vm2920, %v3869, 0
        %v3899 = vsel %vm2920, %v3870, 0
        %v3902 = vsel %vm2920, %v3871, 0
        %v3905 = vsel %vm2920, %v3872, 0
        %v3908 = vsel %vm2920, %v3873, 0
        %v3911 = vsel %vm2920, %v3874, 0
        %v3914 = vsel %vm2920, %v3875, 0
        %v3917 = vsel %vm2920, %v3876, 0
        %v3920 = vsel %vm2920, %v3877, 0
        %v3923 = vsel %vm2920, %v3878, 0
        %v3926 = vsel %vm2920, %v3879, 0
        %v3929 = vsel %vm2920, %v3880, 0
        %v3932 = vsel %vm3156, %v3882, 0
        %3934 = vmatpush.bf16.msra.mxu0 0
        %3935 = vmatpush.bf16.msra.mxu0 0
        %3936 = vmatpush.bf16.msra.mxu0 0
        %3937 = vmatpush.bf16.msra.mxu0 0
        %3938 = vmatpush.bf16.msra.mxu0 0
        %3939 = vmatpush.bf16.msra.mxu0 0
        %3940 = vmatpush.bf16.msra.mxu0 0
        %3941 = vmatpush.bf16.msra.mxu0 %v3932
        %3942 = vmatmul.bf16.gmra.mxu0 %v3884
        %v3943 = vpop.f32.mrf.mxu0
        %v3944 = vadd.f32 0.0, %v3943
        %v3945 = vpop.f32.mrf.mxu0
        %v3946 = vadd.f32 0.0, %v3945
        %3947 = vmatmul.bf16.gmra.mxu0 %v3887
        %v3948 = vpop.f32.mrf.mxu0
        %v3949 = vadd.f32 0.0, %v3948
        %v3950 = vpop.f32.mrf.mxu0
        %v3951 = vadd.f32 0.0, %v3950
        %3952 = vmatmul.bf16.gmra.mxu0 %v3890
        %v3953 = vpop.f32.mrf.mxu0
        %v3954 = vadd.f32 0.0, %v3953
        %v3955 = vpop.f32.mrf.mxu0
        %v3956 = vadd.f32 0.0, %v3955
        %3957 = vmatmul.bf16.gmra.mxu0 %v3893
        %v3958 = vpop.f32.mrf.mxu0
        %v3959 = vadd.f32 0.0, %v3958
        %v3960 = vpop.f32.mrf.mxu0
        %v3961 = vadd.f32 0.0, %v3960
        %3962 = vmatmul.bf16.gmra.mxu0 %v3896
        %v3963 = vpop.f32.mrf.mxu0
        %v3964 = vadd.f32 0.0, %v3963
        %v3965 = vpop.f32.mrf.mxu0
        %v3966 = vadd.f32 0.0, %v3965
        %3967 = vmatmul.bf16.gmra.mxu0 %v3899
        %v3968 = vpop.f32.mrf.mxu0
        %v3969 = vadd.f32 0.0, %v3968
        %v3970 = vpop.f32.mrf.mxu0
        %v3971 = vadd.f32 0.0, %v3970
        %3972 = vmatmul.bf16.gmra.mxu0 %v3902
        %v3973 = vpop.f32.mrf.mxu0
        %v3974 = vadd.f32 0.0, %v3973
        %v3975 = vpop.f32.mrf.mxu0
        %v3976 = vadd.f32 0.0, %v3975
        %3977 = vmatmul.bf16.gmra.mxu0 %v3905
        %v3978 = vpop.f32.mrf.mxu0
        %v3979 = vadd.f32 0.0, %v3978
        %v3980 = vpop.f32.mrf.mxu0
        %v3981 = vadd.f32 0.0, %v3980
        %3982 = vmatmul.bf16.gmra.mxu0 %v3908
        %v3983 = vpop.f32.mrf.mxu0
        %v3984 = vadd.f32 0.0, %v3983
        %v3985 = vpop.f32.mrf.mxu0
        %v3986 = vadd.f32 0.0, %v3985
        %3987 = vmatmul.bf16.gmra.mxu0 %v3911
        %v3988 = vpop.f32.mrf.mxu0
        %v3989 = vadd.f32 0.0, %v3988
        %v3990 = vpop.f32.mrf.mxu0
        %v3991 = vadd.f32 0.0, %v3990
        %3992 = vmatmul.bf16.gmra.mxu0 %v3914
        %v3993 = vpop.f32.mrf.mxu0
        %v3994 = vadd.f32 0.0, %v3993
        %v3995 = vpop.f32.mrf.mxu0
        %v3996 = vadd.f32 0.0, %v3995
        %3997 = vmatmul.bf16.gmra.mxu0 %v3917
        %v3998 = vpop.f32.mrf.mxu0
        %v3999 = vadd.f32 0.0, %v3998
        %v4000 = vpop.f32.mrf.mxu0
        %v4001 = vadd.f32 0.0, %v4000
        %4002 = vmatmul.bf16.gmra.mxu0 %v3920
        %v4003 = vpop.f32.mrf.mxu0
        %v4004 = vadd.f32 0.0, %v4003
        %v4005 = vpop.f32.mrf.mxu0
        %v4006 = vadd.f32 0.0, %v4005
        %4007 = vmatmul.bf16.gmra.mxu0 %v3923
        %v4008 = vpop.f32.mrf.mxu0
        %v4009 = vadd.f32 0.0, %v4008
        %v4010 = vpop.f32.mrf.mxu0
        %v4011 = vadd.f32 0.0, %v4010
        %4012 = vmatmul.bf16.gmra.mxu0 %v3926
        %v4013 = vpop.f32.mrf.mxu0
        %v4014 = vadd.f32 0.0, %v4013
        %v4015 = vpop.f32.mrf.mxu0
        %v4016 = vadd.f32 0.0, %v4015
        %4017 = vmatmul.bf16.gmra.mxu0 %v3929
        %v4018 = vpop.f32.mrf.mxu0
        %v4019 = vadd.f32 0.0, %v4018
        %v4020 = vpop.f32.mrf.mxu0
        %v4021 = vadd.f32 0.0, %v4020
        %4022 = vdwg.mxu0
        %v4023 = vadd.f32 %v3801, %v3944
        %v4024 = vadd.f32 %v3802, %v3946
        %v4025 = vadd.f32 %v3803, %v3949
        %v4026 = vadd.f32 %v3804, %v3951
        %v4027 = vadd.f32 %v3805, %v3954
        %v4028 = vadd.f32 %v3806, %v3956
        %v4029 = vadd.f32 %v3807, %v3959
        %v4030 = vadd.f32 %v3808, %v3961
        %v4031 = vadd.f32 %v3809, %v3964
        %v4032 = vadd.f32 %v3810, %v3966
        %v4033 = vadd.f32 %v3811, %v3969
        %v4034 = vadd.f32 %v3812, %v3971
        %v4035 = vadd.f32 %v3813, %v3974
        %v4036 = vadd.f32 %v3814, %v3976
        %v4037 = vadd.f32 %v3815, %v3979
        %v4038 = vadd.f32 %v3816, %v3981
        %v4039 = vadd.f32 %v3817, %v3984
        %v4040 = vadd.f32 %v3818, %v3986
        %v4041 = vadd.f32 %v3819, %v3989
        %v4042 = vadd.f32 %v3820, %v3991
        %v4043 = vadd.f32 %v3821, %v3994
        %v4044 = vadd.f32 %v3822, %v3996
        %v4045 = vadd.f32 %v3823, %v3999
        %v4046 = vadd.f32 %v3824, %v4001
        %v4047 = vadd.f32 %v3825, %v4004
        %v4048 = vadd.f32 %v3826, %v4006
        %v4049 = vadd.f32 %v3827, %v4009
        %v4050 = vadd.f32 %v3828, %v4011
        %v4051 = vadd.f32 %v3829, %v4014
        %v4052 = vadd.f32 %v3830, %v4016
        %v4053 = vadd.f32 %v3831, %v4019
        %v4054 = vadd.f32 %v3832, %v4021
        %v4055 = vld [vmem:[%s2976 + $0x2] sm:$0xff]
        %v4056 = vld [vmem:[%s2976 + $0xa] sm:$0xff]
        %v4057 = vld [vmem:[%s2976 + $0x1a] sm:$0xff]
        %v4058 = vld [vmem:[%s2976 + $0x22] sm:$0xff]
        %v4059 = vld [vmem:[%s2976 + $0x32] sm:$0xff]
        %v4060 = vld [vmem:[%s2976 + $0x3a] sm:$0xff]
        %v4061 = vld [vmem:[%s2976 + $0x4a] sm:$0xff]
        %v4062 = vld [vmem:[%s2976 + $0x52] sm:$0xff]
        %v4063 = vld [vmem:[%s2976 + $0x62] sm:$0xff]
        %v4064 = vld [vmem:[%s2976 + $0x6a] sm:$0xff]
        %v4065 = vld [vmem:[%s2976 + $0x7a] sm:$0xff]
        %v4066 = vld [vmem:[%s2976 + $0x82] sm:$0xff]
        %v4067 = vld [vmem:[%s2976 + $0x92] sm:$0xff]
        %v4068 = vld [vmem:[%s2976 + $0x9a] sm:$0xff]
        %v4069 = vld [vmem:[%s2976 + $0xaa] sm:$0xff]
        %v4070 = vld [vmem:[%s2976 + $0xb2] sm:$0xff]
        %v4071 = vld [vmem:[%s2976 + $0xc2] sm:$0xff]
        %v4072 = vld [vmem:[%s2976 + $0xca] sm:$0xff]
        %v4073 = vld [vmem:[%s2976 + $0xda] sm:$0xff]
        %v4074 = vld [vmem:[%s2976 + $0xe2] sm:$0xff]
        %v4075 = vld [vmem:[%s2976 + $0xf2] sm:$0xff]
        %v4076 = vld [vmem:[%s2976 + $0xfa] sm:$0xff]
        %v4077 = vld [vmem:[%s2976 + $0x10a] sm:$0xff]
        %v4078 = vld [vmem:[%s2976 + $0x112] sm:$0xff]
        %v4079 = vld [vmem:[%s2976 + $0x122] sm:$0xff]
        %v4080 = vld [vmem:[%s2976 + $0x12a] sm:$0xff]
        %v4081 = vld [vmem:[%s2976 + $0x13a] sm:$0xff]
        %v4082 = vld [vmem:[%s2976 + $0x142] sm:$0xff]
        %v4083 = vld [vmem:[%s2976 + $0x152] sm:$0xff]
        %v4084 = vld [vmem:[%s2976 + $0x15a] sm:$0xff]
        %v4085 = vld [vmem:[%s2976 + $0x16a] sm:$0xff]
        %v4086 = vld [vmem:[%s2976 + $0x172] sm:$0xff]
        %v4087 = vpack.c.bf16 %v4056, %v4055
        %v4088 = vpack.c.bf16 %v4058, %v4057
        %v4089 = vpack.c.bf16 %v4060, %v4059
        %v4090 = vpack.c.bf16 %v4062, %v4061
        %v4091 = vpack.c.bf16 %v4064, %v4063
        %v4092 = vpack.c.bf16 %v4066, %v4065
        %v4093 = vpack.c.bf16 %v4068, %v4067
        %v4094 = vpack.c.bf16 %v4070, %v4069
        %v4095 = vpack.c.bf16 %v4072, %v4071
        %v4096 = vpack.c.bf16 %v4074, %v4073
        %v4097 = vpack.c.bf16 %v4076, %v4075
        %v4098 = vpack.c.bf16 %v4078, %v4077
        %v4099 = vpack.c.bf16 %v4080, %v4079
        %v4100 = vpack.c.bf16 %v4082, %v4081
        %v4101 = vpack.c.bf16 %v4084, %v4083
        %v4102 = vpack.c.bf16 %v4086, %v4085
        %s4103 = scalar_lea.vmem [#allocation10], 10
        %v4104 = vld [vmem:[%s4103] sm:$0x3]
        %v4106 = vsel %vm2920, %v4087, 0
        %v4109 = vsel %vm2920, %v4088, 0
        %v4112 = vsel %vm2920, %v4089, 0
        %v4115 = vsel %vm2920, %v4090, 0
        %v4118 = vsel %vm2920, %v4091, 0
        %v4121 = vsel %vm2920, %v4092, 0
        %v4124 = vsel %vm2920, %v4093, 0
        %v4127 = vsel %vm2920, %v4094, 0
        %v4130 = vsel %vm2920, %v4095, 0
        %v4133 = vsel %vm2920, %v4096, 0
        %v4136 = vsel %vm2920, %v4097, 0
        %v4139 = vsel %vm2920, %v4098, 0
        %v4142 = vsel %vm2920, %v4099, 0
        %v4145 = vsel %vm2920, %v4100, 0
        %v4148 = vsel %vm2920, %v4101, 0
        %v4151 = vsel %vm2920, %v4102, 0
        %v4154 = vsel %vm3156, %v4104, 0
        %4156 = vmatpush.bf16.msra.mxu0 0
        %4157 = vmatpush.bf16.msra.mxu0 0
        %4158 = vmatpush.bf16.msra.mxu0 0
        %4159 = vmatpush.bf16.msra.mxu0 0
        %4160 = vmatpush.bf16.msra.mxu0 0
        %4161 = vmatpush.bf16.msra.mxu0 0
        %4162 = vmatpush.bf16.msra.mxu0 0
        %4163 = vmatpush.bf16.msra.mxu0 %v4154
        %4164 = vmatmul.bf16.gmra.mxu0 %v4106
        %v4165 = vpop.f32.mrf.mxu0
        %v4166 = vadd.f32 0.0, %v4165
        %v4167 = vpop.f32.mrf.mxu0
        %v4168 = vadd.f32 0.0, %v4167
        %4169 = vmatmul.bf16.gmra.mxu0 %v4109
        %v4170 = vpop.f32.mrf.mxu0
        %v4171 = vadd.f32 0.0, %v4170
        %v4172 = vpop.f32.mrf.mxu0
        %v4173 = vadd.f32 0.0, %v4172
        %4174 = vmatmul.bf16.gmra.mxu0 %v4112
        %v4175 = vpop.f32.mrf.mxu0
        %v4176 = vadd.f32 0.0, %v4175
        %v4177 = vpop.f32.mrf.mxu0
        %v4178 = vadd.f32 0.0, %v4177
        %4179 = vmatmul.bf16.gmra.mxu0 %v4115
        %v4180 = vpop.f32.mrf.mxu0
        %v4181 = vadd.f32 0.0, %v4180
        %v4182 = vpop.f32.mrf.mxu0
        %v4183 = vadd.f32 0.0, %v4182
        %4184 = vmatmul.bf16.gmra.mxu0 %v4118
        %v4185 = vpop.f32.mrf.mxu0
        %v4186 = vadd.f32 0.0, %v4185
        %v4187 = vpop.f32.mrf.mxu0
        %v4188 = vadd.f32 0.0, %v4187
        %4189 = vmatmul.bf16.gmra.mxu0 %v4121
        %v4190 = vpop.f32.mrf.mxu0
        %v4191 = vadd.f32 0.0, %v4190
        %v4192 = vpop.f32.mrf.mxu0
        %v4193 = vadd.f32 0.0, %v4192
        %4194 = vmatmul.bf16.gmra.mxu0 %v4124
        %v4195 = vpop.f32.mrf.mxu0
        %v4196 = vadd.f32 0.0, %v4195
        %v4197 = vpop.f32.mrf.mxu0
        %v4198 = vadd.f32 0.0, %v4197
        %4199 = vmatmul.bf16.gmra.mxu0 %v4127
        %v4200 = vpop.f32.mrf.mxu0
        %v4201 = vadd.f32 0.0, %v4200
        %v4202 = vpop.f32.mrf.mxu0
        %v4203 = vadd.f32 0.0, %v4202
        %4204 = vmatmul.bf16.gmra.mxu0 %v4130
        %v4205 = vpop.f32.mrf.mxu0
        %v4206 = vadd.f32 0.0, %v4205
        %v4207 = vpop.f32.mrf.mxu0
        %v4208 = vadd.f32 0.0, %v4207
        %4209 = vmatmul.bf16.gmra.mxu0 %v4133
        %v4210 = vpop.f32.mrf.mxu0
        %v4211 = vadd.f32 0.0, %v4210
        %v4212 = vpop.f32.mrf.mxu0
        %v4213 = vadd.f32 0.0, %v4212
        %4214 = vmatmul.bf16.gmra.mxu0 %v4136
        %v4215 = vpop.f32.mrf.mxu0
        %v4216 = vadd.f32 0.0, %v4215
        %v4217 = vpop.f32.mrf.mxu0
        %v4218 = vadd.f32 0.0, %v4217
        %4219 = vmatmul.bf16.gmra.mxu0 %v4139
        %v4220 = vpop.f32.mrf.mxu0
        %v4221 = vadd.f32 0.0, %v4220
        %v4222 = vpop.f32.mrf.mxu0
        %v4223 = vadd.f32 0.0, %v4222
        %4224 = vmatmul.bf16.gmra.mxu0 %v4142
        %v4225 = vpop.f32.mrf.mxu0
        %v4226 = vadd.f32 0.0, %v4225
        %v4227 = vpop.f32.mrf.mxu0
        %v4228 = vadd.f32 0.0, %v4227
        %4229 = vmatmul.bf16.gmra.mxu0 %v4145
        %v4230 = vpop.f32.mrf.mxu0
        %v4231 = vadd.f32 0.0, %v4230
        %v4232 = vpop.f32.mrf.mxu0
        %v4233 = vadd.f32 0.0, %v4232
        %4234 = vmatmul.bf16.gmra.mxu0 %v4148
        %v4235 = vpop.f32.mrf.mxu0
        %v4236 = vadd.f32 0.0, %v4235
        %v4237 = vpop.f32.mrf.mxu0
        %v4238 = vadd.f32 0.0, %v4237
        %4239 = vmatmul.bf16.gmra.mxu0 %v4151
        %v4240 = vpop.f32.mrf.mxu0
        %v4241 = vadd.f32 0.0, %v4240
        %v4242 = vpop.f32.mrf.mxu0
        %v4243 = vadd.f32 0.0, %v4242
        %4244 = vdwg.mxu0
        %v4245 = vadd.f32 %v4023, %v4166
        %v4246 = vadd.f32 %v4024, %v4168
        %v4247 = vadd.f32 %v4025, %v4171
        %v4248 = vadd.f32 %v4026, %v4173
        %v4249 = vadd.f32 %v4027, %v4176
        %v4250 = vadd.f32 %v4028, %v4178
        %v4251 = vadd.f32 %v4029, %v4181
        %v4252 = vadd.f32 %v4030, %v4183
        %v4253 = vadd.f32 %v4031, %v4186
        %v4254 = vadd.f32 %v4032, %v4188
        %v4255 = vadd.f32 %v4033, %v4191
        %v4256 = vadd.f32 %v4034, %v4193
        %v4257 = vadd.f32 %v4035, %v4196
        %v4258 = vadd.f32 %v4036, %v4198
        %v4259 = vadd.f32 %v4037, %v4201
        %v4260 = vadd.f32 %v4038, %v4203
        %v4261 = vadd.f32 %v4039, %v4206
        %v4262 = vadd.f32 %v4040, %v4208
        %v4263 = vadd.f32 %v4041, %v4211
        %v4264 = vadd.f32 %v4042, %v4213
        %v4265 = vadd.f32 %v4043, %v4216
        %v4266 = vadd.f32 %v4044, %v4218
        %v4267 = vadd.f32 %v4045, %v4221
        %v4268 = vadd.f32 %v4046, %v4223
        %v4269 = vadd.f32 %v4047, %v4226
        %v4270 = vadd.f32 %v4048, %v4228
        %v4271 = vadd.f32 %v4049, %v4231
        %v4272 = vadd.f32 %v4050, %v4233
        %v4273 = vadd.f32 %v4051, %v4236
        %v4274 = vadd.f32 %v4052, %v4238
        %v4275 = vadd.f32 %v4053, %v4241
        %v4276 = vadd.f32 %v4054, %v4243
        %s4277 = scalar_lea.vmem [#allocation3], 48
        %v4278 = vld [vmem:[%s4277] sm:$0xff]
        %v4279 = vld [vmem:[%s4277 + $0x8] sm:$0xff]
        %v4280 = vld [vmem:[%s4277 + $0x18] sm:$0xff]
        %v4281 = vld [vmem:[%s4277 + $0x20] sm:$0xff]
        %v4282 = vld [vmem:[%s4277 + $0x30] sm:$0xff]
        %v4283 = vld [vmem:[%s4277 + $0x38] sm:$0xff]
        %v4284 = vld [vmem:[%s4277 + $0x48] sm:$0xff]
        %v4285 = vld [vmem:[%s4277 + $0x50] sm:$0xff]
        %v4286 = vld [vmem:[%s4277 + $0x60] sm:$0xff]
        %v4287 = vld [vmem:[%s4277 + $0x68] sm:$0xff]
        %v4288 = vld [vmem:[%s4277 + $0x78] sm:$0xff]
        %v4289 = vld [vmem:[%s4277 + $0x80] sm:$0xff]
        %v4290 = vld [vmem:[%s4277 + $0x90] sm:$0xff]
        %v4291 = vld [vmem:[%s4277 + $0x98] sm:$0xff]
        %v4292 = vld [vmem:[%s4277 + $0xa8] sm:$0xff]
        %v4293 = vld [vmem:[%s4277 + $0xb0] sm:$0xff]
        %v4294 = vld [vmem:[%s4277 + $0xc0] sm:$0xff]
        %v4295 = vld [vmem:[%s4277 + $0xc8] sm:$0xff]
        %v4296 = vld [vmem:[%s4277 + $0xd8] sm:$0xff]
        %v4297 = vld [vmem:[%s4277 + $0xe0] sm:$0xff]
        %v4298 = vld [vmem:[%s4277 + $0xf0] sm:$0xff]
        %v4299 = vld [vmem:[%s4277 + $0xf8] sm:$0xff]
        %v4300 = vld [vmem:[%s4277 + $0x108] sm:$0xff]
        %v4301 = vld [vmem:[%s4277 + $0x110] sm:$0xff]
        %v4302 = vld [vmem:[%s4277 + $0x120] sm:$0xff]
        %v4303 = vld [vmem:[%s4277 + $0x128] sm:$0xff]
        %v4304 = vld [vmem:[%s4277 + $0x138] sm:$0xff]
        %v4305 = vld [vmem:[%s4277 + $0x140] sm:$0xff]
        %v4306 = vld [vmem:[%s4277 + $0x150] sm:$0xff]
        %v4307 = vld [vmem:[%s4277 + $0x158] sm:$0xff]
        %v4308 = vld [vmem:[%s4277 + $0x168] sm:$0xff]
        %v4309 = vld [vmem:[%s4277 + $0x170] sm:$0xff]
        %v4310 = vpack.c.bf16 %v4279, %v4278
        %v4311 = vpack.c.bf16 %v4281, %v4280
        %v4312 = vpack.c.bf16 %v4283, %v4282
        %v4313 = vpack.c.bf16 %v4285, %v4284
        %v4314 = vpack.c.bf16 %v4287, %v4286
        %v4315 = vpack.c.bf16 %v4289, %v4288
        %v4316 = vpack.c.bf16 %v4291, %v4290
        %v4317 = vpack.c.bf16 %v4293, %v4292
        %v4318 = vpack.c.bf16 %v4295, %v4294
        %v4319 = vpack.c.bf16 %v4297, %v4296
        %v4320 = vpack.c.bf16 %v4299, %v4298
        %v4321 = vpack.c.bf16 %v4301, %v4300
        %v4322 = vpack.c.bf16 %v4303, %v4302
        %v4323 = vpack.c.bf16 %v4305, %v4304
        %v4324 = vpack.c.bf16 %v4307, %v4306
        %v4325 = vpack.c.bf16 %v4309, %v4308
        %s4326 = scalar_lea.vmem [#allocation10], 12
        %v4327 = vld [vmem:[%s4326] sm:$0x3]
        %v4329 = vsel %vm2920, %v4310, 0
        %v4332 = vsel %vm2920, %v4311, 0
        %v4335 = vsel %vm2920, %v4312, 0
        %v4338 = vsel %vm2920, %v4313, 0
        %v4341 = vsel %vm2920, %v4314, 0
        %v4344 = vsel %vm2920, %v4315, 0
        %v4347 = vsel %vm2920, %v4316, 0
        %v4350 = vsel %vm2920, %v4317, 0
        %v4353 = vsel %vm2920, %v4318, 0
        %v4356 = vsel %vm2920, %v4319, 0
        %v4359 = vsel %vm2920, %v4320, 0
        %v4362 = vsel %vm2920, %v4321, 0
        %v4365 = vsel %vm2920, %v4322, 0
        %v4368 = vsel %vm2920, %v4323, 0
        %v4371 = vsel %vm2920, %v4324, 0
        %v4374 = vsel %vm2920, %v4325, 0
        %v4377 = vsel %vm3156, %v4327, 0
        %4379 = vmatpush.bf16.msra.mxu0 0
        %4380 = vmatpush.bf16.msra.mxu0 0
        %4381 = vmatpush.bf16.msra.mxu0 0
        %4382 = vmatpush.bf16.msra.mxu0 0
        %4383 = vmatpush.bf16.msra.mxu0 0
        %4384 = vmatpush.bf16.msra.mxu0 0
        %4385 = vmatpush.bf16.msra.mxu0 0
        %4386 = vmatpush.bf16.msra.mxu0 %v4377
        %4387 = vmatmul.bf16.gmra.mxu0 %v4329
        %v4388 = vpop.f32.mrf.mxu0
        %v4389 = vadd.f32 0.0, %v4388
        %v4390 = vpop.f32.mrf.mxu0
        %v4391 = vadd.f32 0.0, %v4390
        %4392 = vmatmul.bf16.gmra.mxu0 %v4332
        %v4393 = vpop.f32.mrf.mxu0
        %v4394 = vadd.f32 0.0, %v4393
        %v4395 = vpop.f32.mrf.mxu0
        %v4396 = vadd.f32 0.0, %v4395
        %4397 = vmatmul.bf16.gmra.mxu0 %v4335
        %v4398 = vpop.f32.mrf.mxu0
        %v4399 = vadd.f32 0.0, %v4398
        %v4400 = vpop.f32.mrf.mxu0
        %v4401 = vadd.f32 0.0, %v4400
        %4402 = vmatmul.bf16.gmra.mxu0 %v4338
        %v4403 = vpop.f32.mrf.mxu0
        %v4404 = vadd.f32 0.0, %v4403
        %v4405 = vpop.f32.mrf.mxu0
        %v4406 = vadd.f32 0.0, %v4405
        %4407 = vmatmul.bf16.gmra.mxu0 %v4341
        %v4408 = vpop.f32.mrf.mxu0
        %v4409 = vadd.f32 0.0, %v4408
        %v4410 = vpop.f32.mrf.mxu0
        %v4411 = vadd.f32 0.0, %v4410
        %4412 = vmatmul.bf16.gmra.mxu0 %v4344
        %v4413 = vpop.f32.mrf.mxu0
        %v4414 = vadd.f32 0.0, %v4413
        %v4415 = vpop.f32.mrf.mxu0
        %v4416 = vadd.f32 0.0, %v4415
        %4417 = vmatmul.bf16.gmra.mxu0 %v4347
        %v4418 = vpop.f32.mrf.mxu0
        %v4419 = vadd.f32 0.0, %v4418
        %v4420 = vpop.f32.mrf.mxu0
        %v4421 = vadd.f32 0.0, %v4420
        %4422 = vmatmul.bf16.gmra.mxu0 %v4350
        %v4423 = vpop.f32.mrf.mxu0
        %v4424 = vadd.f32 0.0, %v4423
        %v4425 = vpop.f32.mrf.mxu0
        %v4426 = vadd.f32 0.0, %v4425
        %4427 = vmatmul.bf16.gmra.mxu0 %v4353
        %v4428 = vpop.f32.mrf.mxu0
        %v4429 = vadd.f32 0.0, %v4428
        %v4430 = vpop.f32.mrf.mxu0
        %v4431 = vadd.f32 0.0, %v4430
        %4432 = vmatmul.bf16.gmra.mxu0 %v4356
        %v4433 = vpop.f32.mrf.mxu0
        %v4434 = vadd.f32 0.0, %v4433
        %v4435 = vpop.f32.mrf.mxu0
        %v4436 = vadd.f32 0.0, %v4435
        %4437 = vmatmul.bf16.gmra.mxu0 %v4359
        %v4438 = vpop.f32.mrf.mxu0
        %v4439 = vadd.f32 0.0, %v4438
        %v4440 = vpop.f32.mrf.mxu0
        %v4441 = vadd.f32 0.0, %v4440
        %4442 = vmatmul.bf16.gmra.mxu0 %v4362
        %v4443 = vpop.f32.mrf.mxu0
        %v4444 = vadd.f32 0.0, %v4443
        %v4445 = vpop.f32.mrf.mxu0
        %v4446 = vadd.f32 0.0, %v4445
        %4447 = vmatmul.bf16.gmra.mxu0 %v4365
        %v4448 = vpop.f32.mrf.mxu0
        %v4449 = vadd.f32 0.0, %v4448
        %v4450 = vpop.f32.mrf.mxu0
        %v4451 = vadd.f32 0.0, %v4450
        %4452 = vmatmul.bf16.gmra.mxu0 %v4368
        %v4453 = vpop.f32.mrf.mxu0
        %v4454 = vadd.f32 0.0, %v4453
        %v4455 = vpop.f32.mrf.mxu0
        %v4456 = vadd.f32 0.0, %v4455
        %4457 = vmatmul.bf16.gmra.mxu0 %v4371
        %v4458 = vpop.f32.mrf.mxu0
        %v4459 = vadd.f32 0.0, %v4458
        %v4460 = vpop.f32.mrf.mxu0
        %v4461 = vadd.f32 0.0, %v4460
        %4462 = vmatmul.bf16.gmra.mxu0 %v4374
        %v4463 = vpop.f32.mrf.mxu0
        %v4464 = vadd.f32 0.0, %v4463
        %v4465 = vpop.f32.mrf.mxu0
        %v4466 = vadd.f32 0.0, %v4465
        %4467 = vdwg.mxu0
        %v4468 = vadd.f32 %v4245, %v4389
        %v4469 = vadd.f32 %v4246, %v4391
        %v4470 = vadd.f32 %v4247, %v4394
        %v4471 = vadd.f32 %v4248, %v4396
        %v4472 = vadd.f32 %v4249, %v4399
        %v4473 = vadd.f32 %v4250, %v4401
        %v4474 = vadd.f32 %v4251, %v4404
        %v4475 = vadd.f32 %v4252, %v4406
        %v4476 = vadd.f32 %v4253, %v4409
        %v4477 = vadd.f32 %v4254, %v4411
        %v4478 = vadd.f32 %v4255, %v4414
        %v4479 = vadd.f32 %v4256, %v4416
        %v4480 = vadd.f32 %v4257, %v4419
        %v4481 = vadd.f32 %v4258, %v4421
        %v4482 = vadd.f32 %v4259, %v4424
        %v4483 = vadd.f32 %v4260, %v4426
        %v4484 = vadd.f32 %v4261, %v4429
        %v4485 = vadd.f32 %v4262, %v4431
        %v4486 = vadd.f32 %v4263, %v4434
        %v4487 = vadd.f32 %v4264, %v4436
        %v4488 = vadd.f32 %v4265, %v4439
        %v4489 = vadd.f32 %v4266, %v4441
        %v4490 = vadd.f32 %v4267, %v4444
        %v4491 = vadd.f32 %v4268, %v4446
        %v4492 = vadd.f32 %v4269, %v4449
        %v4493 = vadd.f32 %v4270, %v4451
        %v4494 = vadd.f32 %v4271, %v4454
        %v4495 = vadd.f32 %v4272, %v4456
        %v4496 = vadd.f32 %v4273, %v4459
        %v4497 = vadd.f32 %v4274, %v4461
        %v4498 = vadd.f32 %v4275, %v4464
        %v4499 = vadd.f32 %v4276, %v4466
        %v4500 = vld [vmem:[%s4277 + $0x1] sm:$0xff]
        %v4501 = vld [vmem:[%s4277 + $0x9] sm:$0xff]
        %v4502 = vld [vmem:[%s4277 + $0x19] sm:$0xff]
        %v4503 = vld [vmem:[%s4277 + $0x21] sm:$0xff]
        %v4504 = vld [vmem:[%s4277 + $0x31] sm:$0xff]
        %v4505 = vld [vmem:[%s4277 + $0x39] sm:$0xff]
        %v4506 = vld [vmem:[%s4277 + $0x49] sm:$0xff]
        %v4507 = vld [vmem:[%s4277 + $0x51] sm:$0xff]
        %v4508 = vld [vmem:[%s4277 + $0x61] sm:$0xff]
        %v4509 = vld [vmem:[%s4277 + $0x69] sm:$0xff]
        %v4510 = vld [vmem:[%s4277 + $0x79] sm:$0xff]
        %v4511 = vld [vmem:[%s4277 + $0x81] sm:$0xff]
        %v4512 = vld [vmem:[%s4277 + $0x91] sm:$0xff]
        %v4513 = vld [vmem:[%s4277 + $0x99] sm:$0xff]
        %v4514 = vld [vmem:[%s4277 + $0xa9] sm:$0xff]
        %v4515 = vld [vmem:[%s4277 + $0xb1] sm:$0xff]
        %v4516 = vld [vmem:[%s4277 + $0xc1] sm:$0xff]
        %v4517 = vld [vmem:[%s4277 + $0xc9] sm:$0xff]
        %v4518 = vld [vmem:[%s4277 + $0xd9] sm:$0xff]
        %v4519 = vld [vmem:[%s4277 + $0xe1] sm:$0xff]
        %v4520 = vld [vmem:[%s4277 + $0xf1] sm:$0xff]
        %v4521 = vld [vmem:[%s4277 + $0xf9] sm:$0xff]
        %v4522 = vld [vmem:[%s4277 + $0x109] sm:$0xff]
        %v4523 = vld [vmem:[%s4277 + $0x111] sm:$0xff]
        %v4524 = vld [vmem:[%s4277 + $0x121] sm:$0xff]
        %v4525 = vld [vmem:[%s4277 + $0x129] sm:$0xff]
        %v4526 = vld [vmem:[%s4277 + $0x139] sm:$0xff]
        %v4527 = vld [vmem:[%s4277 + $0x141] sm:$0xff]
        %v4528 = vld [vmem:[%s4277 + $0x151] sm:$0xff]
        %v4529 = vld [vmem:[%s4277 + $0x159] sm:$0xff]
        %v4530 = vld [vmem:[%s4277 + $0x169] sm:$0xff]
        %v4531 = vld [vmem:[%s4277 + $0x171] sm:$0xff]
        %v4532 = vpack.c.bf16 %v4501, %v4500
        %v4533 = vpack.c.bf16 %v4503, %v4502
        %v4534 = vpack.c.bf16 %v4505, %v4504
        %v4535 = vpack.c.bf16 %v4507, %v4506
        %v4536 = vpack.c.bf16 %v4509, %v4508
        %v4537 = vpack.c.bf16 %v4511, %v4510
        %v4538 = vpack.c.bf16 %v4513, %v4512
        %v4539 = vpack.c.bf16 %v4515, %v4514
        %v4540 = vpack.c.bf16 %v4517, %v4516
        %v4541 = vpack.c.bf16 %v4519, %v4518
        %v4542 = vpack.c.bf16 %v4521, %v4520
        %v4543 = vpack.c.bf16 %v4523, %v4522
        %v4544 = vpack.c.bf16 %v4525, %v4524
        %v4545 = vpack.c.bf16 %v4527, %v4526
        %v4546 = vpack.c.bf16 %v4529, %v4528
        %v4547 = vpack.c.bf16 %v4531, %v4530
        %s4548 = scalar_lea.vmem [#allocation10], 14
        %v4549 = vld [vmem:[%s4548] sm:$0x3]
        %v4551 = vsel %vm2920, %v4532, 0
        %v4554 = vsel %vm2920, %v4533, 0
        %v4557 = vsel %vm2920, %v4534, 0
        %v4560 = vsel %vm2920, %v4535, 0
        %v4563 = vsel %vm2920, %v4536, 0
        %v4566 = vsel %vm2920, %v4537, 0
        %v4569 = vsel %vm2920, %v4538, 0
        %v4572 = vsel %vm2920, %v4539, 0
        %v4575 = vsel %vm2920, %v4540, 0
        %v4578 = vsel %vm2920, %v4541, 0
        %v4581 = vsel %vm2920, %v4542, 0
        %v4584 = vsel %vm2920, %v4543, 0
        %v4587 = vsel %vm2920, %v4544, 0
        %v4590 = vsel %vm2920, %v4545, 0
        %v4593 = vsel %vm2920, %v4546, 0
        %v4596 = vsel %vm2920, %v4547, 0
        %v4599 = vsel %vm3156, %v4549, 0
        %4601 = vmatpush.bf16.msra.mxu0 0
        %4602 = vmatpush.bf16.msra.mxu0 0
        %4603 = vmatpush.bf16.msra.mxu0 0
        %4604 = vmatpush.bf16.msra.mxu0 0
        %4605 = vmatpush.bf16.msra.mxu0 0
        %4606 = vmatpush.bf16.msra.mxu0 0
        %4607 = vmatpush.bf16.msra.mxu0 0
        %4608 = vmatpush.bf16.msra.mxu0 %v4599
        %4609 = vmatmul.bf16.gmra.mxu0 %v4551
        %v4610 = vpop.f32.mrf.mxu0
        %v4611 = vadd.f32 0.0, %v4610
        %v4612 = vpop.f32.mrf.mxu0
        %v4613 = vadd.f32 0.0, %v4612
        %4614 = vmatmul.bf16.gmra.mxu0 %v4554
        %v4615 = vpop.f32.mrf.mxu0
        %v4616 = vadd.f32 0.0, %v4615
        %v4617 = vpop.f32.mrf.mxu0
        %v4618 = vadd.f32 0.0, %v4617
        %4619 = vmatmul.bf16.gmra.mxu0 %v4557
        %v4620 = vpop.f32.mrf.mxu0
        %v4621 = vadd.f32 0.0, %v4620
        %v4622 = vpop.f32.mrf.mxu0
        %v4623 = vadd.f32 0.0, %v4622
        %4624 = vmatmul.bf16.gmra.mxu0 %v4560
        %v4625 = vpop.f32.mrf.mxu0
        %v4626 = vadd.f32 0.0, %v4625
        %v4627 = vpop.f32.mrf.mxu0
        %v4628 = vadd.f32 0.0, %v4627
        %4629 = vmatmul.bf16.gmra.mxu0 %v4563
        %v4630 = vpop.f32.mrf.mxu0
        %v4631 = vadd.f32 0.0, %v4630
        %v4632 = vpop.f32.mrf.mxu0
        %v4633 = vadd.f32 0.0, %v4632
        %4634 = vmatmul.bf16.gmra.mxu0 %v4566
        %v4635 = vpop.f32.mrf.mxu0
        %v4636 = vadd.f32 0.0, %v4635
        %v4637 = vpop.f32.mrf.mxu0
        %v4638 = vadd.f32 0.0, %v4637
        %4639 = vmatmul.bf16.gmra.mxu0 %v4569
        %v4640 = vpop.f32.mrf.mxu0
        %v4641 = vadd.f32 0.0, %v4640
        %v4642 = vpop.f32.mrf.mxu0
        %v4643 = vadd.f32 0.0, %v4642
        %4644 = vmatmul.bf16.gmra.mxu0 %v4572
        %v4645 = vpop.f32.mrf.mxu0
        %v4646 = vadd.f32 0.0, %v4645
        %v4647 = vpop.f32.mrf.mxu0
        %v4648 = vadd.f32 0.0, %v4647
        %4649 = vmatmul.bf16.gmra.mxu0 %v4575
        %v4650 = vpop.f32.mrf.mxu0
        %v4651 = vadd.f32 0.0, %v4650
        %v4652 = vpop.f32.mrf.mxu0
        %v4653 = vadd.f32 0.0, %v4652
        %4654 = vmatmul.bf16.gmra.mxu0 %v4578
        %v4655 = vpop.f32.mrf.mxu0
        %v4656 = vadd.f32 0.0, %v4655
        %v4657 = vpop.f32.mrf.mxu0
        %v4658 = vadd.f32 0.0, %v4657
        %4659 = vmatmul.bf16.gmra.mxu0 %v4581
        %v4660 = vpop.f32.mrf.mxu0
        %v4661 = vadd.f32 0.0, %v4660
        %v4662 = vpop.f32.mrf.mxu0
        %v4663 = vadd.f32 0.0, %v4662
        %4664 = vmatmul.bf16.gmra.mxu0 %v4584
        %v4665 = vpop.f32.mrf.mxu0
        %v4666 = vadd.f32 0.0, %v4665
        %v4667 = vpop.f32.mrf.mxu0
        %v4668 = vadd.f32 0.0, %v4667
        %4669 = vmatmul.bf16.gmra.mxu0 %v4587
        %v4670 = vpop.f32.mrf.mxu0
        %v4671 = vadd.f32 0.0, %v4670
        %v4672 = vpop.f32.mrf.mxu0
        %v4673 = vadd.f32 0.0, %v4672
        %4674 = vmatmul.bf16.gmra.mxu0 %v4590
        %v4675 = vpop.f32.mrf.mxu0
        %v4676 = vadd.f32 0.0, %v4675
        %v4677 = vpop.f32.mrf.mxu0
        %v4678 = vadd.f32 0.0, %v4677
        %4679 = vmatmul.bf16.gmra.mxu0 %v4593
        %v4680 = vpop.f32.mrf.mxu0
        %v4681 = vadd.f32 0.0, %v4680
        %v4682 = vpop.f32.mrf.mxu0
        %v4683 = vadd.f32 0.0, %v4682
        %4684 = vmatmul.bf16.gmra.mxu0 %v4596
        %v4685 = vpop.f32.mrf.mxu0
        %v4686 = vadd.f32 0.0, %v4685
        %v4687 = vpop.f32.mrf.mxu0
        %v4688 = vadd.f32 0.0, %v4687
        %4689 = vdwg.mxu0
        %v4690 = vadd.f32 %v4468, %v4611
        %v4691 = vadd.f32 %v4469, %v4613
        %v4692 = vadd.f32 %v4470, %v4616
        %v4693 = vadd.f32 %v4471, %v4618
        %v4694 = vadd.f32 %v4472, %v4621
        %v4695 = vadd.f32 %v4473, %v4623
        %v4696 = vadd.f32 %v4474, %v4626
        %v4697 = vadd.f32 %v4475, %v4628
        %v4698 = vadd.f32 %v4476, %v4631
        %v4699 = vadd.f32 %v4477, %v4633
        %v4700 = vadd.f32 %v4478, %v4636
        %v4701 = vadd.f32 %v4479, %v4638
        %v4702 = vadd.f32 %v4480, %v4641
        %v4703 = vadd.f32 %v4481, %v4643
        %v4704 = vadd.f32 %v4482, %v4646
        %v4705 = vadd.f32 %v4483, %v4648
        %v4706 = vadd.f32 %v4484, %v4651
        %v4707 = vadd.f32 %v4485, %v4653
        %v4708 = vadd.f32 %v4486, %v4656
        %v4709 = vadd.f32 %v4487, %v4658
        %v4710 = vadd.f32 %v4488, %v4661
        %v4711 = vadd.f32 %v4489, %v4663
        %v4712 = vadd.f32 %v4490, %v4666
        %v4713 = vadd.f32 %v4491, %v4668
        %v4714 = vadd.f32 %v4492, %v4671
        %v4715 = vadd.f32 %v4493, %v4673
        %v4716 = vadd.f32 %v4494, %v4676
        %v4717 = vadd.f32 %v4495, %v4678
        %v4718 = vadd.f32 %v4496, %v4681
        %v4719 = vadd.f32 %v4497, %v4683
        %v4720 = vadd.f32 %v4498, %v4686
        %v4721 = vadd.f32 %v4499, %v4688
        %v4722 = vld [vmem:[%s4277 + $0x2] sm:$0xff]
        %v4723 = vld [vmem:[%s4277 + $0xa] sm:$0xff]
        %v4724 = vld [vmem:[%s4277 + $0x1a] sm:$0xff]
        %v4725 = vld [vmem:[%s4277 + $0x22] sm:$0xff]
        %v4726 = vld [vmem:[%s4277 + $0x32] sm:$0xff]
        %v4727 = vld [vmem:[%s4277 + $0x3a] sm:$0xff]
        %v4728 = vld [vmem:[%s4277 + $0x4a] sm:$0xff]
        %v4729 = vld [vmem:[%s4277 + $0x52] sm:$0xff]
        %v4730 = vld [vmem:[%s4277 + $0x62] sm:$0xff]
        %v4731 = vld [vmem:[%s4277 + $0x6a] sm:$0xff]
        %v4732 = vld [vmem:[%s4277 + $0x7a] sm:$0xff]
        %v4733 = vld [vmem:[%s4277 + $0x82] sm:$0xff]
        %v4734 = vld [vmem:[%s4277 + $0x92] sm:$0xff]
        %v4735 = vld [vmem:[%s4277 + $0x9a] sm:$0xff]
        %v4736 = vld [vmem:[%s4277 + $0xaa] sm:$0xff]
        %v4737 = vld [vmem:[%s4277 + $0xb2] sm:$0xff]
        %v4738 = vld [vmem:[%s4277 + $0xc2] sm:$0xff]
        %v4739 = vld [vmem:[%s4277 + $0xca] sm:$0xff]
        %v4740 = vld [vmem:[%s4277 + $0xda] sm:$0xff]
        %v4741 = vld [vmem:[%s4277 + $0xe2] sm:$0xff]
        %v4742 = vld [vmem:[%s4277 + $0xf2] sm:$0xff]
        %v4743 = vld [vmem:[%s4277 + $0xfa] sm:$0xff]
        %v4744 = vld [vmem:[%s4277 + $0x10a] sm:$0xff]
        %v4745 = vld [vmem:[%s4277 + $0x112] sm:$0xff]
        %v4746 = vld [vmem:[%s4277 + $0x122] sm:$0xff]
        %v4747 = vld [vmem:[%s4277 + $0x12a] sm:$0xff]
        %v4748 = vld [vmem:[%s4277 + $0x13a] sm:$0xff]
        %v4749 = vld [vmem:[%s4277 + $0x142] sm:$0xff]
        %v4750 = vld [vmem:[%s4277 + $0x152] sm:$0xff]
        %v4751 = vld [vmem:[%s4277 + $0x15a] sm:$0xff]
        %v4752 = vld [vmem:[%s4277 + $0x16a] sm:$0xff]
        %v4753 = vld [vmem:[%s4277 + $0x172] sm:$0xff]
        %v4754 = vpack.c.bf16 %v4723, %v4722
        %v4755 = vpack.c.bf16 %v4725, %v4724
        %v4756 = vpack.c.bf16 %v4727, %v4726
        %v4757 = vpack.c.bf16 %v4729, %v4728
        %v4758 = vpack.c.bf16 %v4731, %v4730
        %v4759 = vpack.c.bf16 %v4733, %v4732
        %v4760 = vpack.c.bf16 %v4735, %v4734
        %v4761 = vpack.c.bf16 %v4737, %v4736
        %v4762 = vpack.c.bf16 %v4739, %v4738
        %v4763 = vpack.c.bf16 %v4741, %v4740
        %v4764 = vpack.c.bf16 %v4743, %v4742
        %v4765 = vpack.c.bf16 %v4745, %v4744
        %v4766 = vpack.c.bf16 %v4747, %v4746
        %v4767 = vpack.c.bf16 %v4749, %v4748
        %v4768 = vpack.c.bf16 %v4751, %v4750
        %v4769 = vpack.c.bf16 %v4753, %v4752
        %s4770 = scalar_lea.vmem [#allocation10], 16
        %v4771 = vld [vmem:[%s4770] sm:$0x3]
        %v4773 = vsel %vm2920, %v4754, 0
        %v4776 = vsel %vm2920, %v4755, 0
        %v4779 = vsel %vm2920, %v4756, 0
        %v4782 = vsel %vm2920, %v4757, 0
        %v4785 = vsel %vm2920, %v4758, 0
        %v4788 = vsel %vm2920, %v4759, 0
        %v4791 = vsel %vm2920, %v4760, 0
        %v4794 = vsel %vm2920, %v4761, 0
        %v4797 = vsel %vm2920, %v4762, 0
        %v4800 = vsel %vm2920, %v4763, 0
        %v4803 = vsel %vm2920, %v4764, 0
        %v4806 = vsel %vm2920, %v4765, 0
        %v4809 = vsel %vm2920, %v4766, 0
        %v4812 = vsel %vm2920, %v4767, 0
        %v4815 = vsel %vm2920, %v4768, 0
        %v4818 = vsel %vm2920, %v4769, 0
        %v4821 = vsel %vm3156, %v4771, 0
        %4823 = vmatpush.bf16.msra.mxu0 0
        %4824 = vmatpush.bf16.msra.mxu0 0
        %4825 = vmatpush.bf16.msra.mxu0 0
        %4826 = vmatpush.bf16.msra.mxu0 0
        %4827 = vmatpush.bf16.msra.mxu0 0
        %4828 = vmatpush.bf16.msra.mxu0 0
        %4829 = vmatpush.bf16.msra.mxu0 0
        %4830 = vmatpush.bf16.msra.mxu0 %v4821
        %4831 = vmatmul.bf16.gmra.mxu0 %v4773
        %v4832 = vpop.f32.mrf.mxu0
        %v4833 = vadd.f32 0.0, %v4832
        %v4834 = vpop.f32.mrf.mxu0
        %v4835 = vadd.f32 0.0, %v4834
        %4836 = vmatmul.bf16.gmra.mxu0 %v4776
        %v4837 = vpop.f32.mrf.mxu0
        %v4838 = vadd.f32 0.0, %v4837
        %v4839 = vpop.f32.mrf.mxu0
        %v4840 = vadd.f32 0.0, %v4839
        %4841 = vmatmul.bf16.gmra.mxu0 %v4779
        %v4842 = vpop.f32.mrf.mxu0
        %v4843 = vadd.f32 0.0, %v4842
        %v4844 = vpop.f32.mrf.mxu0
        %v4845 = vadd.f32 0.0, %v4844
        %4846 = vmatmul.bf16.gmra.mxu0 %v4782
        %v4847 = vpop.f32.mrf.mxu0
        %v4848 = vadd.f32 0.0, %v4847
        %v4849 = vpop.f32.mrf.mxu0
        %v4850 = vadd.f32 0.0, %v4849
        %4851 = vmatmul.bf16.gmra.mxu0 %v4785
        %v4852 = vpop.f32.mrf.mxu0
        %v4853 = vadd.f32 0.0, %v4852
        %v4854 = vpop.f32.mrf.mxu0
        %v4855 = vadd.f32 0.0, %v4854
        %4856 = vmatmul.bf16.gmra.mxu0 %v4788
        %v4857 = vpop.f32.mrf.mxu0
        %v4858 = vadd.f32 0.0, %v4857
        %v4859 = vpop.f32.mrf.mxu0
        %v4860 = vadd.f32 0.0, %v4859
        %4861 = vmatmul.bf16.gmra.mxu0 %v4791
        %v4862 = vpop.f32.mrf.mxu0
        %v4863 = vadd.f32 0.0, %v4862
        %v4864 = vpop.f32.mrf.mxu0
        %v4865 = vadd.f32 0.0, %v4864
        %4866 = vmatmul.bf16.gmra.mxu0 %v4794
        %v4867 = vpop.f32.mrf.mxu0
        %v4868 = vadd.f32 0.0, %v4867
        %v4869 = vpop.f32.mrf.mxu0
        %v4870 = vadd.f32 0.0, %v4869
        %4871 = vmatmul.bf16.gmra.mxu0 %v4797
        %v4872 = vpop.f32.mrf.mxu0
        %v4873 = vadd.f32 0.0, %v4872
        %v4874 = vpop.f32.mrf.mxu0
        %v4875 = vadd.f32 0.0, %v4874
        %4876 = vmatmul.bf16.gmra.mxu0 %v4800
        %v4877 = vpop.f32.mrf.mxu0
        %v4878 = vadd.f32 0.0, %v4877
        %v4879 = vpop.f32.mrf.mxu0
        %v4880 = vadd.f32 0.0, %v4879
        %4881 = vmatmul.bf16.gmra.mxu0 %v4803
        %v4882 = vpop.f32.mrf.mxu0
        %v4883 = vadd.f32 0.0, %v4882
        %v4884 = vpop.f32.mrf.mxu0
        %v4885 = vadd.f32 0.0, %v4884
        %4886 = vmatmul.bf16.gmra.mxu0 %v4806
        %v4887 = vpop.f32.mrf.mxu0
        %v4888 = vadd.f32 0.0, %v4887
        %v4889 = vpop.f32.mrf.mxu0
        %v4890 = vadd.f32 0.0, %v4889
        %4891 = vmatmul.bf16.gmra.mxu0 %v4809
        %v4892 = vpop.f32.mrf.mxu0
        %v4893 = vadd.f32 0.0, %v4892
        %v4894 = vpop.f32.mrf.mxu0
        %v4895 = vadd.f32 0.0, %v4894
        %4896 = vmatmul.bf16.gmra.mxu0 %v4812
        %v4897 = vpop.f32.mrf.mxu0
        %v4898 = vadd.f32 0.0, %v4897
        %v4899 = vpop.f32.mrf.mxu0
        %v4900 = vadd.f32 0.0, %v4899
        %4901 = vmatmul.bf16.gmra.mxu0 %v4815
        %v4902 = vpop.f32.mrf.mxu0
        %v4903 = vadd.f32 0.0, %v4902
        %v4904 = vpop.f32.mrf.mxu0
        %v4905 = vadd.f32 0.0, %v4904
        %4906 = vmatmul.bf16.gmra.mxu0 %v4818
        %v4907 = vpop.f32.mrf.mxu0
        %v4908 = vadd.f32 0.0, %v4907
        %v4909 = vpop.f32.mrf.mxu0
        %v4910 = vadd.f32 0.0, %v4909
        %4911 = vdwg.mxu0
        %v4912 = vadd.f32 %v4690, %v4833
        %v4913 = vadd.f32 %v4691, %v4835
        %v4914 = vadd.f32 %v4692, %v4838
        %v4915 = vadd.f32 %v4693, %v4840
        %v4916 = vadd.f32 %v4694, %v4843
        %v4917 = vadd.f32 %v4695, %v4845
        %v4918 = vadd.f32 %v4696, %v4848
        %v4919 = vadd.f32 %v4697, %v4850
        %v4920 = vadd.f32 %v4698, %v4853
        %v4921 = vadd.f32 %v4699, %v4855
        %v4922 = vadd.f32 %v4700, %v4858
        %v4923 = vadd.f32 %v4701, %v4860
        %v4924 = vadd.f32 %v4702, %v4863
        %v4925 = vadd.f32 %v4703, %v4865
        %v4926 = vadd.f32 %v4704, %v4868
        %v4927 = vadd.f32 %v4705, %v4870
        %v4928 = vadd.f32 %v4706, %v4873
        %v4929 = vadd.f32 %v4707, %v4875
        %v4930 = vadd.f32 %v4708, %v4878
        %v4931 = vadd.f32 %v4709, %v4880
        %v4932 = vadd.f32 %v4710, %v4883
        %v4933 = vadd.f32 %v4711, %v4885
        %v4934 = vadd.f32 %v4712, %v4888
        %v4935 = vadd.f32 %v4713, %v4890
        %v4936 = vadd.f32 %v4714, %v4893
        %v4937 = vadd.f32 %v4715, %v4895
        %v4938 = vadd.f32 %v4716, %v4898
        %v4939 = vadd.f32 %v4717, %v4900
        %v4940 = vadd.f32 %v4718, %v4903
        %v4941 = vadd.f32 %v4719, %v4905
        %v4942 = vadd.f32 %v4720, %v4908
        %v4943 = vadd.f32 %v4721, %v4910
        %v4944 = vld [vmem:[#allocation12] sm:$0x1]
        %v4945 = vperm.slane %v4944, 0
        %v4946 = vmul.f32 %v4912, %v4945
        %v4947 = vmul.f32 %v4913, %v4945
        %v4948 = vmul.f32 %v4914, %v4945
        %v4949 = vmul.f32 %v4915, %v4945
        %v4950 = vmul.f32 %v4916, %v4945
        %v4951 = vmul.f32 %v4917, %v4945
        %v4952 = vmul.f32 %v4918, %v4945
        %v4953 = vmul.f32 %v4919, %v4945
        %v4954 = vmul.f32 %v4920, %v4945
        %v4955 = vmul.f32 %v4921, %v4945
        %v4956 = vmul.f32 %v4922, %v4945
        %v4957 = vmul.f32 %v4923, %v4945
        %v4958 = vmul.f32 %v4924, %v4945
        %v4959 = vmul.f32 %v4925, %v4945
        %v4960 = vmul.f32 %v4926, %v4945
        %v4961 = vmul.f32 %v4927, %v4945
        %v4962 = vmul.f32 %v4928, %v4945
        %v4963 = vmul.f32 %v4929, %v4945
        %v4964 = vmul.f32 %v4930, %v4945
        %v4965 = vmul.f32 %v4931, %v4945
        %v4966 = vmul.f32 %v4932, %v4945
        %v4967 = vmul.f32 %v4933, %v4945
        %v4968 = vmul.f32 %v4934, %v4945
        %v4969 = vmul.f32 %v4935, %v4945
        %v4970 = vmul.f32 %v4936, %v4945
        %v4971 = vmul.f32 %v4937, %v4945
        %v4972 = vmul.f32 %v4938, %v4945
        %v4973 = vmul.f32 %v4939, %v4945
        %v4974 = vmul.f32 %v4940, %v4945
        %v4975 = vmul.f32 %v4941, %v4945
        %v4976 = vmul.f32 %v4942, %v4945
        %v4977 = vmul.f32 %v4943, %v4945
        %v4978 = vld [vmem:[#allocation12 + $0x1] sm:$0x1]
        %v4979 = vperm.slane %v4978, 0
        %v4980 = vadd.f32 %v4946, %v4979
        %v4981 = vadd.f32 %v4947, %v4979
        %v4982 = vadd.f32 %v4948, %v4979
        %v4983 = vadd.f32 %v4949, %v4979
        %v4984 = vadd.f32 %v4950, %v4979
        %v4985 = vadd.f32 %v4951, %v4979
        %v4986 = vadd.f32 %v4952, %v4979
        %v4987 = vadd.f32 %v4953, %v4979
        %v4988 = vadd.f32 %v4954, %v4979
        %v4989 = vadd.f32 %v4955, %v4979
        %v4990 = vadd.f32 %v4956, %v4979
        %v4991 = vadd.f32 %v4957, %v4979
        %v4992 = vadd.f32 %v4958, %v4979
        %v4993 = vadd.f32 %v4959, %v4979
        %v4994 = vadd.f32 %v4960, %v4979
        %v4995 = vadd.f32 %v4961, %v4979
        %v4996 = vadd.f32 %v4962, %v4979
        %v4997 = vadd.f32 %v4963, %v4979
        %v4998 = vadd.f32 %v4964, %v4979
        %v4999 = vadd.f32 %v4965, %v4979
        %v5000 = vadd.f32 %v4966, %v4979
        %v5001 = vadd.f32 %v4967, %v4979
        %v5002 = vadd.f32 %v4968, %v4979
        %v5003 = vadd.f32 %v4969, %v4979
        %v5004 = vadd.f32 %v4970, %v4979
        %v5005 = vadd.f32 %v4971, %v4979
        %v5006 = vadd.f32 %v4972, %v4979
        %v5007 = vadd.f32 %v4973, %v4979
        %v5008 = vadd.f32 %v4974, %v4979
        %v5009 = vadd.f32 %v4975, %v4979
        %v5010 = vadd.f32 %v4976, %v4979
        %v5011 = vadd.f32 %v4977, %v4979
        %vm5012 = vcmp.gt.f32.partialorder %v4980, 0.0
        %vm5013 = vcmp.gt.f32.partialorder %v4981, 0.0
        %vm5014 = vcmp.gt.f32.partialorder %v4982, 0.0
        %vm5015 = vcmp.gt.f32.partialorder %v4983, 0.0
        %vm5016 = vcmp.gt.f32.partialorder %v4984, 0.0
        %vm5017 = vcmp.gt.f32.partialorder %v4985, 0.0
        %vm5018 = vcmp.gt.f32.partialorder %v4986, 0.0
        %vm5019 = vcmp.gt.f32.partialorder %v4987, 0.0
        %vm5020 = vcmp.gt.f32.partialorder %v4988, 0.0
        %vm5021 = vcmp.gt.f32.partialorder %v4989, 0.0
        %vm5022 = vcmp.gt.f32.partialorder %v4990, 0.0
        %vm5023 = vcmp.gt.f32.partialorder %v4991, 0.0
        %vm5024 = vcmp.gt.f32.partialorder %v4992, 0.0
        %vm5025 = vcmp.gt.f32.partialorder %v4993, 0.0
        %vm5026 = vcmp.gt.f32.partialorder %v4994, 0.0
        %vm5027 = vcmp.gt.f32.partialorder %v4995, 0.0
        %vm5028 = vcmp.gt.f32.partialorder %v4996, 0.0
        %vm5029 = vcmp.gt.f32.partialorder %v4997, 0.0
        %vm5030 = vcmp.gt.f32.partialorder %v4998, 0.0
        %vm5031 = vcmp.gt.f32.partialorder %v4999, 0.0
        %vm5032 = vcmp.gt.f32.partialorder %v5000, 0.0
        %vm5033 = vcmp.gt.f32.partialorder %v5001, 0.0
        %vm5034 = vcmp.gt.f32.partialorder %v5002, 0.0
        %vm5035 = vcmp.gt.f32.partialorder %v5003, 0.0
        %vm5036 = vcmp.gt.f32.partialorder %v5004, 0.0
        %vm5037 = vcmp.gt.f32.partialorder %v5005, 0.0
        %vm5038 = vcmp.gt.f32.partialorder %v5006, 0.0
        %vm5039 = vcmp.gt.f32.partialorder %v5007, 0.0
        %vm5040 = vcmp.gt.f32.partialorder %v5008, 0.0
        %vm5041 = vcmp.gt.f32.partialorder %v5009, 0.0
        %vm5042 = vcmp.gt.f32.partialorder %v5010, 0.0
        %vm5043 = vcmp.gt.f32.partialorder %v5011, 0.0
        %v5044 = vld [vmem:[#allocation12 + $0x2] sm:$0x1]
        %v5045 = vperm.slane %v5044, 0
        %v5046 = vmul.f32 %v4980, %v5045
        %v5047 = vmul.f32 %v4981, %v5045
        %v5048 = vmul.f32 %v4982, %v5045
        %v5049 = vmul.f32 %v4983, %v5045
        %v5050 = vmul.f32 %v4984, %v5045
        %v5051 = vmul.f32 %v4985, %v5045
        %v5052 = vmul.f32 %v4986, %v5045
        %v5053 = vmul.f32 %v4987, %v5045
        %v5054 = vmul.f32 %v4988, %v5045
        %v5055 = vmul.f32 %v4989, %v5045
        %v5056 = vmul.f32 %v4990, %v5045
        %v5057 = vmul.f32 %v4991, %v5045
        %v5058 = vmul.f32 %v4992, %v5045
        %v5059 = vmul.f32 %v4993, %v5045
        %v5060 = vmul.f32 %v4994, %v5045
        %v5061 = vmul.f32 %v4995, %v5045
        %v5062 = vmul.f32 %v4996, %v5045
        %v5063 = vmul.f32 %v4997, %v5045
        %v5064 = vmul.f32 %v4998, %v5045
        %v5065 = vmul.f32 %v4999, %v5045
        %v5066 = vmul.f32 %v5000, %v5045
        %v5067 = vmul.f32 %v5001, %v5045
        %v5068 = vmul.f32 %v5002, %v5045
        %v5069 = vmul.f32 %v5003, %v5045
        %v5070 = vmul.f32 %v5004, %v5045
        %v5071 = vmul.f32 %v5005, %v5045
        %v5072 = vmul.f32 %v5006, %v5045
        %v5073 = vmul.f32 %v5007, %v5045
        %v5074 = vmul.f32 %v5008, %v5045
        %v5075 = vmul.f32 %v5009, %v5045
        %v5076 = vmul.f32 %v5010, %v5045
        %v5077 = vmul.f32 %v5011, %v5045
        %v5078 = vsel %vm5012, %v4980, %v5046
        %v5079 = vsel %vm5013, %v4981, %v5047
        %v5080 = vsel %vm5014, %v4982, %v5048
        %v5081 = vsel %vm5015, %v4983, %v5049
        %v5082 = vsel %vm5016, %v4984, %v5050
        %v5083 = vsel %vm5017, %v4985, %v5051
        %v5084 = vsel %vm5018, %v4986, %v5052
        %v5085 = vsel %vm5019, %v4987, %v5053
        %v5086 = vsel %vm5020, %v4988, %v5054
        %v5087 = vsel %vm5021, %v4989, %v5055
        %v5088 = vsel %vm5022, %v4990, %v5056
        %v5089 = vsel %vm5023, %v4991, %v5057
        %v5090 = vsel %vm5024, %v4992, %v5058
        %v5091 = vsel %vm5025, %v4993, %v5059
        %v5092 = vsel %vm5026, %v4994, %v5060
        %v5093 = vsel %vm5027, %v4995, %v5061
        %v5094 = vsel %vm5028, %v4996, %v5062
        %v5095 = vsel %vm5029, %v4997, %v5063
        %v5096 = vsel %vm5030, %v4998, %v5064
        %v5097 = vsel %vm5031, %v4999, %v5065
        %v5098 = vsel %vm5032, %v5000, %v5066
        %v5099 = vsel %vm5033, %v5001, %v5067
        %v5100 = vsel %vm5034, %v5002, %v5068
        %v5101 = vsel %vm5035, %v5003, %v5069
        %v5102 = vsel %vm5036, %v5004, %v5070
        %v5103 = vsel %vm5037, %v5005, %v5071
        %v5104 = vsel %vm5038, %v5006, %v5072
        %v5105 = vsel %vm5039, %v5007, %v5073
        %v5106 = vsel %vm5040, %v5008, %v5074
        %v5107 = vsel %vm5041, %v5009, %v5075
        %v5108 = vsel %vm5042, %v5010, %v5076
        %v5109 = vsel %vm5043, %v5011, %v5077
        %v5110 = vsel %vm479, %v447, 0.0
        %v5111 = vsel %vm479, %v448, 0.0
        %v5112 = vadd.f32 %v5110, %v5111
        %v5113 = vsel %vm479, %v449, 0.0
        %v5114 = vadd.f32 %v5112, %v5113
        %v5115 = vsel %vm479, %v450, 0.0
        %v5116 = vadd.f32 %v5114, %v5115
        %v5117 = vsel %vm479, %v451, 0.0
        %v5118 = vadd.f32 %v5116, %v5117
        %v5119 = vsel %vm479, %v452, 0.0
        %v5120 = vadd.f32 %v5118, %v5119
        %v5121 = vsel %vm479, %v453, 0.0
        %v5122 = vadd.f32 %v5120, %v5121
        %v5123 = vsel %vm479, %v454, 0.0
        %v5124 = vadd.f32 %v5122, %v5123
        %v5125 = vsel %vm479, %v455, 0.0
        %v5126 = vadd.f32 %v5124, %v5125
        %v5127 = vsel %vm479, %v456, 0.0
        %v5128 = vadd.f32 %v5126, %v5127
        %v5129 = vsel %vm479, %v457, 0.0
        %v5130 = vadd.f32 %v5128, %v5129
        %v5131 = vsel %vm479, %v458, 0.0
        %v5132 = vadd.f32 %v5130, %v5131
        %v5133 = vsel %vm479, %v459, 0.0
        %v5134 = vadd.f32 %v5132, %v5133
        %v5135 = vsel %vm479, %v460, 0.0
        %v5136 = vadd.f32 %v5134, %v5135
        %v5137 = vsel %vm479, %v461, 0.0
        %v5138 = vadd.f32 %v5136, %v5137
        %v5139 = vsel %vm479, %v462, 0.0
        %v5140 = vadd.f32 %v5138, %v5139
        %v5141 = vsel %vm479, %v463, 0.0
        %v5142 = vadd.f32 %v5140, %v5141
        %v5143 = vsel %vm479, %v464, 0.0
        %v5144 = vadd.f32 %v5142, %v5143
        %v5145 = vsel %vm479, %v465, 0.0
        %v5146 = vadd.f32 %v5144, %v5145
        %v5147 = vsel %vm479, %v466, 0.0
        %v5148 = vadd.f32 %v5146, %v5147
        %v5149 = vsel %vm479, %v467, 0.0
        %v5150 = vadd.f32 %v5148, %v5149
        %v5151 = vsel %vm479, %v468, 0.0
        %v5152 = vadd.f32 %v5150, %v5151
        %v5153 = vsel %vm479, %v469, 0.0
        %v5154 = vadd.f32 %v5152, %v5153
        %v5155 = vsel %vm479, %v470, 0.0
        %v5156 = vadd.f32 %v5154, %v5155
        %v5157 = vsel %vm479, %v471, 0.0
        %v5158 = vadd.f32 %v5156, %v5157
        %v5159 = vsel %vm479, %v472, 0.0
        %v5160 = vadd.f32 %v5158, %v5159
        %v5161 = vsel %vm479, %v473, 0.0
        %v5162 = vadd.f32 %v5160, %v5161
        %v5163 = vsel %vm479, %v474, 0.0
        %v5164 = vadd.f32 %v5162, %v5163
        %v5165 = vsel %vm479, %v475, 0.0
        %v5166 = vadd.f32 %v5164, %v5165
        %v5167 = vsel %vm479, %v476, 0.0
        %v5168 = vadd.f32 %v5166, %v5167
        %v5169 = vsel %vm479, %v477, 0.0
        %v5170 = vadd.f32 %v5168, %v5169
        %v5171 = vsel %vm479, %v478, 0.0
        %v5172 = vadd.f32 %v5170, %v5171
        %v5173 = vrot.slane %v5172, 4
        %v5174 = vadd.f32 %v5172, %v5173
        %v5175 = vrot.slane %v5174, 2
        %v5176 = vadd.f32 %v5174, %v5175
        %v5177 = vrot.slane %v5176, 1
        %v5178 = vadd.f32 %v5176, %v5177
        %v5179 = vmul.f32 %v5178, 0.00390625
        %v5180 = vpack.c.bf16 %v5179, %v5179
        %v5181 = vld [vmem:[#allocation13] sm:$0xf]
        %v5182 = vld [vmem:[#allocation13 + $0x4] sm:$0xf]
        %v5183 = vld [vmem:[#allocation13 + $0x8] sm:$0xf]
        %v5184 = vld [vmem:[#allocation13 + $0xc] sm:$0xf]
        %v5185 = vld [vmem:[#allocation13 + $0x10] sm:$0xf]
        %v5186 = vld [vmem:[#allocation13 + $0x14] sm:$0xf]
        %v5187 = vld [vmem:[#allocation13 + $0x18] sm:$0xf]
        %v5188 = vld [vmem:[#allocation13 + $0x1c] sm:$0xf]
        %v5197 = vunpack.c.l.b16 %v5181
        %v5198 = vunpack.c.l.b16 %v5182
        %v5199 = vunpack.c.l.b16 %v5183
        %v5200 = vunpack.c.l.b16 %v5184
        %v5201 = vunpack.c.l.b16 %v5185
        %v5202 = vunpack.c.l.b16 %v5186
        %v5203 = vunpack.c.l.b16 %v5187
        %v5204 = vunpack.c.l.b16 %v5188
        %v5205 = vpack.c.b16 %v5198, %v5197
        %v5206 = vpack.c.b16 %v5200, %v5199
        %v5207 = vpack.c.b16 %v5202, %v5201
        %v5208 = vpack.c.b16 %v5204, %v5203
        %v5214 = vsel %vm479, %v5180, 0
        %5216 = vmatpush.bf16.msra.mxu0 0
        %5217 = vmatpush.bf16.msra.mxu0 0
        %5218 = vmatpush.bf16.msra.mxu0 0
        %5219 = vmatpush.bf16.msra.mxu0 0
        %5220 = vmatpush.bf16.msra.mxu0 %v5208
        %5221 = vmatpush.bf16.msra.mxu0 %v5207
        %5222 = vmatpush.bf16.msra.mxu0 %v5206
        %5223 = vmatpush.bf16.msra.mxu0 %v5205
        %5224 = vmatmul.bf16.gmra.mxu0 %v5214
        %v5225 = vpop.f32.mrf.mxu0
        %v5226 = vadd.f32 0.0, %v5225
        %v5227 = vpop.f32.mrf.mxu0
        %5228 = vdwg.mxu0
        %v5229 = vld [vmem:[#allocation15] sm:$0x1]
        %v5230 = vperm.slane %v5229, 0
        %v5231 = vmul.f32 %v5226, %v5230
        %v5232 = vld [vmem:[#allocation15 + $0x1] sm:$0x1]
        %v5233 = vperm.slane %v5232, 0
        %v5234 = vadd.f32 %v5231, %v5233
        %vm5235 = vcmp.gt.f32.partialorder %v5234, 0.0
        %v5236 = vld [vmem:[#allocation15 + $0x2] sm:$0x1]
        %v5237 = vperm.slane %v5236, 0
        %v5238 = vmul.f32 %v5234, %v5237
        %v5239 = vsel %vm5235, %v5234, %v5238
        %v5240 = vpack.c.bf16 %v5239, %v5239
        %v5241 = vld [vmem:[%s7] sm:$0x3]
        %v5243 = vsel %vm2920, %v5240, 0
        %v5246 = vsel %vm3156, %v5241, 0
        %5248 = vmatpush.bf16.msra.mxu0 0
        %5249 = vmatpush.bf16.msra.mxu0 0
        %5250 = vmatpush.bf16.msra.mxu0 0
        %5251 = vmatpush.bf16.msra.mxu0 0
        %5252 = vmatpush.bf16.msra.mxu0 0
        %5253 = vmatpush.bf16.msra.mxu0 0
        %5254 = vmatpush.bf16.msra.mxu0 0
        %5255 = vmatpush.bf16.msra.mxu0 %v5246
        %5256 = vmatmul.bf16.gmra.mxu0 %v5243
        %v5257 = vpop.f32.mrf.mxu0
        %v5258 = vadd.f32 0.0, %v5257
        %v5259 = vpop.f32.mrf.mxu0
        %5260 = vdwg.mxu0
        %v5261 = vld [vmem:[%s8] sm:$0x1]
        %v5262 = vperm.slane %v5261, 0
        %v5263 = vmul.f32 %v5258, %v5262
        %v5264 = vld [vmem:[%s8 + $0x1] sm:$0x1]
        %v5265 = vperm.slane %v5264, 0
        %v5266 = vadd.f32 %v5263, %v5265
        %vm5267 = vcmp.gt.f32.partialorder %v5266, 0.0
        %v5268 = vld [vmem:[%s8 + $0x2] sm:$0x1]
        %v5269 = vperm.slane %v5268, 0
        %v5270 = vmul.f32 %v5266, %v5269
        %v5271 = vsel %vm5267, %v5266, %v5270
        %v5272 = vperm.slane %v5271, 0
        %v5273 = vadd.f32 %v5078, %v5272
        %v5274 = vadd.f32 %v5079, %v5272
        %v5275 = vadd.f32 %v5080, %v5272
        %v5276 = vadd.f32 %v5081, %v5272
        %v5277 = vadd.f32 %v5082, %v5272
        %v5278 = vadd.f32 %v5083, %v5272
        %v5279 = vadd.f32 %v5084, %v5272
        %v5280 = vadd.f32 %v5085, %v5272
        %v5281 = vadd.f32 %v5086, %v5272
        %v5282 = vadd.f32 %v5087, %v5272
        %v5283 = vadd.f32 %v5088, %v5272
        %v5284 = vadd.f32 %v5089, %v5272
        %v5285 = vadd.f32 %v5090, %v5272
        %v5286 = vadd.f32 %v5091, %v5272
        %v5287 = vadd.f32 %v5092, %v5272
        %v5288 = vadd.f32 %v5093, %v5272
        %v5289 = vadd.f32 %v5094, %v5272
        %v5290 = vadd.f32 %v5095, %v5272
        %v5291 = vadd.f32 %v5096, %v5272
        %v5292 = vadd.f32 %v5097, %v5272
        %v5293 = vadd.f32 %v5098, %v5272
        %v5294 = vadd.f32 %v5099, %v5272
        %v5295 = vadd.f32 %v5100, %v5272
        %v5296 = vadd.f32 %v5101, %v5272
        %v5297 = vadd.f32 %v5102, %v5272
        %v5298 = vadd.f32 %v5103, %v5272
        %v5299 = vadd.f32 %v5104, %v5272
        %v5300 = vadd.f32 %v5105, %v5272
        %v5301 = vadd.f32 %v5106, %v5272
        %v5302 = vadd.f32 %v5107, %v5272
        %v5303 = vadd.f32 %v5108, %v5272
        %v5304 = vadd.f32 %v5109, %v5272
        %v5305 = vmul.f32 %v447, 2.0
        %v5306 = vmul.f32 %v448, 2.0
        %v5307 = vmul.f32 %v449, 2.0
        %v5308 = vmul.f32 %v450, 2.0
        %v5309 = vmul.f32 %v451, 2.0
        %v5310 = vmul.f32 %v452, 2.0
        %v5311 = vmul.f32 %v453, 2.0
        %v5312 = vmul.f32 %v454, 2.0
        %v5313 = vmul.f32 %v455, 2.0
        %v5314 = vmul.f32 %v456, 2.0
        %v5315 = vmul.f32 %v457, 2.0
        %v5316 = vmul.f32 %v458, 2.0
        %v5317 = vmul.f32 %v459, 2.0
        %v5318 = vmul.f32 %v460, 2.0
        %v5319 = vmul.f32 %v461, 2.0
        %v5320 = vmul.f32 %v462, 2.0
        %v5321 = vmul.f32 %v463, 2.0
        %v5322 = vmul.f32 %v464, 2.0
        %v5323 = vmul.f32 %v465, 2.0
        %v5324 = vmul.f32 %v466, 2.0
        %v5325 = vmul.f32 %v467, 2.0
        %v5326 = vmul.f32 %v468, 2.0
        %v5327 = vmul.f32 %v469, 2.0
        %v5328 = vmul.f32 %v470, 2.0
        %v5329 = vmul.f32 %v471, 2.0
        %v5330 = vmul.f32 %v472, 2.0
        %v5331 = vmul.f32 %v473, 2.0
        %v5332 = vmul.f32 %v474, 2.0
        %v5333 = vmul.f32 %v475, 2.0
        %v5334 = vmul.f32 %v476, 2.0
        %v5335 = vmul.f32 %v477, 2.0
        %v5336 = vmul.f32 %v478, 2.0
        %v5337 = vadd.f32 %v5273, %v5305
        %v5338 = vadd.f32 %v5274, %v5306
        %v5339 = vadd.f32 %v5275, %v5307
        %v5340 = vadd.f32 %v5276, %v5308
        %v5341 = vadd.f32 %v5277, %v5309
        %v5342 = vadd.f32 %v5278, %v5310
        %v5343 = vadd.f32 %v5279, %v5311
        %v5344 = vadd.f32 %v5280, %v5312
        %v5345 = vadd.f32 %v5281, %v5313
        %v5346 = vadd.f32 %v5282, %v5314
        %v5347 = vadd.f32 %v5283, %v5315
        %v5348 = vadd.f32 %v5284, %v5316
        %v5349 = vadd.f32 %v5285, %v5317
        %v5350 = vadd.f32 %v5286, %v5318
        %v5351 = vadd.f32 %v5287, %v5319
        %v5352 = vadd.f32 %v5288, %v5320
        %v5353 = vadd.f32 %v5289, %v5321
        %v5354 = vadd.f32 %v5290, %v5322
        %v5355 = vadd.f32 %v5291, %v5323
        %v5356 = vadd.f32 %v5292, %v5324
        %v5357 = vadd.f32 %v5293, %v5325
        %v5358 = vadd.f32 %v5294, %v5326
        %v5359 = vadd.f32 %v5295, %v5327
        %v5360 = vadd.f32 %v5296, %v5328
        %v5361 = vadd.f32 %v5297, %v5329
        %v5362 = vadd.f32 %v5298, %v5330
        %v5363 = vadd.f32 %v5299, %v5331
        %v5364 = vadd.f32 %v5300, %v5332
        %v5365 = vadd.f32 %v5301, %v5333
        %v5366 = vadd.f32 %v5302, %v5334
        %v5367 = vadd.f32 %v5303, %v5335
        %v5368 = vadd.f32 %v5304, %v5336
        %v5369 = vsub.f32 0.0, %v5337
        %v5370 = vsub.f32 0.0, %v5338
        %v5371 = vsub.f32 0.0, %v5339
        %v5372 = vsub.f32 0.0, %v5340
        %v5373 = vsub.f32 0.0, %v5341
        %v5374 = vsub.f32 0.0, %v5342
        %v5375 = vsub.f32 0.0, %v5343
        %v5376 = vsub.f32 0.0, %v5344
        %v5377 = vsub.f32 0.0, %v5345
        %v5378 = vsub.f32 0.0, %v5346
        %v5379 = vsub.f32 0.0, %v5347
        %v5380 = vsub.f32 0.0, %v5348
        %v5381 = vsub.f32 0.0, %v5349
        %v5382 = vsub.f32 0.0, %v5350
        %v5383 = vsub.f32 0.0, %v5351
        %v5384 = vsub.f32 0.0, %v5352
        %v5385 = vsub.f32 0.0, %v5353
        %v5386 = vsub.f32 0.0, %v5354
        %v5387 = vsub.f32 0.0, %v5355
        %v5388 = vsub.f32 0.0, %v5356
        %v5389 = vsub.f32 0.0, %v5357
        %v5390 = vsub.f32 0.0, %v5358
        %v5391 = vsub.f32 0.0, %v5359
        %v5392 = vsub.f32 0.0, %v5360
        %v5393 = vsub.f32 0.0, %v5361
        %v5394 = vsub.f32 0.0, %v5362
        %v5395 = vsub.f32 0.0, %v5363
        %v5396 = vsub.f32 0.0, %v5364
        %v5397 = vsub.f32 0.0, %v5365
        %v5398 = vsub.f32 0.0, %v5366
        %v5399 = vsub.f32 0.0, %v5367
        %v5400 = vsub.f32 0.0, %v5368
        %v5401 = vmul.f32 %v5369, 1.442695
        %v5402 = vpow.pop %v5401
        %v5403 = vmul.f32 %v5370, 1.442695
        %v5404 = vpow.pop %v5403
        %v5405 = vmul.f32 %v5371, 1.442695
        %v5406 = vpow.pop %v5405
        %v5407 = vmul.f32 %v5372, 1.442695
        %v5408 = vpow.pop %v5407
        %v5409 = vmul.f32 %v5373, 1.442695
        %v5410 = vpow.pop %v5409
        %v5411 = vmul.f32 %v5374, 1.442695
        %v5412 = vpow.pop %v5411
        %v5413 = vmul.f32 %v5375, 1.442695
        %v5414 = vpow.pop %v5413
        %v5415 = vmul.f32 %v5376, 1.442695
        %v5416 = vpow.pop %v5415
        %v5417 = vmul.f32 %v5377, 1.442695
        %v5418 = vpow.pop %v5417
        %v5419 = vmul.f32 %v5378, 1.442695
        %v5420 = vpow.pop %v5419
        %v5421 = vmul.f32 %v5379, 1.442695
        %v5422 = vpow.pop %v5421
        %v5423 = vmul.f32 %v5380, 1.442695
        %v5424 = vpow.pop %v5423
        %v5425 = vmul.f32 %v5381, 1.442695
        %v5426 = vpow.pop %v5425
        %v5427 = vmul.f32 %v5382, 1.442695
        %v5428 = vpow.pop %v5427
        %v5429 = vmul.f32 %v5383, 1.442695
        %v5430 = vpow.pop %v5429
        %v5431 = vmul.f32 %v5384, 1.442695
        %v5432 = vpow.pop %v5431
        %v5433 = vmul.f32 %v5385, 1.442695
        %v5434 = vpow.pop %v5433
        %v5435 = vmul.f32 %v5386, 1.442695
        %v5436 = vpow.pop %v5435
        %v5437 = vmul.f32 %v5387, 1.442695
        %v5438 = vpow.pop %v5437
        %v5439 = vmul.f32 %v5388, 1.442695
        %v5440 = vpow.pop %v5439
        %v5441 = vmul.f32 %v5389, 1.442695
        %v5442 = vpow.pop %v5441
        %v5443 = vmul.f32 %v5390, 1.442695
        %v5444 = vpow.pop %v5443
        %v5445 = vmul.f32 %v5391, 1.442695
        %v5446 = vpow.pop %v5445
        %v5447 = vmul.f32 %v5392, 1.442695
        %v5448 = vpow.pop %v5447
        %v5449 = vmul.f32 %v5393, 1.442695
        %v5450 = vpow.pop %v5449
        %v5451 = vmul.f32 %v5394, 1.442695
        %v5452 = vpow.pop %v5451
        %v5453 = vmul.f32 %v5395, 1.442695
        %v5454 = vpow.pop %v5453
        %v5455 = vmul.f32 %v5396, 1.442695
        %v5456 = vpow.pop %v5455
        %v5457 = vmul.f32 %v5397, 1.442695
        %v5458 = vpow.pop %v5457
        %v5459 = vmul.f32 %v5398, 1.442695
        %v5460 = vpow.pop %v5459
        %v5461 = vmul.f32 %v5399, 1.442695
        %v5462 = vpow.pop %v5461
        %v5463 = vmul.f32 %v5400, 1.442695
        %v5464 = vpow.pop %v5463
        %v5465 = vadd.f32 %v5402, 1.0
        %v5466 = vadd.f32 %v5404, 1.0
        %v5467 = vadd.f32 %v5406, 1.0
        %v5468 = vadd.f32 %v5408, 1.0
        %v5469 = vadd.f32 %v5410, 1.0
        %v5470 = vadd.f32 %v5412, 1.0
        %v5471 = vadd.f32 %v5414, 1.0
        %v5472 = vadd.f32 %v5416, 1.0
        %v5473 = vadd.f32 %v5418, 1.0
        %v5474 = vadd.f32 %v5420, 1.0
        %v5475 = vadd.f32 %v5422, 1.0
        %v5476 = vadd.f32 %v5424, 1.0
        %v5477 = vadd.f32 %v5426, 1.0
        %v5478 = vadd.f32 %v5428, 1.0
        %v5479 = vadd.f32 %v5430, 1.0
        %v5480 = vadd.f32 %v5432, 1.0
        %v5481 = vadd.f32 %v5434, 1.0
        %v5482 = vadd.f32 %v5436, 1.0
        %v5483 = vadd.f32 %v5438, 1.0
        %v5484 = vadd.f32 %v5440, 1.0
        %v5485 = vadd.f32 %v5442, 1.0
        %v5486 = vadd.f32 %v5444, 1.0
        %v5487 = vadd.f32 %v5446, 1.0
        %v5488 = vadd.f32 %v5448, 1.0
        %v5489 = vadd.f32 %v5450, 1.0
        %v5490 = vadd.f32 %v5452, 1.0
        %v5491 = vadd.f32 %v5454, 1.0
        %v5492 = vadd.f32 %v5456, 1.0
        %v5493 = vadd.f32 %v5458, 1.0
        %v5494 = vadd.f32 %v5460, 1.0
        %v5495 = vadd.f32 %v5462, 1.0
        %v5496 = vadd.f32 %v5464, 1.0
        %v5497 = vrcp.pop %v5465
        %v5498 = vmul.f32 %v5465, %v5497
        %v5499 = vsub.f32 1.0, %v5498
        %v5500 = vmul.f32 %v5497, %v5499
        %v5501 = vadd.f32 %v5497, %v5500
        %vm5502 = vweird.f32 %v5465
        %vm5503 = vweird.f32 %v5497
        %vm5504 = vmor %vm5502, %vm5503
        %v5505 = vsel %vm5504, %v5497, %v5501
        %v5506 = vand.u32 2147483647, %v5465
        %vm5507 = vcmp.eq.f32.partialorder %v5506, 8.507059e+37
        %v5508 = vand.u32 %v5465, 2147483648
        %v5509 = vor.u32 1.1754944e-38, %v5508
        %v5510 = vsel %vm5507, %v5509, %v5505
        %v5511 = vmul.f32 1.0, %v5510
        %v5512 = vrcp.pop %v5466
        %v5513 = vmul.f32 %v5466, %v5512
        %v5514 = vsub.f32 1.0, %v5513
        %v5515 = vmul.f32 %v5512, %v5514
        %v5516 = vadd.f32 %v5512, %v5515
        %vm5517 = vweird.f32 %v5466
        %vm5518 = vweird.f32 %v5512
        %vm5519 = vmor %vm5517, %vm5518
        %v5520 = vsel %vm5519, %v5512, %v5516
        %v5521 = vand.u32 2147483647, %v5466
        %vm5522 = vcmp.eq.f32.partialorder %v5521, 8.507059e+37
        %v5523 = vand.u32 %v5466, 2147483648
        %v5524 = vor.u32 1.1754944e-38, %v5523
        %v5525 = vsel %vm5522, %v5524, %v5520
        %v5526 = vmul.f32 1.0, %v5525
        %v5527 = vrcp.pop %v5467
        %v5528 = vmul.f32 %v5467, %v5527
        %v5529 = vsub.f32 1.0, %v5528
        %v5530 = vmul.f32 %v5527, %v5529
        %v5531 = vadd.f32 %v5527, %v5530
        %vm5532 = vweird.f32 %v5467
        %vm5533 = vweird.f32 %v5527
        %vm5534 = vmor %vm5532, %vm5533
        %v5535 = vsel %vm5534, %v5527, %v5531
        %v5536 = vand.u32 2147483647, %v5467
        %vm5537 = vcmp.eq.f32.partialorder %v5536, 8.507059e+37
        %v5538 = vand.u32 %v5467, 2147483648
        %v5539 = vor.u32 1.1754944e-38, %v5538
        %v5540 = vsel %vm5537, %v5539, %v5535
        %v5541 = vmul.f32 1.0, %v5540
        %v5542 = vrcp.pop %v5468
        %v5543 = vmul.f32 %v5468, %v5542
        %v5544 = vsub.f32 1.0, %v5543
        %v5545 = vmul.f32 %v5542, %v5544
        %v5546 = vadd.f32 %v5542, %v5545
        %vm5547 = vweird.f32 %v5468
        %vm5548 = vweird.f32 %v5542
        %vm5549 = vmor %vm5547, %vm5548
        %v5550 = vsel %vm5549, %v5542, %v5546
        %v5551 = vand.u32 2147483647, %v5468
        %vm5552 = vcmp.eq.f32.partialorder %v5551, 8.507059e+37
        %v5553 = vand.u32 %v5468, 2147483648
        %v5554 = vor.u32 1.1754944e-38, %v5553
        %v5555 = vsel %vm5552, %v5554, %v5550
        %v5556 = vmul.f32 1.0, %v5555
        %v5557 = vrcp.pop %v5469
        %v5558 = vmul.f32 %v5469, %v5557
        %v5559 = vsub.f32 1.0, %v5558
        %v5560 = vmul.f32 %v5557, %v5559
        %v5561 = vadd.f32 %v5557, %v5560
        %vm5562 = vweird.f32 %v5469
        %vm5563 = vweird.f32 %v5557
        %vm5564 = vmor %vm5562, %vm5563
        %v5565 = vsel %vm5564, %v5557, %v5561
        %v5566 = vand.u32 2147483647, %v5469
        %vm5567 = vcmp.eq.f32.partialorder %v5566, 8.507059e+37
        %v5568 = vand.u32 %v5469, 2147483648
        %v5569 = vor.u32 1.1754944e-38, %v5568
        %v5570 = vsel %vm5567, %v5569, %v5565
        %v5571 = vmul.f32 1.0, %v5570
        %v5572 = vrcp.pop %v5470
        %v5573 = vmul.f32 %v5470, %v5572
        %v5574 = vsub.f32 1.0, %v5573
        %v5575 = vmul.f32 %v5572, %v5574
        %v5576 = vadd.f32 %v5572, %v5575
        %vm5577 = vweird.f32 %v5470
        %vm5578 = vweird.f32 %v5572
        %vm5579 = vmor %vm5577, %vm5578
        %v5580 = vsel %vm5579, %v5572, %v5576
        %v5581 = vand.u32 2147483647, %v5470
        %vm5582 = vcmp.eq.f32.partialorder %v5581, 8.507059e+37
        %v5583 = vand.u32 %v5470, 2147483648
        %v5584 = vor.u32 1.1754944e-38, %v5583
        %v5585 = vsel %vm5582, %v5584, %v5580
        %v5586 = vmul.f32 1.0, %v5585
        %v5587 = vrcp.pop %v5471
        %v5588 = vmul.f32 %v5471, %v5587
        %v5589 = vsub.f32 1.0, %v5588
        %v5590 = vmul.f32 %v5587, %v5589
        %v5591 = vadd.f32 %v5587, %v5590
        %vm5592 = vweird.f32 %v5471
        %vm5593 = vweird.f32 %v5587
        %vm5594 = vmor %vm5592, %vm5593
        %v5595 = vsel %vm5594, %v5587, %v5591
        %v5596 = vand.u32 2147483647, %v5471
        %vm5597 = vcmp.eq.f32.partialorder %v5596, 8.507059e+37
        %v5598 = vand.u32 %v5471, 2147483648
        %v5599 = vor.u32 1.1754944e-38, %v5598
        %v5600 = vsel %vm5597, %v5599, %v5595
        %v5601 = vmul.f32 1.0, %v5600
        %v5602 = vrcp.pop %v5472
        %v5603 = vmul.f32 %v5472, %v5602
        %v5604 = vsub.f32 1.0, %v5603
        %v5605 = vmul.f32 %v5602, %v5604
        %v5606 = vadd.f32 %v5602, %v5605
        %vm5607 = vweird.f32 %v5472
        %vm5608 = vweird.f32 %v5602
        %vm5609 = vmor %vm5607, %vm5608
        %v5610 = vsel %vm5609, %v5602, %v5606
        %v5611 = vand.u32 2147483647, %v5472
        %vm5612 = vcmp.eq.f32.partialorder %v5611, 8.507059e+37
        %v5613 = vand.u32 %v5472, 2147483648
        %v5614 = vor.u32 1.1754944e-38, %v5613
        %v5615 = vsel %vm5612, %v5614, %v5610
        %v5616 = vmul.f32 1.0, %v5615
        %v5617 = vrcp.pop %v5473
        %v5618 = vmul.f32 %v5473, %v5617
        %v5619 = vsub.f32 1.0, %v5618
        %v5620 = vmul.f32 %v5617, %v5619
        %v5621 = vadd.f32 %v5617, %v5620
        %vm5622 = vweird.f32 %v5473
        %vm5623 = vweird.f32 %v5617
        %vm5624 = vmor %vm5622, %vm5623
        %v5625 = vsel %vm5624, %v5617, %v5621
        %v5626 = vand.u32 2147483647, %v5473
        %vm5627 = vcmp.eq.f32.partialorder %v5626, 8.507059e+37
        %v5628 = vand.u32 %v5473, 2147483648
        %v5629 = vor.u32 1.1754944e-38, %v5628
        %v5630 = vsel %vm5627, %v5629, %v5625
        %v5631 = vmul.f32 1.0, %v5630
        %v5632 = vrcp.pop %v5474
        %v5633 = vmul.f32 %v5474, %v5632
        %v5634 = vsub.f32 1.0, %v5633
        %v5635 = vmul.f32 %v5632, %v5634
        %v5636 = vadd.f32 %v5632, %v5635
        %vm5637 = vweird.f32 %v5474
        %vm5638 = vweird.f32 %v5632
        %vm5639 = vmor %vm5637, %vm5638
        %v5640 = vsel %vm5639, %v5632, %v5636
        %v5641 = vand.u32 2147483647, %v5474
        %vm5642 = vcmp.eq.f32.partialorder %v5641, 8.507059e+37
        %v5643 = vand.u32 %v5474, 2147483648
        %v5644 = vor.u32 1.1754944e-38, %v5643
        %v5645 = vsel %vm5642, %v5644, %v5640
        %v5646 = vmul.f32 1.0, %v5645
        %v5647 = vrcp.pop %v5475
        %v5648 = vmul.f32 %v5475, %v5647
        %v5649 = vsub.f32 1.0, %v5648
        %v5650 = vmul.f32 %v5647, %v5649
        %v5651 = vadd.f32 %v5647, %v5650
        %vm5652 = vweird.f32 %v5475
        %vm5653 = vweird.f32 %v5647
        %vm5654 = vmor %vm5652, %vm5653
        %v5655 = vsel %vm5654, %v5647, %v5651
        %v5656 = vand.u32 2147483647, %v5475
        %vm5657 = vcmp.eq.f32.partialorder %v5656, 8.507059e+37
        %v5658 = vand.u32 %v5475, 2147483648
        %v5659 = vor.u32 1.1754944e-38, %v5658
        %v5660 = vsel %vm5657, %v5659, %v5655
        %v5661 = vmul.f32 1.0, %v5660
        %v5662 = vrcp.pop %v5476
        %v5663 = vmul.f32 %v5476, %v5662
        %v5664 = vsub.f32 1.0, %v5663
        %v5665 = vmul.f32 %v5662, %v5664
        %v5666 = vadd.f32 %v5662, %v5665
        %vm5667 = vweird.f32 %v5476
        %vm5668 = vweird.f32 %v5662
        %vm5669 = vmor %vm5667, %vm5668
        %v5670 = vsel %vm5669, %v5662, %v5666
        %v5671 = vand.u32 2147483647, %v5476
        %vm5672 = vcmp.eq.f32.partialorder %v5671, 8.507059e+37
        %v5673 = vand.u32 %v5476, 2147483648
        %v5674 = vor.u32 1.1754944e-38, %v5673
        %v5675 = vsel %vm5672, %v5674, %v5670
        %v5676 = vmul.f32 1.0, %v5675
        %v5677 = vrcp.pop %v5477
        %v5678 = vmul.f32 %v5477, %v5677
        %v5679 = vsub.f32 1.0, %v5678
        %v5680 = vmul.f32 %v5677, %v5679
        %v5681 = vadd.f32 %v5677, %v5680
        %vm5682 = vweird.f32 %v5477
        %vm5683 = vweird.f32 %v5677
        %vm5684 = vmor %vm5682, %vm5683
        %v5685 = vsel %vm5684, %v5677, %v5681
        %v5686 = vand.u32 2147483647, %v5477
        %vm5687 = vcmp.eq.f32.partialorder %v5686, 8.507059e+37
        %v5688 = vand.u32 %v5477, 2147483648
        %v5689 = vor.u32 1.1754944e-38, %v5688
        %v5690 = vsel %vm5687, %v5689, %v5685
        %v5691 = vmul.f32 1.0, %v5690
        %v5692 = vrcp.pop %v5478
        %v5693 = vmul.f32 %v5478, %v5692
        %v5694 = vsub.f32 1.0, %v5693
        %v5695 = vmul.f32 %v5692, %v5694
        %v5696 = vadd.f32 %v5692, %v5695
        %vm5697 = vweird.f32 %v5478
        %vm5698 = vweird.f32 %v5692
        %vm5699 = vmor %vm5697, %vm5698
        %v5700 = vsel %vm5699, %v5692, %v5696
        %v5701 = vand.u32 2147483647, %v5478
        %vm5702 = vcmp.eq.f32.partialorder %v5701, 8.507059e+37
        %v5703 = vand.u32 %v5478, 2147483648
        %v5704 = vor.u32 1.1754944e-38, %v5703
        %v5705 = vsel %vm5702, %v5704, %v5700
        %v5706 = vmul.f32 1.0, %v5705
        %v5707 = vrcp.pop %v5479
        %v5708 = vmul.f32 %v5479, %v5707
        %v5709 = vsub.f32 1.0, %v5708
        %v5710 = vmul.f32 %v5707, %v5709
        %v5711 = vadd.f32 %v5707, %v5710
        %vm5712 = vweird.f32 %v5479
        %vm5713 = vweird.f32 %v5707
        %vm5714 = vmor %vm5712, %vm5713
        %v5715 = vsel %vm5714, %v5707, %v5711
        %v5716 = vand.u32 2147483647, %v5479
        %vm5717 = vcmp.eq.f32.partialorder %v5716, 8.507059e+37
        %v5718 = vand.u32 %v5479, 2147483648
        %v5719 = vor.u32 1.1754944e-38, %v5718
        %v5720 = vsel %vm5717, %v5719, %v5715
        %v5721 = vmul.f32 1.0, %v5720
        %v5722 = vrcp.pop %v5480
        %v5723 = vmul.f32 %v5480, %v5722
        %v5724 = vsub.f32 1.0, %v5723
        %v5725 = vmul.f32 %v5722, %v5724
        %v5726 = vadd.f32 %v5722, %v5725
        %vm5727 = vweird.f32 %v5480
        %vm5728 = vweird.f32 %v5722
        %vm5729 = vmor %vm5727, %vm5728
        %v5730 = vsel %vm5729, %v5722, %v5726
        %v5731 = vand.u32 2147483647, %v5480
        %vm5732 = vcmp.eq.f32.partialorder %v5731, 8.507059e+37
        %v5733 = vand.u32 %v5480, 2147483648
        %v5734 = vor.u32 1.1754944e-38, %v5733
        %v5735 = vsel %vm5732, %v5734, %v5730
        %v5736 = vmul.f32 1.0, %v5735
        %v5737 = vrcp.pop %v5481
        %v5738 = vmul.f32 %v5481, %v5737
        %v5739 = vsub.f32 1.0, %v5738
        %v5740 = vmul.f32 %v5737, %v5739
        %v5741 = vadd.f32 %v5737, %v5740
        %vm5742 = vweird.f32 %v5481
        %vm5743 = vweird.f32 %v5737
        %vm5744 = vmor %vm5742, %vm5743
        %v5745 = vsel %vm5744, %v5737, %v5741
        %v5746 = vand.u32 2147483647, %v5481
        %vm5747 = vcmp.eq.f32.partialorder %v5746, 8.507059e+37
        %v5748 = vand.u32 %v5481, 2147483648
        %v5749 = vor.u32 1.1754944e-38, %v5748
        %v5750 = vsel %vm5747, %v5749, %v5745
        %v5751 = vmul.f32 1.0, %v5750
        %v5752 = vrcp.pop %v5482
        %v5753 = vmul.f32 %v5482, %v5752
        %v5754 = vsub.f32 1.0, %v5753
        %v5755 = vmul.f32 %v5752, %v5754
        %v5756 = vadd.f32 %v5752, %v5755
        %vm5757 = vweird.f32 %v5482
        %vm5758 = vweird.f32 %v5752
        %vm5759 = vmor %vm5757, %vm5758
        %v5760 = vsel %vm5759, %v5752, %v5756
        %v5761 = vand.u32 2147483647, %v5482
        %vm5762 = vcmp.eq.f32.partialorder %v5761, 8.507059e+37
        %v5763 = vand.u32 %v5482, 2147483648
        %v5764 = vor.u32 1.1754944e-38, %v5763
        %v5765 = vsel %vm5762, %v5764, %v5760
        %v5766 = vmul.f32 1.0, %v5765
        %v5767 = vrcp.pop %v5483
        %v5768 = vmul.f32 %v5483, %v5767
        %v5769 = vsub.f32 1.0, %v5768
        %v5770 = vmul.f32 %v5767, %v5769
        %v5771 = vadd.f32 %v5767, %v5770
        %vm5772 = vweird.f32 %v5483
        %vm5773 = vweird.f32 %v5767
        %vm5774 = vmor %vm5772, %vm5773
        %v5775 = vsel %vm5774, %v5767, %v5771
        %v5776 = vand.u32 2147483647, %v5483
        %vm5777 = vcmp.eq.f32.partialorder %v5776, 8.507059e+37
        %v5778 = vand.u32 %v5483, 2147483648
        %v5779 = vor.u32 1.1754944e-38, %v5778
        %v5780 = vsel %vm5777, %v5779, %v5775
        %v5781 = vmul.f32 1.0, %v5780
        %v5782 = vrcp.pop %v5484
        %v5783 = vmul.f32 %v5484, %v5782
        %v5784 = vsub.f32 1.0, %v5783
        %v5785 = vmul.f32 %v5782, %v5784
        %v5786 = vadd.f32 %v5782, %v5785
        %vm5787 = vweird.f32 %v5484
        %vm5788 = vweird.f32 %v5782
        %vm5789 = vmor %vm5787, %vm5788
        %v5790 = vsel %vm5789, %v5782, %v5786
        %v5791 = vand.u32 2147483647, %v5484
        %vm5792 = vcmp.eq.f32.partialorder %v5791, 8.507059e+37
        %v5793 = vand.u32 %v5484, 2147483648
        %v5794 = vor.u32 1.1754944e-38, %v5793
        %v5795 = vsel %vm5792, %v5794, %v5790
        %v5796 = vmul.f32 1.0, %v5795
        %v5797 = vrcp.pop %v5485
        %v5798 = vmul.f32 %v5485, %v5797
        %v5799 = vsub.f32 1.0, %v5798
        %v5800 = vmul.f32 %v5797, %v5799
        %v5801 = vadd.f32 %v5797, %v5800
        %vm5802 = vweird.f32 %v5485
        %vm5803 = vweird.f32 %v5797
        %vm5804 = vmor %vm5802, %vm5803
        %v5805 = vsel %vm5804, %v5797, %v5801
        %v5806 = vand.u32 2147483647, %v5485
        %vm5807 = vcmp.eq.f32.partialorder %v5806, 8.507059e+37
        %v5808 = vand.u32 %v5485, 2147483648
        %v5809 = vor.u32 1.1754944e-38, %v5808
        %v5810 = vsel %vm5807, %v5809, %v5805
        %v5811 = vmul.f32 1.0, %v5810
        %v5812 = vrcp.pop %v5486
        %v5813 = vmul.f32 %v5486, %v5812
        %v5814 = vsub.f32 1.0, %v5813
        %v5815 = vmul.f32 %v5812, %v5814
        %v5816 = vadd.f32 %v5812, %v5815
        %vm5817 = vweird.f32 %v5486
        %vm5818 = vweird.f32 %v5812
        %vm5819 = vmor %vm5817, %vm5818
        %v5820 = vsel %vm5819, %v5812, %v5816
        %v5821 = vand.u32 2147483647, %v5486
        %vm5822 = vcmp.eq.f32.partialorder %v5821, 8.507059e+37
        %v5823 = vand.u32 %v5486, 2147483648
        %v5824 = vor.u32 1.1754944e-38, %v5823
        %v5825 = vsel %vm5822, %v5824, %v5820
        %v5826 = vmul.f32 1.0, %v5825
        %v5827 = vrcp.pop %v5487
        %v5828 = vmul.f32 %v5487, %v5827
        %v5829 = vsub.f32 1.0, %v5828
        %v5830 = vmul.f32 %v5827, %v5829
        %v5831 = vadd.f32 %v5827, %v5830
        %vm5832 = vweird.f32 %v5487
        %vm5833 = vweird.f32 %v5827
        %vm5834 = vmor %vm5832, %vm5833
        %v5835 = vsel %vm5834, %v5827, %v5831
        %v5836 = vand.u32 2147483647, %v5487
        %vm5837 = vcmp.eq.f32.partialorder %v5836, 8.507059e+37
        %v5838 = vand.u32 %v5487, 2147483648
        %v5839 = vor.u32 1.1754944e-38, %v5838
        %v5840 = vsel %vm5837, %v5839, %v5835
        %v5841 = vmul.f32 1.0, %v5840
        %v5842 = vrcp.pop %v5488
        %v5843 = vmul.f32 %v5488, %v5842
        %v5844 = vsub.f32 1.0, %v5843
        %v5845 = vmul.f32 %v5842, %v5844
        %v5846 = vadd.f32 %v5842, %v5845
        %vm5847 = vweird.f32 %v5488
        %vm5848 = vweird.f32 %v5842
        %vm5849 = vmor %vm5847, %vm5848
        %v5850 = vsel %vm5849, %v5842, %v5846
        %v5851 = vand.u32 2147483647, %v5488
        %vm5852 = vcmp.eq.f32.partialorder %v5851, 8.507059e+37
        %v5853 = vand.u32 %v5488, 2147483648
        %v5854 = vor.u32 1.1754944e-38, %v5853
        %v5855 = vsel %vm5852, %v5854, %v5850
        %v5856 = vmul.f32 1.0, %v5855
        %v5857 = vrcp.pop %v5489
        %v5858 = vmul.f32 %v5489, %v5857
        %v5859 = vsub.f32 1.0, %v5858
        %v5860 = vmul.f32 %v5857, %v5859
        %v5861 = vadd.f32 %v5857, %v5860
        %vm5862 = vweird.f32 %v5489
        %vm5863 = vweird.f32 %v5857
        %vm5864 = vmor %vm5862, %vm5863
        %v5865 = vsel %vm5864, %v5857, %v5861
        %v5866 = vand.u32 2147483647, %v5489
        %vm5867 = vcmp.eq.f32.partialorder %v5866, 8.507059e+37
        %v5868 = vand.u32 %v5489, 2147483648
        %v5869 = vor.u32 1.1754944e-38, %v5868
        %v5870 = vsel %vm5867, %v5869, %v5865
        %v5871 = vmul.f32 1.0, %v5870
        %v5872 = vrcp.pop %v5490
        %v5873 = vmul.f32 %v5490, %v5872
        %v5874 = vsub.f32 1.0, %v5873
        %v5875 = vmul.f32 %v5872, %v5874
        %v5876 = vadd.f32 %v5872, %v5875
        %vm5877 = vweird.f32 %v5490
        %vm5878 = vweird.f32 %v5872
        %vm5879 = vmor %vm5877, %vm5878
        %v5880 = vsel %vm5879, %v5872, %v5876
        %v5881 = vand.u32 2147483647, %v5490
        %vm5882 = vcmp.eq.f32.partialorder %v5881, 8.507059e+37
        %v5883 = vand.u32 %v5490, 2147483648
        %v5884 = vor.u32 1.1754944e-38, %v5883
        %v5885 = vsel %vm5882, %v5884, %v5880
        %v5886 = vmul.f32 1.0, %v5885
        %v5887 = vrcp.pop %v5491
        %v5888 = vmul.f32 %v5491, %v5887
        %v5889 = vsub.f32 1.0, %v5888
        %v5890 = vmul.f32 %v5887, %v5889
        %v5891 = vadd.f32 %v5887, %v5890
        %vm5892 = vweird.f32 %v5491
        %vm5893 = vweird.f32 %v5887
        %vm5894 = vmor %vm5892, %vm5893
        %v5895 = vsel %vm5894, %v5887, %v5891
        %v5896 = vand.u32 2147483647, %v5491
        %vm5897 = vcmp.eq.f32.partialorder %v5896, 8.507059e+37
        %v5898 = vand.u32 %v5491, 2147483648
        %v5899 = vor.u32 1.1754944e-38, %v5898
        %v5900 = vsel %vm5897, %v5899, %v5895
        %v5901 = vmul.f32 1.0, %v5900
        %v5902 = vrcp.pop %v5492
        %v5903 = vmul.f32 %v5492, %v5902
        %v5904 = vsub.f32 1.0, %v5903
        %v5905 = vmul.f32 %v5902, %v5904
        %v5906 = vadd.f32 %v5902, %v5905
        %vm5907 = vweird.f32 %v5492
        %vm5908 = vweird.f32 %v5902
        %vm5909 = vmor %vm5907, %vm5908
        %v5910 = vsel %vm5909, %v5902, %v5906
        %v5911 = vand.u32 2147483647, %v5492
        %vm5912 = vcmp.eq.f32.partialorder %v5911, 8.507059e+37
        %v5913 = vand.u32 %v5492, 2147483648
        %v5914 = vor.u32 1.1754944e-38, %v5913
        %v5915 = vsel %vm5912, %v5914, %v5910
        %v5916 = vmul.f32 1.0, %v5915
        %v5917 = vrcp.pop %v5493
        %v5918 = vmul.f32 %v5493, %v5917
        %v5919 = vsub.f32 1.0, %v5918
        %v5920 = vmul.f32 %v5917, %v5919
        %v5921 = vadd.f32 %v5917, %v5920
        %vm5922 = vweird.f32 %v5493
        %vm5923 = vweird.f32 %v5917
        %vm5924 = vmor %vm5922, %vm5923
        %v5925 = vsel %vm5924, %v5917, %v5921
        %v5926 = vand.u32 2147483647, %v5493
        %vm5927 = vcmp.eq.f32.partialorder %v5926, 8.507059e+37
        %v5928 = vand.u32 %v5493, 2147483648
        %v5929 = vor.u32 1.1754944e-38, %v5928
        %v5930 = vsel %vm5927, %v5929, %v5925
        %v5931 = vmul.f32 1.0, %v5930
        %v5932 = vrcp.pop %v5494
        %v5933 = vmul.f32 %v5494, %v5932
        %v5934 = vsub.f32 1.0, %v5933
        %v5935 = vmul.f32 %v5932, %v5934
        %v5936 = vadd.f32 %v5932, %v5935
        %vm5937 = vweird.f32 %v5494
        %vm5938 = vweird.f32 %v5932
        %vm5939 = vmor %vm5937, %vm5938
        %v5940 = vsel %vm5939, %v5932, %v5936
        %v5941 = vand.u32 2147483647, %v5494
        %vm5942 = vcmp.eq.f32.partialorder %v5941, 8.507059e+37
        %v5943 = vand.u32 %v5494, 2147483648
        %v5944 = vor.u32 1.1754944e-38, %v5943
        %v5945 = vsel %vm5942, %v5944, %v5940
        %v5946 = vmul.f32 1.0, %v5945
        %v5947 = vrcp.pop %v5495
        %v5948 = vmul.f32 %v5495, %v5947
        %v5949 = vsub.f32 1.0, %v5948
        %v5950 = vmul.f32 %v5947, %v5949
        %v5951 = vadd.f32 %v5947, %v5950
        %vm5952 = vweird.f32 %v5495
        %vm5953 = vweird.f32 %v5947
        %vm5954 = vmor %vm5952, %vm5953
        %v5955 = vsel %vm5954, %v5947, %v5951
        %v5956 = vand.u32 2147483647, %v5495
        %vm5957 = vcmp.eq.f32.partialorder %v5956, 8.507059e+37
        %v5958 = vand.u32 %v5495, 2147483648
        %v5959 = vor.u32 1.1754944e-38, %v5958
        %v5960 = vsel %vm5957, %v5959, %v5955
        %v5961 = vmul.f32 1.0, %v5960
        %v5962 = vrcp.pop %v5496
        %v5963 = vmul.f32 %v5496, %v5962
        %v5964 = vsub.f32 1.0, %v5963
        %v5965 = vmul.f32 %v5962, %v5964
        %v5966 = vadd.f32 %v5962, %v5965
        %vm5967 = vweird.f32 %v5496
        %vm5968 = vweird.f32 %v5962
        %vm5969 = vmor %vm5967, %vm5968
        %v5970 = vsel %vm5969, %v5962, %v5966
        %v5971 = vand.u32 2147483647, %v5496
        %vm5972 = vcmp.eq.f32.partialorder %v5971, 8.507059e+37
        %v5973 = vand.u32 %v5496, 2147483648
        %v5974 = vor.u32 1.1754944e-38, %v5973
        %v5975 = vsel %vm5972, %v5974, %v5970
        %v5976 = vmul.f32 1.0, %v5975
        %5977 = vst.msk [vmem:[%s445] sm:$0xff] %vm479, %v5511
        %5978 = vst.msk [vmem:[%s445 + $0x8] sm:$0xff] %vm479, %v5526
        %5979 = vst.msk [vmem:[%s445 + $0x10] sm:$0xff] %vm479, %v5541
        %5980 = vst.msk [vmem:[%s445 + $0x18] sm:$0xff] %vm479, %v5556
        %5981 = vst.msk [vmem:[%s445 + $0x20] sm:$0xff] %vm479, %v5571
        %5982 = vst.msk [vmem:[%s445 + $0x28] sm:$0xff] %vm479, %v5586
        %5983 = vst.msk [vmem:[%s445 + $0x30] sm:$0xff] %vm479, %v5601
        %5984 = vst.msk [vmem:[%s445 + $0x38] sm:$0xff] %vm479, %v5616
        %5985 = vst.msk [vmem:[%s445 + $0x40] sm:$0xff] %vm479, %v5631
        %5986 = vst.msk [vmem:[%s445 + $0x48] sm:$0xff] %vm479, %v5646
        %5987 = vst.msk [vmem:[%s445 + $0x50] sm:$0xff] %vm479, %v5661
        %5988 = vst.msk [vmem:[%s445 + $0x58] sm:$0xff] %vm479, %v5676
        %5989 = vst.msk [vmem:[%s445 + $0x60] sm:$0xff] %vm479, %v5691
        %5990 = vst.msk [vmem:[%s445 + $0x68] sm:$0xff] %vm479, %v5706
        %5991 = vst.msk [vmem:[%s445 + $0x70] sm:$0xff] %vm479, %v5721
        %5992 = vst.msk [vmem:[%s445 + $0x78] sm:$0xff] %vm479, %v5736
        %5993 = vst.msk [vmem:[%s445 + $0x80] sm:$0xff] %vm479, %v5751
        %5994 = vst.msk [vmem:[%s445 + $0x88] sm:$0xff] %vm479, %v5766
        %5995 = vst.msk [vmem:[%s445 + $0x90] sm:$0xff] %vm479, %v5781
        %5996 = vst.msk [vmem:[%s445 + $0x98] sm:$0xff] %vm479, %v5796
        %5997 = vst.msk [vmem:[%s445 + $0xa0] sm:$0xff] %vm479, %v5811
        %5998 = vst.msk [vmem:[%s445 + $0xa8] sm:$0xff] %vm479, %v5826
        %5999 = vst.msk [vmem:[%s445 + $0xb0] sm:$0xff] %vm479, %v5841
        %6000 = vst.msk [vmem:[%s445 + $0xb8] sm:$0xff] %vm479, %v5856
        %6001 = vst.msk [vmem:[%s445 + $0xc0] sm:$0xff] %vm479, %v5871
        %6002 = vst.msk [vmem:[%s445 + $0xc8] sm:$0xff] %vm479, %v5886
        %6003 = vst.msk [vmem:[%s445 + $0xd0] sm:$0xff] %vm479, %v5901
        %6004 = vst.msk [vmem:[%s445 + $0xd8] sm:$0xff] %vm479, %v5916
        %6005 = vst.msk [vmem:[%s445 + $0xe0] sm:$0xff] %vm479, %v5931
        %6006 = vst.msk [vmem:[%s445 + $0xe8] sm:$0xff] %vm479, %v5946
        %6007 = vst.msk [vmem:[%s445 + $0xf0] sm:$0xff] %vm479, %v5961
        %6008 = vst.msk [vmem:[%s445 + $0xf8] sm:$0xff] %vm479, %v5976
        %s6009 = sand.u32 %s231, 1
        %s6010 = scalar_lea.sflag [#allocation6], %s6009
        %s6011 = sand.u32 %s231, 1
        %s6012 = smul.addr %s6011, 256
        %s6013 = scalar_lea.vmem [#allocation16], %s6012
        // Predicated region
        $region85: #{_lambda_.1} parent=55 // pred_check
          %p6014 = pneg %p241
        $region86: #{_lambda_.1} parent=55 // pred_check_branch
          %6016 = sbr.rel (%p6014) target = $region88
        $region87: #{_lambda_.1} parent=55 // pred_region
          %6018 = vsyncadd %s6010, 0
          %s6019 = smul.addr %s29, 32
          %s6020 = smul.addr %s6019, 8
          %s6021 = scalar_lea.hbm %s9, %s6020
          %s6022 = sshll.u32 %s6013, 4
          %s6023 = int_to_ptr.vmem [resolvable:$true] %s6022
          %s6024 = sshll.u32 %s6021, 4
          %s6025 = int_to_ptr.hbm [resolvable:$true] %s6024
          %6030 = dma.vmem_to_hbm [thread:$0]  %s6023, 4096, %s6025, %s6010, 128, 128, 8
        $region88: #{_lambda_.1} parent=55 // pred_fallthru
          _
      $region56: #{_lambda_.1} parent=5 // pred_fallthru
        _
      %p6031 = scmp.le.s32.totalorder 2, %s24
      // Predicated region
      $region89: #{_lambda_.1} parent=5 // pred_check
        %p6032 = pneg %p6031
      $region90: #{_lambda_.1} parent=5 // pred_check_branch
        %6034 = sbr.rel (%p6032) target = $region92
      $region91: #{_lambda_.1} parent=5 // pred_region
        %s6035 = ssub.s32 %s24, 2
        // Predicated region
        $region93: #{_lambda_.1} parent=91 // pred_check
          %p6036 = pneg %p247
        $region94: #{_lambda_.1} parent=91 // pred_check_branch
          %6038 = sbr.rel (%p6036) target = $region96
        $region95: #{_lambda_.1} parent=91 // pred_region
          %s6039 = sand.u32 %s232, 1
          %s6040 = scalar_lea.sflag [#allocation6], %s6039
          %s6041 = sand.u32 %s232, 1
          %s6042 = smul.addr %s6041, 256
          %s6043 = scalar_lea.vmem [#allocation16], %s6042
          %6045 = dma.done %s6040, 4096
        $region96: #{_lambda_.1} parent=91 // pred_fallthru
          _
      $region92: #{_lambda_.1} parent=5 // pred_fallthru
        _
    $region6: #{_lambda_.1} parent=1 // loop_footer
      %s28 = sadd.s32 1, %s24
    $region7: #{_lambda_.1} parent=1 // loop_footer_branch
      %23 = sbr.rel target = $region3
    $region8: #{_lambda_.1} parent=1 // loop_exit
      _
    %6046 = vsyncpa [#allocation5], 1
    %s6047 = scalar_lea.sflag [#allocation5], 1
    %6048 = vsyncpa %s6047, 1
    %6049 = vsyncpa [#allocation8], 1
    %6050 = vsyncpa [#allocation11], 1
    %6051 = vsyncpa [#allocation14], 1
    %6052 = vsyncpa [#allocation6], 1
    %s6053 = scalar_lea.sflag [#allocation6], 1
    %6054 = vsyncpa %s6053, 1

</llo_original>
